<compile_context>
chip_gen: v7x
topology: tpu7x:2x2x1
jax: 0.10.0
libtpu: 0.0.40
codegen_flags: <defaults>
</compile_context>

<pallas_src>
import math
import numpy as np
import jax
import jax.numpy as jnp
from jax.experimental import pallas as pl
from jax.experimental.pallas import tpu as pltpu

LANE = 128


def _make_attention_kernel(S, H, NH, DPH, BB, compute_dtype, use_lane_dense):
    scale = 1.0 / math.sqrt(DPH)
    SQRT_2_OVER_PI = 0.7978845608028654
    f32 = jnp.float32
    cdt = compute_dtype
    rows_per_out = (LANE // H) if use_lane_dense else 0
    n_out_rows = ((BB * S * H) // LANE) if use_lane_dense else 0

    def kernel(x_ref, e_ref,
               wq_ref, bq_ref, wk_ref, bk_ref, wv_ref, bv_ref, wo_ref, bo_ref,
               we1_ref, be1_ref, we2_ref, be2_ref, we3_ref, be3_ref,
               gsa_ref, bsa_ref,
               wp1_ref, bp1_ref, wp2_ref, bp2_ref,
               gout_ref, bout_ref,
               alpha_ref, beta_ref,
               out_ref):
        # Flatten the BB batch rows of this block into the row dimension so every
        # projection / MLP matmul gets BB*S (or BB*S*S) rows instead of S.
        x = x_ref[...].reshape(BB * S, H)          # f32, (BB*S, H)
        e = e_ref[...].reshape(BB * S * S, H)      # f32, (BB*S*S, H)

        def linear(inp, w_ref, b_ref):
            # bf16 operands, f32 accumulation; bias add in f32.
            return jnp.dot(inp.astype(cdt), w_ref[...],
                           preferred_element_type=f32) + b_ref[...]

        # Q / K / V projections over all BB*S rows at once.
        q = linear(x, wq_ref, bq_ref)
        k = linear(x, wk_ref, bk_ref)
        v = linear(x, wv_ref, bv_ref)

        # edge_coeff_lin: Linear -> ReLU -> (dropout=id) -> Linear -> ReLU ->
        #                 (dropout=id) -> Linear(H, NH)
        h1 = jnp.maximum(linear(e, we1_ref, be1_ref), 0.0)
        h2 = jnp.maximum(linear(h1, we2_ref, be2_ref), 0.0)
        c3 = linear(h2, we3_ref, be3_ref)          # (BB*S*S, NH) f32

        # Stack all (batch, head) pairs into one leading "g" axis -> a single
        # batched contraction replaces NH (x BB) tiny per-head MXU calls.
        def head_stack(t):
            parts = [t[bb * S:(bb + 1) * S, h * DPH:(h + 1) * DPH]
                     for bb in range(BB) for h in range(NH)]
            return jnp.stack(parts, axis=0).astype(cdt)   # (BB*NH, S, DPH)

        qs = head_stack(q)
        ks = head_stack(k)
        vs = head_stack(v)

        # coeff[g=(bb,h), i, j] == c3[bb*S*S + i*S + j, h]
        # (matches the torch reshape(bs,S*S,NH,1)->shape()->reshape chain).
        bias_parts = []
        for bb in range(BB):
            c3_b = c3[bb * S * S:(bb + 1) * S * S, :].reshape(S, S, NH)
            for h in range(NH):
                bias_parts.append(c3_b[:, :, h])
        bias = jnp.stack(bias_parts, axis=0)       # (BB*NH, S, S) f32

        # Scalars read once from SMEM; fold 1/sqrt(dph) into alpha.
        alpha = alpha_ref[0]
        beta = beta_ref[0]
        a_scale = alpha * scale

        # scores / softmax / context -- one batched contraction each.
        s = jnp.einsum('gqd,gkd->gqk', qs, ks, preferred_element_type=f32)
        s = a_scale * s + beta * bias
        s = s - jnp.max(s, axis=-1, keepdims=True)
        p = jnp.exp(s)
        w = p * pl.reciprocal(jnp.sum(p, axis=-1, keepdims=True), approx=True)
        ctx = jnp.einsum('gqk,gkd->gqd', w.astype(cdt), vs,
                         preferred_element_type=f32)      # (BB*NH, S, DPH)

        # "unshape": group heads back to (BB*S, H).
        rows = []
        for bb in range(BB):
            rows.append(jnp.concatenate(
                [ctx[bb * NH + h] for h in range(NH)], axis=-1))   # (S, H)
        ctx_flat = jnp.concatenate(rows, axis=0)                    # (BB*S, H)

        res = linear(ctx_flat, wo_ref, bo_ref)     # out_lin

        def layer_norm(yy, g_ref, b_ref):
            mu = jnp.mean(yy, axis=-1, keepdims=True)
            var = jnp.mean((yy - mu) ** 2, axis=-1, keepdims=True)
            return (yy - mu) * jax.lax.rsqrt(var + 1e-5) * g_ref[...] + b_ref[...]

        y = layer_norm(res + x, gsa_ref, bsa_ref)  # sa_layer_norm

        # post_process: Linear(H, 2H) -> GELU -> Linear(2H, H) -> (dropout=id)
        p1 = linear(y, wp1_ref, bp1_ref)
        # TODO(synk): nn.GELU default is exact erf GELU; tanh approximation used here.
        p1 = 0.5 * p1 * (1.0 + jnp.tanh(SQRT_2_OVER_PI * (p1 + 0.044715 * p1 * p1 * p1)))
        p2 = linear(p1, wp2_ref, bp2_ref)

        z = layer_norm(p2 + y, gout_ref, bout_ref).astype(out_ref.dtype)  # (BB*S, H)

        if use_lane_dense:
            # Pack rows_per_out rows of width H into one 128-lane row so the store
            # is an unmasked full-lane vst (built with slices + lane concat only).
            out_rows = []
            for r in range(n_out_rows):
                pieces = [z[r * rows_per_out + j: r * rows_per_out + j + 1, :]
                          for j in range(rows_per_out)]
                out_rows.append(jnp.concatenate(pieces, axis=1))    # (1, 128)
            out_ref[0] = jnp.concatenate(out_rows, axis=0)          # (n_out_rows, 128)
        else:
            out_ref[...] = z.reshape(BB, S, H)

    return kernel


def attention_forward(x, edge_attr, params, *, batch_block=1,
                      compute_dtype=jnp.bfloat16):
    B, S, H = x.shape
    NH = params["num_heads"]
    DPH = H // NH
    BB = batch_block
    assert B % BB == 0, "batch must be divisible by batch_block"
    NB = B // BB          # keep >= 2 grid steps when possible (v7x: 2 TensorCores)

    use_lane_dense = (H < LANE) and (LANE % H == 0) and ((BB * S * H) % LANE == 0)
    n_out_rows = ((BB * S * H) // LANE) if use_lane_dense else None

    kernel = _make_attention_kernel(S, H, NH, DPH, BB, compute_dtype, use_lane_dense)

    def c(w):  # matmul weights shipped in compute dtype (halves weight DMA bytes)
        return w.astype(compute_dtype)

    weight_args = [
        c(params["wq"]), params["bq"], c(params["wk"]), params["bk"],
        c(params["wv"]), params["bv"], c(params["wo"]), params["bo"],
        c(params["we1"]), params["be1"], c(params["we2"]), params["be2"],
        c(params["we3"]), params["be3"],
        params["gsa"], params["bsa"],
        c(params["wp1"]), params["bp1"], c(params["wp2"]), params["bp2"],
        params["gout"], params["bout"],
    ]
    scalar_args = [params["alpha"], params["beta"]]      # (1,) f32 -> SMEM

    in_specs = [
        pl.BlockSpec((BB, S, H), lambda b: (b, 0, 0)),          # x
        pl.BlockSpec((BB, S * S, H), lambda b: (b, 0, 0)),      # edge_attr
    ]
    for wa in weight_args:                                      # replicated weights
        in_specs.append(pl.BlockSpec(wa.shape, lambda b, _n=wa.ndim: (0,) * _n))
    for _ in scalar_args:                                       # alpha / beta scalars
        in_specs.append(pl.BlockSpec(memory_space=pltpu.MemorySpace.SMEM))

    if use_lane_dense:
        out_shape = jax.ShapeDtypeStruct((NB, n_out_rows, LANE), x.dtype)
        out_spec = pl.BlockSpec((1, n_out_rows, LANE), lambda b: (b, 0, 0))
    else:
        out_shape = jax.ShapeDtypeStruct((B, S, H), x.dtype)
        out_spec = pl.BlockSpec((BB, S, H), lambda b: (b, 0, 0))

    out = pl.pallas_call(
        kernel,
        out_shape=out_shape,
        grid=(NB,),
        in_specs=in_specs,
        out_specs=out_spec,
        compiler_params=pltpu.CompilerParams(
            dimension_semantics=("parallel",),
            vmem_limit_bytes=32 * 1024 * 1024),
    )(x, edge_attr, *weight_args, *scalar_args)

    if use_lane_dense:
        out = out.reshape(B, S, H)
    return out


def init_params(key, H, NH):
    ks = jax.random.split(key, 16)

    def w(k, shape, scale=0.05):
        return (scale * jax.random.normal(k, shape)).astype(jnp.float32)

    p = {"num_heads": NH}
    p["wq"], p["bq"] = w(ks[0], (H, H)), w(ks[1], (1, H))
    p["wk"], p["bk"] = w(ks[2], (H, H)), w(ks[3], (1, H))
    p["wv"], p["bv"] = w(ks[4], (H, H)), w(ks[5], (1, H))
    p["wo"], p["bo"] = w(ks[6], (H, H)), w(ks[7], (1, H))
    p["we1"], p["be1"] = w(ks[8], (H, H)), w(ks[9], (1, H))
    p["we2"], p["be2"] = w(ks[10], (H, H)), w(ks[11], (1, H))
    p["we3"], p["be3"] = w(ks[12], (H, NH)), w(ks[13], (1, NH))
    p["wp1"], p["bp1"] = w(ks[14], (H, 2 * H)), jnp.zeros((1, 2 * H), jnp.float32)
    p["wp2"], p["bp2"] = w(ks[15], (2 * H, H)), jnp.zeros((1, H), jnp.float32)
    p["gsa"], p["bsa"] = jnp.ones((1, H), jnp.float32), jnp.zeros((1, H), jnp.float32)
    p["gout"], p["bout"] = jnp.ones((1, H), jnp.float32), jnp.zeros((1, H), jnp.float32)
    p["alpha"] = jnp.ones((1,), jnp.float32)   # torch.ones(1)
    p["beta"] = jnp.ones((1,), jnp.float32)
    return p


def reference_forward(x, edge_attr, p, matmul_dtype=jnp.float32):
    """Pure-JAX reference mirroring the PyTorch forward (eval mode).

    matmul_dtype controls the precision of matmul operands (f32 accumulation),
    so it can mirror the kernel's bf16 matmul policy for a tight comparison.
    """
    B, S, H = x.shape
    NH = p["num_heads"]
    DPH = H // NH
    d = matmul_dtype
    SQRT_2_OVER_PI = 0.7978845608028654

    def lin(a, w, b):
        return jnp.dot(a.astype(d), w.astype(d),
                       preferred_element_type=jnp.float32) + b[0]

    q = lin(x, p["wq"], p["bq"]).reshape(B, S, NH, DPH).transpose(0, 2, 1, 3)
    k = lin(x, p["wk"], p["bk"]).reshape(B, S, NH, DPH).transpose(0, 2, 1, 3)
    v = lin(x, p["wv"], p["bv"]).reshape(B, S, NH, DPH).transpose(0, 2, 1, 3)
    scores = jnp.einsum("bhqd,bhkd->bhqk", q.astype(d), k.astype(d),
                        preferred_element_type=jnp.float32)

    h1 = jax.nn.relu(lin(edge_attr, p["we1"], p["be1"]))
    h2 = jax.nn.relu(lin(h1, p["we2"], p["be2"]))
    c3 = lin(h2, p["we3"], p["be3"])                               # (B, S*S, NH)
    coeff = c3.reshape(B, S, S, NH).transpose(0, 3, 1, 2)          # (B, NH, S, S)

    a_scale = p["alpha"][0] / math.sqrt(DPH)
    scores = a_scale * scores + p["beta"][0] * coeff
    w = jax.nn.softmax(scores, axis=-1)
    ctx = jnp.einsum("bhqk,bhkd->bhqd", w.astype(d), v.astype(d),
                     preferred_element_type=jnp.float32)
    ctx = ctx.transpose(0, 2, 1, 3).reshape(B, S, H)
    res = lin(ctx, p["wo"], p["bo"])

    def ln(a, g, b):
        mu = jnp.mean(a, axis=-1, keepdims=True)
        var = jnp.mean((a - mu) ** 2, axis=-1, keepdims=True)
        return (a - mu) * jax.lax.rsqrt(var + 1e-5) * g[0] + b[0]

    y = ln(res + x, p["gsa"], p["bsa"])
    p1 = lin(y, p["wp1"], p["bp1"])
    p1 = 0.5 * p1 * (1.0 + jnp.tanh(SQRT_2_OVER_PI * (p1 + 0.044715 * p1 ** 3)))
    p2 = lin(p1, p["wp2"], p["bp2"])
    return ln(p2 + y, p["gout"], p["bout"])


if __name__ == "__main__":
    B, S, H, NH = 2, 8, 32, 4
    key = jax.random.PRNGKey(0)
    kx, ke, kp = jax.random.split(key, 3)

    x = jax.random.normal(kx, (B, S, H), jnp.float32)
    edge_attr = jax.random.normal(ke, (B, S * S, H), jnp.float32)
    edge_index = jnp.zeros((B, 2, S * S), jnp.int32)   # unused by the forward pass

    params = init_params(kp, H, NH)

    out = attention_forward(x, edge_attr, params)      # bf16 matmuls, f32 accumulation
    out = jax.block_until_ready(out)
    assert out.shape == (B, S, H)

    # Tight check vs. a reference that mirrors the kernel's bf16 matmul policy.
    ref_bf16 = reference_forward(x, edge_attr, params, matmul_dtype=jnp.bfloat16)
    np.testing.assert_allclose(np.asarray(out), np.asarray(ref_bf16),
                               atol=2e-3, rtol=2e-3)
    # Loose sanity check vs. the full-f32 reference (bf16 quantization headroom).
    ref_f32 = reference_forward(x, edge_attr, params, matmul_dtype=jnp.float32)
    np.testing.assert_allclose(np.asarray(out), np.asarray(ref_f32),
                               atol=5e-2, rtol=5e-2)
    print("KERNEL_OK")
</pallas_src>

<mosaic_0001>
module attributes {stable_mosaic.version = 11 : i64} {
  func.func @kernel(%arg0: i32, %arg1: memref<1x8x32xf32, #tpu.memory_space<vmem>>, %arg2: memref<1x64x32xf32, #tpu.memory_space<vmem>>, %arg3: memref<32x32xbf16, #tpu.memory_space<vmem>>, %arg4: memref<1x32xf32, #tpu.memory_space<vmem>>, %arg5: memref<32x32xbf16, #tpu.memory_space<vmem>>, %arg6: memref<1x32xf32, #tpu.memory_space<vmem>>, %arg7: memref<32x32xbf16, #tpu.memory_space<vmem>>, %arg8: memref<1x32xf32, #tpu.memory_space<vmem>>, %arg9: memref<32x32xbf16, #tpu.memory_space<vmem>>, %arg10: memref<1x32xf32, #tpu.memory_space<vmem>>, %arg11: memref<32x32xbf16, #tpu.memory_space<vmem>>, %arg12: memref<1x32xf32, #tpu.memory_space<vmem>>, %arg13: memref<32x32xbf16, #tpu.memory_space<vmem>>, %arg14: memref<1x32xf32, #tpu.memory_space<vmem>>, %arg15: memref<32x4xbf16, #tpu.memory_space<vmem>>, %arg16: memref<1x4xf32, #tpu.memory_space<vmem>>, %arg17: memref<1x32xf32, #tpu.memory_space<vmem>>, %arg18: memref<1x32xf32, #tpu.memory_space<vmem>>, %arg19: memref<32x64xbf16, #tpu.memory_space<vmem>>, %arg20: memref<1x64xf32, #tpu.memory_space<vmem>>, %arg21: memref<64x32xbf16, #tpu.memory_space<vmem>>, %arg22: memref<1x32xf32, #tpu.memory_space<vmem>>, %arg23: memref<1x32xf32, #tpu.memory_space<vmem>>, %arg24: memref<1x32xf32, #tpu.memory_space<vmem>>, %arg25: memref<1xf32, #tpu.memory_space<smem>>, %arg26: memref<1xf32, #tpu.memory_space<smem>>, %arg27: memref<1x2x128xf32, #tpu.memory_space<vmem>>) attributes {dimension_semantics = [#tpu.dimension_semantics<parallel>], iteration_bounds = array<i64: 2>, scalar_prefetch = 0 : i64, scratch_operands = 0 : i64, tpu.core_type = #tpu.core_type<tc>, window_params = [{transform_indices = @transform_0, window_bounds = array<i64: 1, 8, 32>}, {transform_indices = @transform_1, window_bounds = array<i64: 1, 64, 32>}, {pipeline_mode = #tpu.pipeline_mode<synchronous>, transform_indices = @transform_2, window_bounds = array<i64: 32, 32>}, {pipeline_mode = #tpu.pipeline_mode<synchronous>, transform_indices = @transform_3, window_bounds = array<i64: 1, 32>}, {pipeline_mode = #tpu.pipeline_mode<synchronous>, transform_indices = @transform_4, window_bounds = array<i64: 32, 32>}, {pipeline_mode = #tpu.pipeline_mode<synchronous>, transform_indices = @transform_5, window_bounds = array<i64: 1, 32>}, {pipeline_mode = #tpu.pipeline_mode<synchronous>, transform_indices = @transform_6, window_bounds = array<i64: 32, 32>}, {pipeline_mode = #tpu.pipeline_mode<synchronous>, transform_indices = @transform_7, window_bounds = array<i64: 1, 32>}, {pipeline_mode = #tpu.pipeline_mode<synchronous>, transform_indices = @transform_8, window_bounds = array<i64: 32, 32>}, {pipeline_mode = #tpu.pipeline_mode<synchronous>, transform_indices = @transform_9, window_bounds = array<i64: 1, 32>}, {pipeline_mode = #tpu.pipeline_mode<synchronous>, transform_indices = @transform_10, window_bounds = array<i64: 32, 32>}, {pipeline_mode = #tpu.pipeline_mode<synchronous>, transform_indices = @transform_11, window_bounds = array<i64: 1, 32>}, {pipeline_mode = #tpu.pipeline_mode<synchronous>, transform_indices = @transform_12, window_bounds = array<i64: 32, 32>}, {pipeline_mode = #tpu.pipeline_mode<synchronous>, transform_indices = @transform_13, window_bounds = array<i64: 1, 32>}, {pipeline_mode = #tpu.pipeline_mode<synchronous>, transform_indices = @transform_14, window_bounds = array<i64: 32, 4>}, {pipeline_mode = #tpu.pipeline_mode<synchronous>, transform_indices = @transform_15, window_bounds = array<i64: 1, 4>}, {pipeline_mode = #tpu.pipeline_mode<synchronous>, transform_indices = @transform_16, window_bounds = array<i64: 1, 32>}, {pipeline_mode = #tpu.pipeline_mode<synchronous>, transform_indices = @transform_17, window_bounds = array<i64: 1, 32>}, {pipeline_mode = #tpu.pipeline_mode<synchronous>, transform_indices = @transform_18, window_bounds = array<i64: 32, 64>}, {pipeline_mode = #tpu.pipeline_mode<synchronous>, transform_indices = @transform_19, window_bounds = array<i64: 1, 64>}, {pipeline_mode = #tpu.pipeline_mode<synchronous>, transform_indices = @transform_20, window_bounds = array<i64: 64, 32>}, {pipeline_mode = #tpu.pipeline_mode<synchronous>, transform_indices = @transform_21, window_bounds = array<i64: 1, 32>}, {pipeline_mode = #tpu.pipeline_mode<synchronous>, transform_indices = @transform_22, window_bounds = array<i64: 1, 32>}, {pipeline_mode = #tpu.pipeline_mode<synchronous>, transform_indices = @transform_23, window_bounds = array<i64: 1, 32>}, {transform_indices = @transform_24, window_bounds = array<i64: 1>}, {transform_indices = @transform_25, window_bounds = array<i64: 1>}, {transform_indices = @transform_26, window_bounds = array<i64: 1, 2, 128>}]} {
    %c0 = arith.constant 0 : index
    %c0_0 = arith.constant 0 : index
    %c0_1 = arith.constant 0 : index
    %0 = vector.load %arg1[%c0, %c0_0, %c0_1] : memref<1x8x32xf32, #tpu.memory_space<vmem>>, vector<1x8x32xf32>
    %1 = vector.shape_cast %0 : vector<1x8x32xf32> to vector<8x32xf32>
    %c0_2 = arith.constant 0 : index
    %c0_3 = arith.constant 0 : index
    %c0_4 = arith.constant 0 : index
    %2 = vector.load %arg2[%c0_2, %c0_3, %c0_4] : memref<1x64x32xf32, #tpu.memory_space<vmem>>, vector<1x64x32xf32>
    %3 = vector.shape_cast %2 : vector<1x64x32xf32> to vector<64x32xf32>
    %4 = arith.truncf %1 : vector<8x32xf32> to vector<8x32xbf16>
    %c0_5 = arith.constant 0 : index
    %c0_6 = arith.constant 0 : index
    %5 = vector.load %arg3[%c0_5, %c0_6] : memref<32x32xbf16, #tpu.memory_space<vmem>>, vector<32x32xbf16>
    %cst = arith.constant dense<0.000000e+00> : vector<8x32xf32>
    %6 = tpu.matmul %4, %5, %cst {dimension_numbers = #tpu.dot_dimension_numbers<[1], [0], [0], [1], [0, 0, 1, 1], [], []>} : vector<8x32xbf16>, vector<32x32xbf16>, vector<8x32xf32> -> vector<8x32xf32>
    %c0_7 = arith.constant 0 : index
    %c0_8 = arith.constant 0 : index
    %7 = vector.load %arg4[%c0_7, %c0_8] : memref<1x32xf32, #tpu.memory_space<vmem>>, vector<1x32xf32>
    %8 = vector.broadcast %7 : vector<1x32xf32> to vector<8x32xf32>
    %9 = arith.addf %6, %8 : vector<8x32xf32>
    %10 = arith.truncf %1 : vector<8x32xf32> to vector<8x32xbf16>
    %c0_9 = arith.constant 0 : index
    %c0_10 = arith.constant 0 : index
    %11 = vector.load %arg5[%c0_9, %c0_10] : memref<32x32xbf16, #tpu.memory_space<vmem>>, vector<32x32xbf16>
    %cst_11 = arith.constant dense<0.000000e+00> : vector<8x32xf32>
    %12 = tpu.matmul %10, %11, %cst_11 {dimension_numbers = #tpu.dot_dimension_numbers<[1], [0], [0], [1], [0, 0, 1, 1], [], []>} : vector<8x32xbf16>, vector<32x32xbf16>, vector<8x32xf32> -> vector<8x32xf32>
    %c0_12 = arith.constant 0 : index
    %c0_13 = arith.constant 0 : index
    %13 = vector.load %arg6[%c0_12, %c0_13] : memref<1x32xf32, #tpu.memory_space<vmem>>, vector<1x32xf32>
    %14 = vector.broadcast %13 : vector<1x32xf32> to vector<8x32xf32>
    %15 = arith.addf %12, %14 : vector<8x32xf32>
    %16 = arith.truncf %1 : vector<8x32xf32> to vector<8x32xbf16>
    %c0_14 = arith.constant 0 : index
    %c0_15 = arith.constant 0 : index
    %17 = vector.load %arg7[%c0_14, %c0_15] : memref<32x32xbf16, #tpu.memory_space<vmem>>, vector<32x32xbf16>
    %cst_16 = arith.constant dense<0.000000e+00> : vector<8x32xf32>
    %18 = tpu.matmul %16, %17, %cst_16 {dimension_numbers = #tpu.dot_dimension_numbers<[1], [0], [0], [1], [0, 0, 1, 1], [], []>} : vector<8x32xbf16>, vector<32x32xbf16>, vector<8x32xf32> -> vector<8x32xf32>
    %c0_17 = arith.constant 0 : index
    %c0_18 = arith.constant 0 : index
    %19 = vector.load %arg8[%c0_17, %c0_18] : memref<1x32xf32, #tpu.memory_space<vmem>>, vector<1x32xf32>
    %20 = vector.broadcast %19 : vector<1x32xf32> to vector<8x32xf32>
    %21 = arith.addf %18, %20 : vector<8x32xf32>
    %22 = arith.truncf %3 : vector<64x32xf32> to vector<64x32xbf16>
    %c0_19 = arith.constant 0 : index
    %c0_20 = arith.constant 0 : index
    %23 = vector.load %arg11[%c0_19, %c0_20] : memref<32x32xbf16, #tpu.memory_space<vmem>>, vector<32x32xbf16>
    %cst_21 = arith.constant dense<0.000000e+00> : vector<64x32xf32>
    %24 = tpu.matmul %22, %23, %cst_21 {dimension_numbers = #tpu.dot_dimension_numbers<[1], [0], [0], [1], [0, 0, 1, 1], [], []>} : vector<64x32xbf16>, vector<32x32xbf16>, vector<64x32xf32> -> vector<64x32xf32>
    %c0_22 = arith.constant 0 : index
    %c0_23 = arith.constant 0 : index
    %25 = vector.load %arg12[%c0_22, %c0_23] : memref<1x32xf32, #tpu.memory_space<vmem>>, vector<1x32xf32>
    %26 = vector.broadcast %25 : vector<1x32xf32> to vector<64x32xf32>
    %27 = arith.addf %24, %26 : vector<64x32xf32>
    %cst_24 = arith.constant 0.000000e+00 : f32
    %28 = vector.broadcast %cst_24 : f32 to vector<64x32xf32>
    %29 = arith.maximumf %27, %28 : vector<64x32xf32>
    %30 = arith.truncf %29 : vector<64x32xf32> to vector<64x32xbf16>
    %c0_25 = arith.constant 0 : index
    %c0_26 = arith.constant 0 : index
    %31 = vector.load %arg13[%c0_25, %c0_26] : memref<32x32xbf16, #tpu.memory_space<vmem>>, vector<32x32xbf16>
    %cst_27 = arith.constant dense<0.000000e+00> : vector<64x32xf32>
    %32 = tpu.matmul %30, %31, %cst_27 {dimension_numbers = #tpu.dot_dimension_numbers<[1], [0], [0], [1], [0, 0, 1, 1], [], []>} : vector<64x32xbf16>, vector<32x32xbf16>, vector<64x32xf32> -> vector<64x32xf32>
    %c0_28 = arith.constant 0 : index
    %c0_29 = arith.constant 0 : index
    %33 = vector.load %arg14[%c0_28, %c0_29] : memref<1x32xf32, #tpu.memory_space<vmem>>, vector<1x32xf32>
    %34 = vector.broadcast %33 : vector<1x32xf32> to vector<64x32xf32>
    %35 = arith.addf %32, %34 : vector<64x32xf32>
    %cst_30 = arith.constant 0.000000e+00 : f32
    %36 = vector.broadcast %cst_30 : f32 to vector<64x32xf32>
    %37 = arith.maximumf %35, %36 : vector<64x32xf32>
    %38 = arith.truncf %37 : vector<64x32xf32> to vector<64x32xbf16>
    %c0_31 = arith.constant 0 : index
    %c0_32 = arith.constant 0 : index
    %39 = vector.load %arg15[%c0_31, %c0_32] : memref<32x4xbf16, #tpu.memory_space<vmem>>, vector<32x4xbf16>
    %cst_33 = arith.constant dense<0.000000e+00> : vector<64x4xf32>
    %40 = tpu.matmul %38, %39, %cst_33 {dimension_numbers = #tpu.dot_dimension_numbers<[1], [0], [0], [1], [0, 0, 1, 1], [], []>} : vector<64x32xbf16>, vector<32x4xbf16>, vector<64x4xf32> -> vector<64x4xf32>
    %c0_34 = arith.constant 0 : index
    %c0_35 = arith.constant 0 : index
    %41 = vector.load %arg16[%c0_34, %c0_35] : memref<1x4xf32, #tpu.memory_space<vmem>>, vector<1x4xf32>
    %42 = vector.broadcast %41 : vector<1x4xf32> to vector<64x4xf32>
    %43 = arith.addf %40, %42 : vector<64x4xf32>
    %44 = vector.extract_strided_slice %9 {offsets = [0, 0], sizes = [8, 8], strides = [1, 1]} : vector<8x32xf32> to vector<8x8xf32>
    %45 = vector.extract_strided_slice %9 {offsets = [0, 8], sizes = [8, 8], strides = [1, 1]} : vector<8x32xf32> to vector<8x8xf32>
    %46 = vector.extract_strided_slice %9 {offsets = [0, 16], sizes = [8, 8], strides = [1, 1]} : vector<8x32xf32> to vector<8x8xf32>
    %47 = vector.extract_strided_slice %9 {offsets = [0, 24], sizes = [8, 8], strides = [1, 1]} : vector<8x32xf32> to vector<8x8xf32>
    %48 = vector.shape_cast %44 : vector<8x8xf32> to vector<1x8x8xf32>
    %49 = vector.shape_cast %45 : vector<8x8xf32> to vector<1x8x8xf32>
    %50 = vector.shape_cast %46 : vector<8x8xf32> to vector<1x8x8xf32>
    %51 = vector.shape_cast %47 : vector<8x8xf32> to vector<1x8x8xf32>
    %52 = tpu.concatenate %48, %49, %50, %51 in 0 : vector<1x8x8xf32>, vector<1x8x8xf32>, vector<1x8x8xf32>, vector<1x8x8xf32> -> vector<4x8x8xf32>
    %53 = arith.truncf %52 : vector<4x8x8xf32> to vector<4x8x8xbf16>
    %54 = vector.extract_strided_slice %15 {offsets = [0, 0], sizes = [8, 8], strides = [1, 1]} : vector<8x32xf32> to vector<8x8xf32>
    %55 = vector.extract_strided_slice %15 {offsets = [0, 8], sizes = [8, 8], strides = [1, 1]} : vector<8x32xf32> to vector<8x8xf32>
    %56 = vector.extract_strided_slice %15 {offsets = [0, 16], sizes = [8, 8], strides = [1, 1]} : vector<8x32xf32> to vector<8x8xf32>
    %57 = vector.extract_strided_slice %15 {offsets = [0, 24], sizes = [8, 8], strides = [1, 1]} : vector<8x32xf32> to vector<8x8xf32>
    %58 = vector.shape_cast %54 : vector<8x8xf32> to vector<1x8x8xf32>
    %59 = vector.shape_cast %55 : vector<8x8xf32> to vector<1x8x8xf32>
    %60 = vector.shape_cast %56 : vector<8x8xf32> to vector<1x8x8xf32>
    %61 = vector.shape_cast %57 : vector<8x8xf32> to vector<1x8x8xf32>
    %62 = tpu.concatenate %58, %59, %60, %61 in 0 : vector<1x8x8xf32>, vector<1x8x8xf32>, vector<1x8x8xf32>, vector<1x8x8xf32> -> vector<4x8x8xf32>
    %63 = arith.truncf %62 : vector<4x8x8xf32> to vector<4x8x8xbf16>
    %64 = vector.extract_strided_slice %21 {offsets = [0, 0], sizes = [8, 8], strides = [1, 1]} : vector<8x32xf32> to vector<8x8xf32>
    %65 = vector.extract_strided_slice %21 {offsets = [0, 8], sizes = [8, 8], strides = [1, 1]} : vector<8x32xf32> to vector<8x8xf32>
    %66 = vector.extract_strided_slice %21 {offsets = [0, 16], sizes = [8, 8], strides = [1, 1]} : vector<8x32xf32> to vector<8x8xf32>
    %67 = vector.extract_strided_slice %21 {offsets = [0, 24], sizes = [8, 8], strides = [1, 1]} : vector<8x32xf32> to vector<8x8xf32>
    %68 = vector.shape_cast %64 : vector<8x8xf32> to vector<1x8x8xf32>
    %69 = vector.shape_cast %65 : vector<8x8xf32> to vector<1x8x8xf32>
    %70 = vector.shape_cast %66 : vector<8x8xf32> to vector<1x8x8xf32>
    %71 = vector.shape_cast %67 : vector<8x8xf32> to vector<1x8x8xf32>
    %72 = tpu.concatenate %68, %69, %70, %71 in 0 : vector<1x8x8xf32>, vector<1x8x8xf32>, vector<1x8x8xf32>, vector<1x8x8xf32> -> vector<4x8x8xf32>
    %73 = arith.truncf %72 : vector<4x8x8xf32> to vector<4x8x8xbf16>
    %74 = vector.shape_cast %43 : vector<64x4xf32> to vector<8x8x4xf32>
    %75 = vector.extract_strided_slice %74 {offsets = [0, 0, 0], sizes = [8, 8, 1], strides = [1, 1, 1]} : vector<8x8x4xf32> to vector<8x8x1xf32>
    %76 = vector.shape_cast %75 : vector<8x8x1xf32> to vector<8x8xf32>
    %77 = vector.extract_strided_slice %74 {offsets = [0, 0, 1], sizes = [8, 8, 1], strides = [1, 1, 1]} : vector<8x8x4xf32> to vector<8x8x1xf32>
    %78 = vector.shape_cast %77 : vector<8x8x1xf32> to vector<8x8xf32>
    %79 = vector.extract_strided_slice %74 {offsets = [0, 0, 2], sizes = [8, 8, 1], strides = [1, 1, 1]} : vector<8x8x4xf32> to vector<8x8x1xf32>
    %80 = vector.shape_cast %79 : vector<8x8x1xf32> to vector<8x8xf32>
    %81 = vector.extract_strided_slice %74 {offsets = [0, 0, 3], sizes = [8, 8, 1], strides = [1, 1, 1]} : vector<8x8x4xf32> to vector<8x8x1xf32>
    %82 = vector.shape_cast %81 : vector<8x8x1xf32> to vector<8x8xf32>
    %83 = vector.shape_cast %76 : vector<8x8xf32> to vector<1x8x8xf32>
    %84 = vector.shape_cast %78 : vector<8x8xf32> to vector<1x8x8xf32>
    %85 = vector.shape_cast %80 : vector<8x8xf32> to vector<1x8x8xf32>
    %86 = vector.shape_cast %82 : vector<8x8xf32> to vector<1x8x8xf32>
    %87 = tpu.concatenate %83, %84, %85, %86 in 0 : vector<1x8x8xf32>, vector<1x8x8xf32>, vector<1x8x8xf32>, vector<1x8x8xf32> -> vector<4x8x8xf32>
    %c0_36 = arith.constant 0 : index
    %88 = memref.load %arg25[%c0_36] : memref<1xf32, #tpu.memory_space<smem>>
    %c0_37 = arith.constant 0 : index
    %89 = memref.load %arg26[%c0_37] : memref<1xf32, #tpu.memory_space<smem>>
    %cst_38 = arith.constant 0.353553385 : f32
    %90 = arith.mulf %88, %cst_38 : f32
    "tpu.trace_start"() <{level = 10 : i32, message = "gqd,gkd->gqk"}> : () -> ()
    %cst_39 = arith.constant dense<0.000000e+00> : vector<4x8x8xf32>
    %91 = tpu.matmul %53, %63, %cst_39 {dimension_numbers = #tpu.dot_dimension_numbers<[2], [2], [1], [1], [0, 0, 0, 1, 1, 1], [0], [0]>} : vector<4x8x8xbf16>, vector<4x8x8xbf16>, vector<4x8x8xf32> -> vector<4x8x8xf32>
    "tpu.trace_stop"() : () -> ()
    %92 = vector.broadcast %90 : f32 to vector<4x8x8xf32>
    %93 = arith.mulf %92, %91 : vector<4x8x8xf32>
    %94 = vector.broadcast %89 : f32 to vector<4x8x8xf32>
    %95 = arith.mulf %94, %87 : vector<4x8x8xf32>
    %96 = arith.addf %93, %95 : vector<4x8x8xf32>
    %cst_40 = arith.constant dense<0xFF800000> : vector<4x8xf32>
    %97 = vector.multi_reduction <maximumf>, %96, %cst_40 [2] : vector<4x8x8xf32> to vector<4x8xf32>
    %98 = vector.shape_cast %97 : vector<4x8xf32> to vector<4x8x1xf32>
    %99 = vector.broadcast %98 : vector<4x8x1xf32> to vector<4x8x8xf32>
    %100 = arith.subf %96, %99 : vector<4x8x8xf32>
    %101 = math.exp %100 : vector<4x8x8xf32>
    %cst_41 = arith.constant dense<0.000000e+00> : vector<4x8xf32>
    %102 = vector.multi_reduction <add>, %101, %cst_41 [2] : vector<4x8x8xf32> to vector<4x8xf32>
    %103 = vector.shape_cast %102 : vector<4x8xf32> to vector<4x8x1xf32>
    %104 = tpu.reciprocal %103 {approx = true} : vector<4x8x1xf32> -> vector<4x8x1xf32>
    %105 = vector.broadcast %104 : vector<4x8x1xf32> to vector<4x8x8xf32>
    %106 = arith.mulf %101, %105 : vector<4x8x8xf32>
    %107 = arith.truncf %106 : vector<4x8x8xf32> to vector<4x8x8xbf16>
    "tpu.trace_start"() <{level = 10 : i32, message = "gqk,gkd->gqd"}> : () -> ()
    %cst_42 = arith.constant dense<0.000000e+00> : vector<4x8x8xf32>
    %108 = tpu.matmul %107, %73, %cst_42 {dimension_numbers = #tpu.dot_dimension_numbers<[2], [1], [1], [2], [0, 0, 0, 1, 1, 2], [0], [0]>} : vector<4x8x8xbf16>, vector<4x8x8xbf16>, vector<4x8x8xf32> -> vector<4x8x8xf32>
    "tpu.trace_stop"() : () -> ()
    %109 = vector.extract_strided_slice %108 {offsets = [0, 0, 0], sizes = [1, 8, 8], strides = [1, 1, 1]} : vector<4x8x8xf32> to vector<1x8x8xf32>
    %110 = vector.shape_cast %109 : vector<1x8x8xf32> to vector<8x8xf32>
    %111 = vector.extract_strided_slice %108 {offsets = [1, 0, 0], sizes = [1, 8, 8], strides = [1, 1, 1]} : vector<4x8x8xf32> to vector<1x8x8xf32>
    %112 = vector.shape_cast %111 : vector<1x8x8xf32> to vector<8x8xf32>
    %113 = vector.extract_strided_slice %108 {offsets = [2, 0, 0], sizes = [1, 8, 8], strides = [1, 1, 1]} : vector<4x8x8xf32> to vector<1x8x8xf32>
    %114 = vector.shape_cast %113 : vector<1x8x8xf32> to vector<8x8xf32>
    %115 = vector.extract_strided_slice %108 {offsets = [3, 0, 0], sizes = [1, 8, 8], strides = [1, 1, 1]} : vector<4x8x8xf32> to vector<1x8x8xf32>
    %116 = vector.shape_cast %115 : vector<1x8x8xf32> to vector<8x8xf32>
    %117 = tpu.concatenate %110, %112, %114, %116 in 1 : vector<8x8xf32>, vector<8x8xf32>, vector<8x8xf32>, vector<8x8xf32> -> vector<8x32xf32>
    %118 = arith.truncf %117 : vector<8x32xf32> to vector<8x32xbf16>
    %c0_43 = arith.constant 0 : index
    %c0_44 = arith.constant 0 : index
    %119 = vector.load %arg9[%c0_43, %c0_44] : memref<32x32xbf16, #tpu.memory_space<vmem>>, vector<32x32xbf16>
    %cst_45 = arith.constant dense<0.000000e+00> : vector<8x32xf32>
    %120 = tpu.matmul %118, %119, %cst_45 {dimension_numbers = #tpu.dot_dimension_numbers<[1], [0], [0], [1], [0, 0, 1, 1], [], []>} : vector<8x32xbf16>, vector<32x32xbf16>, vector<8x32xf32> -> vector<8x32xf32>
    %c0_46 = arith.constant 0 : index
    %c0_47 = arith.constant 0 : index
    %121 = vector.load %arg10[%c0_46, %c0_47] : memref<1x32xf32, #tpu.memory_space<vmem>>, vector<1x32xf32>
    %122 = vector.broadcast %121 : vector<1x32xf32> to vector<8x32xf32>
    %123 = arith.addf %120, %122 : vector<8x32xf32>
    %124 = arith.addf %123, %1 : vector<8x32xf32>
    %cst_48 = arith.constant dense<0.000000e+00> : vector<8xf32>
    %125 = vector.multi_reduction <add>, %124, %cst_48 [1] : vector<8x32xf32> to vector<8xf32>
    %126 = vector.shape_cast %125 : vector<8xf32> to vector<8x1xf32>
    %cst_49 = arith.constant 3.200000e+01 : f32
    %127 = vector.broadcast %cst_49 : f32 to vector<8x1xf32>
    %128 = arith.divf %126, %127 : vector<8x1xf32>
    %129 = vector.broadcast %128 : vector<8x1xf32> to vector<8x32xf32>
    %130 = arith.subf %124, %129 : vector<8x32xf32>
    %131 = arith.mulf %130, %130 : vector<8x32xf32>
    %cst_50 = arith.constant dense<0.000000e+00> : vector<8xf32>
    %132 = vector.multi_reduction <add>, %131, %cst_50 [1] : vector<8x32xf32> to vector<8xf32>
    %133 = vector.shape_cast %132 : vector<8xf32> to vector<8x1xf32>
    %cst_51 = arith.constant 3.200000e+01 : f32
    %134 = vector.broadcast %cst_51 : f32 to vector<8x1xf32>
    %135 = arith.divf %133, %134 : vector<8x1xf32>
    %136 = vector.broadcast %128 : vector<8x1xf32> to vector<8x32xf32>
    %137 = arith.subf %124, %136 : vector<8x32xf32>
    %cst_52 = arith.constant 9.99999974E-6 : f32
    %138 = vector.broadcast %cst_52 : f32 to vector<8x1xf32>
    %139 = arith.addf %135, %138 : vector<8x1xf32>
    %140 = math.rsqrt %139 : vector<8x1xf32>
    %141 = vector.broadcast %140 : vector<8x1xf32> to vector<8x32xf32>
    %142 = arith.mulf %137, %141 : vector<8x32xf32>
    %c0_53 = arith.constant 0 : index
    %c0_54 = arith.constant 0 : index
    %143 = vector.load %arg17[%c0_53, %c0_54] : memref<1x32xf32, #tpu.memory_space<vmem>>, vector<1x32xf32>
    %144 = vector.broadcast %143 : vector<1x32xf32> to vector<8x32xf32>
    %145 = arith.mulf %142, %144 : vector<8x32xf32>
    %c0_55 = arith.constant 0 : index
    %c0_56 = arith.constant 0 : index
    %146 = vector.load %arg18[%c0_55, %c0_56] : memref<1x32xf32, #tpu.memory_space<vmem>>, vector<1x32xf32>
    %147 = vector.broadcast %146 : vector<1x32xf32> to vector<8x32xf32>
    %148 = arith.addf %145, %147 : vector<8x32xf32>
    %149 = arith.truncf %148 : vector<8x32xf32> to vector<8x32xbf16>
    %c0_57 = arith.constant 0 : index
    %c0_58 = arith.constant 0 : index
    %150 = vector.load %arg19[%c0_57, %c0_58] : memref<32x64xbf16, #tpu.memory_space<vmem>>, vector<32x64xbf16>
    %cst_59 = arith.constant dense<0.000000e+00> : vector<8x64xf32>
    %151 = tpu.matmul %149, %150, %cst_59 {dimension_numbers = #tpu.dot_dimension_numbers<[1], [0], [0], [1], [0, 0, 1, 1], [], []>} : vector<8x32xbf16>, vector<32x64xbf16>, vector<8x64xf32> -> vector<8x64xf32>
    %c0_60 = arith.constant 0 : index
    %c0_61 = arith.constant 0 : index
    %152 = vector.load %arg20[%c0_60, %c0_61] : memref<1x64xf32, #tpu.memory_space<vmem>>, vector<1x64xf32>
    %153 = vector.broadcast %152 : vector<1x64xf32> to vector<8x64xf32>
    %154 = arith.addf %151, %153 : vector<8x64xf32>
    %cst_62 = arith.constant 5.000000e-01 : f32
    %155 = vector.broadcast %cst_62 : f32 to vector<8x64xf32>
    %156 = arith.mulf %155, %154 : vector<8x64xf32>
    %cst_63 = arith.constant 4.471500e-02 : f32
    %157 = vector.broadcast %cst_63 : f32 to vector<8x64xf32>
    %158 = arith.mulf %157, %154 : vector<8x64xf32>
    %159 = arith.mulf %158, %154 : vector<8x64xf32>
    %160 = arith.mulf %159, %154 : vector<8x64xf32>
    %161 = arith.addf %154, %160 : vector<8x64xf32>
    %cst_64 = arith.constant 0.797884583 : f32
    %162 = vector.broadcast %cst_64 : f32 to vector<8x64xf32>
    %163 = arith.mulf %162, %161 : vector<8x64xf32>
    %164 = math.tanh %163 : vector<8x64xf32>
    %cst_65 = arith.constant 1.000000e+00 : f32
    %165 = vector.broadcast %cst_65 : f32 to vector<8x64xf32>
    %166 = arith.addf %165, %164 : vector<8x64xf32>
    %167 = arith.mulf %156, %166 : vector<8x64xf32>
    %168 = arith.truncf %167 : vector<8x64xf32> to vector<8x64xbf16>
    %c0_66 = arith.constant 0 : index
    %c0_67 = arith.constant 0 : index
    %169 = vector.load %arg21[%c0_66, %c0_67] : memref<64x32xbf16, #tpu.memory_space<vmem>>, vector<64x32xbf16>
    %cst_68 = arith.constant dense<0.000000e+00> : vector<8x32xf32>
    %170 = tpu.matmul %168, %169, %cst_68 {dimension_numbers = #tpu.dot_dimension_numbers<[1], [0], [0], [1], [0, 0, 1, 1], [], []>} : vector<8x64xbf16>, vector<64x32xbf16>, vector<8x32xf32> -> vector<8x32xf32>
    %c0_69 = arith.constant 0 : index
    %c0_70 = arith.constant 0 : index
    %171 = vector.load %arg22[%c0_69, %c0_70] : memref<1x32xf32, #tpu.memory_space<vmem>>, vector<1x32xf32>
    %172 = vector.broadcast %171 : vector<1x32xf32> to vector<8x32xf32>
    %173 = arith.addf %170, %172 : vector<8x32xf32>
    %174 = arith.addf %173, %148 : vector<8x32xf32>
    %cst_71 = arith.constant dense<0.000000e+00> : vector<8xf32>
    %175 = vector.multi_reduction <add>, %174, %cst_71 [1] : vector<8x32xf32> to vector<8xf32>
    %176 = vector.shape_cast %175 : vector<8xf32> to vector<8x1xf32>
    %cst_72 = arith.constant 3.200000e+01 : f32
    %177 = vector.broadcast %cst_72 : f32 to vector<8x1xf32>
    %178 = arith.divf %176, %177 : vector<8x1xf32>
    %179 = vector.broadcast %178 : vector<8x1xf32> to vector<8x32xf32>
    %180 = arith.subf %174, %179 : vector<8x32xf32>
    %181 = arith.mulf %180, %180 : vector<8x32xf32>
    %cst_73 = arith.constant dense<0.000000e+00> : vector<8xf32>
    %182 = vector.multi_reduction <add>, %181, %cst_73 [1] : vector<8x32xf32> to vector<8xf32>
    %183 = vector.shape_cast %182 : vector<8xf32> to vector<8x1xf32>
    %cst_74 = arith.constant 3.200000e+01 : f32
    %184 = vector.broadcast %cst_74 : f32 to vector<8x1xf32>
    %185 = arith.divf %183, %184 : vector<8x1xf32>
    %186 = vector.broadcast %178 : vector<8x1xf32> to vector<8x32xf32>
    %187 = arith.subf %174, %186 : vector<8x32xf32>
    %cst_75 = arith.constant 9.99999974E-6 : f32
    %188 = vector.broadcast %cst_75 : f32 to vector<8x1xf32>
    %189 = arith.addf %185, %188 : vector<8x1xf32>
    %190 = math.rsqrt %189 : vector<8x1xf32>
    %191 = vector.broadcast %190 : vector<8x1xf32> to vector<8x32xf32>
    %192 = arith.mulf %187, %191 : vector<8x32xf32>
    %c0_76 = arith.constant 0 : index
    %c0_77 = arith.constant 0 : index
    %193 = vector.load %arg23[%c0_76, %c0_77] : memref<1x32xf32, #tpu.memory_space<vmem>>, vector<1x32xf32>
    %194 = vector.broadcast %193 : vector<1x32xf32> to vector<8x32xf32>
    %195 = arith.mulf %192, %194 : vector<8x32xf32>
    %c0_78 = arith.constant 0 : index
    %c0_79 = arith.constant 0 : index
    %196 = vector.load %arg24[%c0_78, %c0_79] : memref<1x32xf32, #tpu.memory_space<vmem>>, vector<1x32xf32>
    %197 = vector.broadcast %196 : vector<1x32xf32> to vector<8x32xf32>
    %198 = arith.addf %195, %197 : vector<8x32xf32>
    %199 = vector.extract_strided_slice %198 {offsets = [0, 0], sizes = [1, 32], strides = [1, 1]} : vector<8x32xf32> to vector<1x32xf32>
    %200 = vector.extract_strided_slice %198 {offsets = [1, 0], sizes = [1, 32], strides = [1, 1]} : vector<8x32xf32> to vector<1x32xf32>
    %201 = vector.extract_strided_slice %198 {offsets = [2, 0], sizes = [1, 32], strides = [1, 1]} : vector<8x32xf32> to vector<1x32xf32>
    %202 = vector.extract_strided_slice %198 {offsets = [3, 0], sizes = [1, 32], strides = [1, 1]} : vector<8x32xf32> to vector<1x32xf32>
    %203 = tpu.concatenate %199, %200, %201, %202 in 1 : vector<1x32xf32>, vector<1x32xf32>, vector<1x32xf32>, vector<1x32xf32> -> vector<1x128xf32>
    %204 = vector.extract_strided_slice %198 {offsets = [4, 0], sizes = [1, 32], strides = [1, 1]} : vector<8x32xf32> to vector<1x32xf32>
    %205 = vector.extract_strided_slice %198 {offsets = [5, 0], sizes = [1, 32], strides = [1, 1]} : vector<8x32xf32> to vector<1x32xf32>
    %206 = vector.extract_strided_slice %198 {offsets = [6, 0], sizes = [1, 32], strides = [1, 1]} : vector<8x32xf32> to vector<1x32xf32>
    %207 = vector.extract_strided_slice %198 {offsets = [7, 0], sizes = [1, 32], strides = [1, 1]} : vector<8x32xf32> to vector<1x32xf32>
    %208 = tpu.concatenate %204, %205, %206, %207 in 1 : vector<1x32xf32>, vector<1x32xf32>, vector<1x32xf32>, vector<1x32xf32> -> vector<1x128xf32>
    %209 = tpu.concatenate %203, %208 in 0 : vector<1x128xf32>, vector<1x128xf32> -> vector<2x128xf32>
    %c0_80 = arith.constant 0 : index
    %c0_81 = arith.constant 0 : index
    %c0_82 = arith.constant 0 : index
    %210 = vector.load %arg27[%c0_80, %c0_81, %c0_82] : memref<1x2x128xf32, #tpu.memory_space<vmem>>, vector<1x2x128xf32>
    %211 = vector.shape_cast %210 : vector<1x2x128xf32> to vector<2x128xf32>
    %212 = vector.shape_cast %209 : vector<2x128xf32> to vector<1x2x128xf32>
    tpu.vector_store %arg27[%c0_80, %c0_81, %c0_82], %212 {strides = array<i32>} : memref<1x2x128xf32, #tpu.memory_space<vmem>>, vector<1x2x128xf32>,
    return
  }
  func.func @transform_0(%arg0: i32) -> (i32, i32, i32) {
    %c0_i32 = arith.constant 0 : i32
    %c0_i32_0 = arith.constant 0 : i32
    %c0_i32_1 = arith.constant 0 : i32
    return %arg0, %c0_i32, %c0_i32_0 : i32, i32, i32
  }
  func.func @transform_1(%arg0: i32) -> (i32, i32, i32) {
    %c0_i32 = arith.constant 0 : i32
    %c0_i32_0 = arith.constant 0 : i32
    %c0_i32_1 = arith.constant 0 : i32
    return %arg0, %c0_i32, %c0_i32_0 : i32, i32, i32
  }
  func.func @transform_2(%arg0: i32) -> (i32, i32) {
    %c0_i32 = arith.constant 0 : i32
    %c0_i32_0 = arith.constant 0 : i32
    %c0_i32_1 = arith.constant 0 : i32
    return %c0_i32, %c0_i32_0 : i32, i32
  }
  func.func @transform_3(%arg0: i32) -> (i32, i32) {
    %c0_i32 = arith.constant 0 : i32
    %c0_i32_0 = arith.constant 0 : i32
    %c0_i32_1 = arith.constant 0 : i32
    return %c0_i32, %c0_i32_0 : i32, i32
  }
  func.func @transform_4(%arg0: i32) -> (i32, i32) {
    %c0_i32 = arith.constant 0 : i32
    %c0_i32_0 = arith.constant 0 : i32
    %c0_i32_1 = arith.constant 0 : i32
    return %c0_i32, %c0_i32_0 : i32, i32
  }
  func.func @transform_5(%arg0: i32) -> (i32, i32) {
    %c0_i32 = arith.constant 0 : i32
    %c0_i32_0 = arith.constant 0 : i32
    %c0_i32_1 = arith.constant 0 : i32
    return %c0_i32, %c0_i32_0 : i32, i32
  }
  func.func @transform_6(%arg0: i32) -> (i32, i32) {
    %c0_i32 = arith.constant 0 : i32
    %c0_i32_0 = arith.constant 0 : i32
    %c0_i32_1 = arith.constant 0 : i32
    return %c0_i32, %c0_i32_0 : i32, i32
  }
  func.func @transform_7(%arg0: i32) -> (i32, i32) {
    %c0_i32 = arith.constant 0 : i32
    %c0_i32_0 = arith.constant 0 : i32
    %c0_i32_1 = arith.constant 0 : i32
    return %c0_i32, %c0_i32_0 : i32, i32
  }
  func.func @transform_8(%arg0: i32) -> (i32, i32) {
    %c0_i32 = arith.constant 0 : i32
    %c0_i32_0 = arith.constant 0 : i32
    %c0_i32_1 = arith.constant 0 : i32
    return %c0_i32, %c0_i32_0 : i32, i32
  }
  func.func @transform_9(%arg0: i32) -> (i32, i32) {
    %c0_i32 = arith.constant 0 : i32
    %c0_i32_0 = arith.constant 0 : i32
    %c0_i32_1 = arith.constant 0 : i32
    return %c0_i32, %c0_i32_0 : i32, i32
  }
  func.func @transform_10(%arg0: i32) -> (i32, i32) {
    %c0_i32 = arith.constant 0 : i32
    %c0_i32_0 = arith.constant 0 : i32
    %c0_i32_1 = arith.constant 0 : i32
    return %c0_i32, %c0_i32_0 : i32, i32
  }
  func.func @transform_11(%arg0: i32) -> (i32, i32) {
    %c0_i32 = arith.constant 0 : i32
    %c0_i32_0 = arith.constant 0 : i32
    %c0_i32_1 = arith.constant 0 : i32
    return %c0_i32, %c0_i32_0 : i32, i32
  }
  func.func @transform_12(%arg0: i32) -> (i32, i32) {
    %c0_i32 = arith.constant 0 : i32
    %c0_i32_0 = arith.constant 0 : i32
    %c0_i32_1 = arith.constant 0 : i32
    return %c0_i32, %c0_i32_0 : i32, i32
  }
  func.func @transform_13(%arg0: i32) -> (i32, i32) {
    %c0_i32 = arith.constant 0 : i32
    %c0_i32_0 = arith.constant 0 : i32
    %c0_i32_1 = arith.constant 0 : i32
    return %c0_i32, %c0_i32_0 : i32, i32
  }
  func.func @transform_14(%arg0: i32) -> (i32, i32) {
    %c0_i32 = arith.constant 0 : i32
    %c0_i32_0 = arith.constant 0 : i32
    %c0_i32_1 = arith.constant 0 : i32
    return %c0_i32, %c0_i32_0 : i32, i32
  }
  func.func @transform_15(%arg0: i32) -> (i32, i32) {
    %c0_i32 = arith.constant 0 : i32
    %c0_i32_0 = arith.constant 0 : i32
    %c0_i32_1 = arith.constant 0 : i32
    return %c0_i32, %c0_i32_0 : i32, i32
  }
  func.func @transform_16(%arg0: i32) -> (i32, i32) {
    %c0_i32 = arith.constant 0 : i32
    %c0_i32_0 = arith.constant 0 : i32
    %c0_i32_1 = arith.constant 0 : i32
    return %c0_i32, %c0_i32_0 : i32, i32
  }
  func.func @transform_17(%arg0: i32) -> (i32, i32) {
    %c0_i32 = arith.constant 0 : i32
    %c0_i32_0 = arith.constant 0 : i32
    %c0_i32_1 = arith.constant 0 : i32
    return %c0_i32, %c0_i32_0 : i32, i32
  }
  func.func @transform_18(%arg0: i32) -> (i32, i32) {
    %c0_i32 = arith.constant 0 : i32
    %c0_i32_0 = arith.constant 0 : i32
    %c0_i32_1 = arith.constant 0 : i32
    return %c0_i32, %c0_i32_0 : i32, i32
  }
  func.func @transform_19(%arg0: i32) -> (i32, i32) {
    %c0_i32 = arith.constant 0 : i32
    %c0_i32_0 = arith.constant 0 : i32
    %c0_i32_1 = arith.constant 0 : i32
    return %c0_i32, %c0_i32_0 : i32, i32
  }
  func.func @transform_20(%arg0: i32) -> (i32, i32) {
    %c0_i32 = arith.constant 0 : i32
    %c0_i32_0 = arith.constant 0 : i32
    %c0_i32_1 = arith.constant 0 : i32
    return %c0_i32, %c0_i32_0 : i32, i32
  }
  func.func @transform_21(%arg0: i32) -> (i32, i32) {
    %c0_i32 = arith.constant 0 : i32
    %c0_i32_0 = arith.constant 0 : i32
    %c0_i32_1 = arith.constant 0 : i32
    return %c0_i32, %c0_i32_0 : i32, i32
  }
  func.func @transform_22(%arg0: i32) -> (i32, i32) {
    %c0_i32 = arith.constant 0 : i32
    %c0_i32_0 = arith.constant 0 : i32
    %c0_i32_1 = arith.constant 0 : i32
    return %c0_i32, %c0_i32_0 : i32, i32
  }
  func.func @transform_23(%arg0: i32) -> (i32, i32) {
    %c0_i32 = arith.constant 0 : i32
    %c0_i32_0 = arith.constant 0 : i32
    %c0_i32_1 = arith.constant 0 : i32
    return %c0_i32, %c0_i32_0 : i32, i32
  }
  func.func @transform_24(%arg0: i32) -> i32 {
    %c0_i32 = arith.constant 0 : i32
    %c0_i32_0 = arith.constant 0 : i32
    return %c0_i32 : i32
  }
  func.func @transform_25(%arg0: i32) -> i32 {
    %c0_i32 = arith.constant 0 : i32
    %c0_i32_0 = arith.constant 0 : i32
    return %c0_i32 : i32
  }
  func.func @transform_26(%arg0: i32) -> (i32, i32, i32) {
    %c0_i32 = arith.constant 0 : i32
    %c0_i32_0 = arith.constant 0 : i32
    %c0_i32_1 = arith.constant 0 : i32
    return %arg0, %c0_i32, %c0_i32_0 : i32, i32, i32
  }
}

</mosaic_0001>

<llo_original>
// kernel: tpu_custom_call.1
$region0: #{tpu_custom_call.1}
  #allocation0 [shape = 'u32[]', space=smem, size = 0x4, offset = 0x4, fixed_abs, tag = 'smem constant byte address 0x4 - core index']
  #allocation1 [shape = 'u32[144,128]{1,0:T(1,128)}', space=vmem, size = 0x12000, scoped, tag = 'internal scratch']
  #allocation2 [shape = 'f32[1]{0:T(128)S(6)}', space=smem, size = 0x200, scoped, tag = 'scoped memory for tpu_custom_call.1']
  #allocation3 [shape = 'f32[1]{0:T(128)S(6)}', space=smem, size = 0x200, scoped, tag = 'scoped memory for tpu_custom_call.1']
  %s0 = inlined_call_operand.vmem [shape: f32[2,8,32], index: 0, kind: input, shape index: {}]
  %s1 = inlined_call_operand.vmem [shape: f32[2,64,32], index: 1, kind: input, shape index: {}]
  %s2 = inlined_call_operand.vmem [shape: bf16[32,32], index: 2, kind: input, shape index: {}]
  %s3 = inlined_call_operand.vmem [shape: f32[1,32], index: 3, kind: input, shape index: {}]
  %s4 = inlined_call_operand.vmem [shape: bf16[32,32], index: 4, kind: input, shape index: {}]
  %s5 = inlined_call_operand.vmem [shape: f32[1,32], index: 5, kind: input, shape index: {}]
  %s6 = inlined_call_operand.vmem [shape: bf16[32,32], index: 6, kind: input, shape index: {}]
  %s7 = inlined_call_operand.vmem [shape: f32[1,32], index: 7, kind: input, shape index: {}]
  %s8 = inlined_call_operand.vmem [shape: bf16[32,32], index: 8, kind: input, shape index: {}]
  %s9 = inlined_call_operand.vmem [shape: f32[1,32], index: 9, kind: input, shape index: {}]
  %s10 = inlined_call_operand.vmem [shape: bf16[32,32], index: 10, kind: input, shape index: {}]
  %s11 = inlined_call_operand.vmem [shape: f32[1,32], index: 11, kind: input, shape index: {}]
  %s12 = inlined_call_operand.vmem [shape: bf16[32,32], index: 12, kind: input, shape index: {}]
  %s13 = inlined_call_operand.vmem [shape: f32[1,32], index: 13, kind: input, shape index: {}]
  %s14 = inlined_call_operand.vmem [shape: bf16[32,4], index: 14, kind: input, shape index: {}]
  %s15 = inlined_call_operand.vmem [shape: f32[1,4], index: 15, kind: input, shape index: {}]
  %s16 = inlined_call_operand.vmem [shape: f32[1,32], index: 16, kind: input, shape index: {}]
  %s17 = inlined_call_operand.vmem [shape: f32[1,32], index: 17, kind: input, shape index: {}]
  %s18 = inlined_call_operand.vmem [shape: bf16[32,64], index: 18, kind: input, shape index: {}]
  %s19 = inlined_call_operand.vmem [shape: f32[1,64], index: 19, kind: input, shape index: {}]
  %s20 = inlined_call_operand.vmem [shape: bf16[64,32], index: 20, kind: input, shape index: {}]
  %s21 = inlined_call_operand.vmem [shape: f32[1,32], index: 21, kind: input, shape index: {}]
  %s22 = inlined_call_operand.vmem [shape: f32[1,32], index: 22, kind: input, shape index: {}]
  %s23 = inlined_call_operand.vmem [shape: f32[1,32], index: 23, kind: input, shape index: {}]
  %s24 = inlined_call_operand.<no memory space> [shape: f32[1], index: 24, kind: input, shape index: {}]
  %s25 = inlined_call_operand.<no memory space> [shape: f32[1], index: 25, kind: input, shape index: {}]
  %s26 = inlined_call_operand.hbm [shape: f32[2,2,128], index: 26, kind: output, shape index: {}]
  %s27 = sld [smem:[#allocation0]]
  $region137: #{tpu_custom_call.1} parent=0
    _
  %s29 = ssub.s32 1, %s27
  %s30 = scalar_select 0, %s29, %s27
  %31 = sst [smem:[#allocation2]] %s24
  %32 = sst [smem:[#allocation3]] %s25
  $region1: #{tpu_custom_call.1} parent=0
    #allocation4 [shape = 'u8[2048]{0}', space=vmem, size = 0x800, scoped, tag = 'output window, operand 0']
    #allocation5 [shape = 's32[2]{0}', space=sflag, size = 0x8, scoped, tag = 'scoped memory for tpu_custom_call.1']
    %33 = vsyncpa [#allocation5], 0
    %s34 = scalar_lea.sflag [#allocation5], 1
    %35 = vsyncpa %s34, 0
    loop: start=0, step=1, limit=4
    $region2: #{tpu_custom_call.1} parent=1 // loop_pre_header
      _
    $region3: #{tpu_custom_call.1} parent=1 // loop_header
      %s37 = sphi 0, %s41
      %p38 = scmp.ge.s32.totalorder %s37, 4
      %s47 = sphi 0, %s49
      %s50 = sphi 0, %s47
      %s51 = sphi 0, %s50
      %s67 = sphi 0, %s51
      %s73 = sphi 0, %s75
      %s76 = sphi 0, %s73
      %s77 = sphi 0, %s76
      %s93 = sphi 0, %s77
      %s97 = sphi 0, %s97
      %s99 = sphi 0, %s97
      %s100 = sphi 0, %s99
      %s114 = sphi 0, %s100
      %s118 = sphi 0, %s118
      %s120 = sphi 0, %s118
      %s121 = sphi 0, %s120
      %s135 = sphi 0, %s121
      %s139 = sphi 0, %s139
      %s141 = sphi 0, %s139
      %s142 = sphi 0, %s141
      %s156 = sphi 0, %s142
      %s160 = sphi 0, %s160
      %s162 = sphi 0, %s160
      %s163 = sphi 0, %s162
      %s177 = sphi 0, %s163
      %s181 = sphi 0, %s181
      %s183 = sphi 0, %s181
      %s184 = sphi 0, %s183
      %s198 = sphi 0, %s184
      %s202 = sphi 0, %s202
      %s204 = sphi 0, %s202
      %s205 = sphi 0, %s204
      %s219 = sphi 0, %s205
      %s223 = sphi 0, %s223
      %s225 = sphi 0, %s223
      %s226 = sphi 0, %s225
      %s240 = sphi 0, %s226
      %s244 = sphi 0, %s244
      %s246 = sphi 0, %s244
      %s247 = sphi 0, %s246
      %s261 = sphi 0, %s247
      %s265 = sphi 0, %s265
      %s267 = sphi 0, %s265
      %s268 = sphi 0, %s267
      %s282 = sphi 0, %s268
      %s286 = sphi 0, %s286
      %s288 = sphi 0, %s286
      %s289 = sphi 0, %s288
      %s303 = sphi 0, %s289
      %s307 = sphi 0, %s307
      %s309 = sphi 0, %s307
      %s310 = sphi 0, %s309
      %s324 = sphi 0, %s310
      %s328 = sphi 0, %s328
      %s330 = sphi 0, %s328
      %s331 = sphi 0, %s330
      %s345 = sphi 0, %s331
      %s349 = sphi 0, %s349
      %s351 = sphi 0, %s349
      %s352 = sphi 0, %s351
      %s366 = sphi 0, %s352
      %s370 = sphi 0, %s370
      %s372 = sphi 0, %s370
      %s373 = sphi 0, %s372
      %s387 = sphi 0, %s373
      %s391 = sphi 0, %s391
      %s393 = sphi 0, %s391
      %s394 = sphi 0, %s393
      %s408 = sphi 0, %s394
      %s412 = sphi 0, %s412
      %s414 = sphi 0, %s412
      %s415 = sphi 0, %s414
      %s429 = sphi 0, %s415
      %s433 = sphi 0, %s433
      %s435 = sphi 0, %s433
      %s436 = sphi 0, %s435
      %s450 = sphi 0, %s436
      %s454 = sphi 0, %s454
      %s456 = sphi 0, %s454
      %s457 = sphi 0, %s456
      %s471 = sphi 0, %s457
      %s475 = sphi 0, %s475
      %s477 = sphi 0, %s475
      %s478 = sphi 0, %s477
      %s492 = sphi 0, %s478
      %s496 = sphi 0, %s496
      %s498 = sphi 0, %s496
      %s499 = sphi 0, %s498
      %s513 = sphi 0, %s499
      %s517 = sphi 0, %s517
      %s519 = sphi 0, %s517
      %s520 = sphi 0, %s519
      %s534 = sphi 0, %s520
      %s538 = sphi 0, %s538
      %s540 = sphi 0, %s538
      %s541 = sphi 0, %s540
      %s555 = sphi 0, %s541
      %s559 = sphi 0, %s559
      %s561 = sphi 0, %s559
      %s562 = sphi 0, %s561
      %s576 = sphi 0, %s562
      %s580 = sphi 0, %s580
      %s582 = sphi 0, %s580
      %s583 = sphi 0, %s582
      %s597 = sphi 0, %s583
      %s603 = sphi 0, %s605
      %s606 = sphi 0, %s603
      %s607 = sphi 0, %s606
      %s623 = sphi 0, %s607
    $region4: #{tpu_custom_call.1} parent=1 // loop_header_branch
      %40 = sbr.rel (%p38) target = $region8
    $region5: #{tpu_custom_call.1} parent=1 // loop_body
      %s42 = ssub.s32 %s37, 1
      %s43 = ssub.s32 %s37, 2
      %s44 = sadd.s32 %s37, 1
      %s45 = ssub.s32 %s37, %s44
      %p46 = scmp.eq.s32.totalorder %s45, 0
      %s48 = sadd.s32 %s47, 1
      %s49 = scalar_select %p46, %s47, %s48
      %p52 = pneg %p46
      %p53 = scmp.eq.s32.totalorder %s37, 1
      %p54 = por %p52, %p53
      %p55 = scmp.ne.s32.totalorder %s47, %s50
      %p56 = scmp.eq.s32.totalorder %s37, 0
      %p57 = por %p55, %p56
      %p58 = scmp.ne.s32.totalorder %s47, %s50
      %p59 = scmp.eq.s32.totalorder %s42, 1
      %p60 = por %p58, %p59
      %p61 = scmp.ne.s32.totalorder %s50, %s51
      %p62 = scmp.eq.s32.totalorder %s42, 0
      %p63 = por %p61, %p62
      %p64 = scmp.ne.s32.totalorder %s50, %s51
      %p65 = scmp.eq.s32.totalorder %s43, 1
      %p66 = por %p64, %p65
      %p68 = scmp.ne.s32.totalorder %s51, %s67
      %p69 = scmp.eq.s32.totalorder %s43, 0
      %p70 = por %p68, %p69
      %s71 = ssub.s32 %s37, %s44
      %p72 = scmp.eq.s32.totalorder %s71, 0
      %s74 = sadd.s32 %s73, 1
      %s75 = scalar_select %p72, %s73, %s74
      %p78 = pneg %p72
      %p79 = scmp.eq.s32.totalorder %s37, 1
      %p80 = por %p78, %p79
      %p81 = scmp.ne.s32.totalorder %s73, %s76
      %p82 = scmp.eq.s32.totalorder %s37, 0
      %p83 = por %p81, %p82
      %p84 = scmp.ne.s32.totalorder %s73, %s76
      %p85 = scmp.eq.s32.totalorder %s42, 1
      %p86 = por %p84, %p85
      %p87 = scmp.ne.s32.totalorder %s76, %s77
      %p88 = scmp.eq.s32.totalorder %s42, 0
      %p89 = por %p87, %p88
      %p90 = scmp.ne.s32.totalorder %s76, %s77
      %p91 = scmp.eq.s32.totalorder %s43, 1
      %p92 = por %p90, %p91
      %p94 = scmp.ne.s32.totalorder %s77, %s93
      %p95 = scmp.eq.s32.totalorder %s43, 0
      %p96 = por %p94, %p95
      %s98 = sadd.s32 %s97, 1
      %p101 = scmp.eq.s32.totalorder %s37, 1
      %p102 = scmp.ne.s32.totalorder %s97, %s99
      %p103 = scmp.eq.s32.totalorder %s37, 0
      %p104 = por %p102, %p103
      %p105 = scmp.ne.s32.totalorder %s97, %s99
      %p106 = scmp.eq.s32.totalorder %s42, 1
      %p107 = por %p105, %p106
      %p108 = scmp.ne.s32.totalorder %s99, %s100
      %p109 = scmp.eq.s32.totalorder %s42, 0
      %p110 = por %p108, %p109
      %p111 = scmp.ne.s32.totalorder %s99, %s100
      %p112 = scmp.eq.s32.totalorder %s43, 1
      %p113 = por %p111, %p112
      %p115 = scmp.ne.s32.totalorder %s100, %s114
      %p116 = scmp.eq.s32.totalorder %s43, 0
      %p117 = por %p115, %p116
      %s119 = sadd.s32 %s118, 1
      %p122 = scmp.eq.s32.totalorder %s37, 1
      %p123 = scmp.ne.s32.totalorder %s118, %s120
      %p124 = scmp.eq.s32.totalorder %s37, 0
      %p125 = por %p123, %p124
      %p126 = scmp.ne.s32.totalorder %s118, %s120
      %p127 = scmp.eq.s32.totalorder %s42, 1
      %p128 = por %p126, %p127
      %p129 = scmp.ne.s32.totalorder %s120, %s121
      %p130 = scmp.eq.s32.totalorder %s42, 0
      %p131 = por %p129, %p130
      %p132 = scmp.ne.s32.totalorder %s120, %s121
      %p133 = scmp.eq.s32.totalorder %s43, 1
      %p134 = por %p132, %p133
      %p136 = scmp.ne.s32.totalorder %s121, %s135
      %p137 = scmp.eq.s32.totalorder %s43, 0
      %p138 = por %p136, %p137
      %s140 = sadd.s32 %s139, 1
      %p143 = scmp.eq.s32.totalorder %s37, 1
      %p144 = scmp.ne.s32.totalorder %s139, %s141
      %p145 = scmp.eq.s32.totalorder %s37, 0
      %p146 = por %p144, %p145
      %p147 = scmp.ne.s32.totalorder %s139, %s141
      %p148 = scmp.eq.s32.totalorder %s42, 1
      %p149 = por %p147, %p148
      %p150 = scmp.ne.s32.totalorder %s141, %s142
      %p151 = scmp.eq.s32.totalorder %s42, 0
      %p152 = por %p150, %p151
      %p153 = scmp.ne.s32.totalorder %s141, %s142
      %p154 = scmp.eq.s32.totalorder %s43, 1
      %p155 = por %p153, %p154
      %p157 = scmp.ne.s32.totalorder %s142, %s156
      %p158 = scmp.eq.s32.totalorder %s43, 0
      %p159 = por %p157, %p158
      %s161 = sadd.s32 %s160, 1
      %p164 = scmp.eq.s32.totalorder %s37, 1
      %p165 = scmp.ne.s32.totalorder %s160, %s162
      %p166 = scmp.eq.s32.totalorder %s37, 0
      %p167 = por %p165, %p166
      %p168 = scmp.ne.s32.totalorder %s160, %s162
      %p169 = scmp.eq.s32.totalorder %s42, 1
      %p170 = por %p168, %p169
      %p171 = scmp.ne.s32.totalorder %s162, %s163
      %p172 = scmp.eq.s32.totalorder %s42, 0
      %p173 = por %p171, %p172
      %p174 = scmp.ne.s32.totalorder %s162, %s163
      %p175 = scmp.eq.s32.totalorder %s43, 1
      %p176 = por %p174, %p175
      %p178 = scmp.ne.s32.totalorder %s163, %s177
      %p179 = scmp.eq.s32.totalorder %s43, 0
      %p180 = por %p178, %p179
      %s182 = sadd.s32 %s181, 1
      %p185 = scmp.eq.s32.totalorder %s37, 1
      %p186 = scmp.ne.s32.totalorder %s181, %s183
      %p187 = scmp.eq.s32.totalorder %s37, 0
      %p188 = por %p186, %p187
      %p189 = scmp.ne.s32.totalorder %s181, %s183
      %p190 = scmp.eq.s32.totalorder %s42, 1
      %p191 = por %p189, %p190
      %p192 = scmp.ne.s32.totalorder %s183, %s184
      %p193 = scmp.eq.s32.totalorder %s42, 0
      %p194 = por %p192, %p193
      %p195 = scmp.ne.s32.totalorder %s183, %s184
      %p196 = scmp.eq.s32.totalorder %s43, 1
      %p197 = por %p195, %p196
      %p199 = scmp.ne.s32.totalorder %s184, %s198
      %p200 = scmp.eq.s32.totalorder %s43, 0
      %p201 = por %p199, %p200
      %s203 = sadd.s32 %s202, 1
      %p206 = scmp.eq.s32.totalorder %s37, 1
      %p207 = scmp.ne.s32.totalorder %s202, %s204
      %p208 = scmp.eq.s32.totalorder %s37, 0
      %p209 = por %p207, %p208
      %p210 = scmp.ne.s32.totalorder %s202, %s204
      %p211 = scmp.eq.s32.totalorder %s42, 1
      %p212 = por %p210, %p211
      %p213 = scmp.ne.s32.totalorder %s204, %s205
      %p214 = scmp.eq.s32.totalorder %s42, 0
      %p215 = por %p213, %p214
      %p216 = scmp.ne.s32.totalorder %s204, %s205
      %p217 = scmp.eq.s32.totalorder %s43, 1
      %p218 = por %p216, %p217
      %p220 = scmp.ne.s32.totalorder %s205, %s219
      %p221 = scmp.eq.s32.totalorder %s43, 0
      %p222 = por %p220, %p221
      %s224 = sadd.s32 %s223, 1
      %p227 = scmp.eq.s32.totalorder %s37, 1
      %p228 = scmp.ne.s32.totalorder %s223, %s225
      %p229 = scmp.eq.s32.totalorder %s37, 0
      %p230 = por %p228, %p229
      %p231 = scmp.ne.s32.totalorder %s223, %s225
      %p232 = scmp.eq.s32.totalorder %s42, 1
      %p233 = por %p231, %p232
      %p234 = scmp.ne.s32.totalorder %s225, %s226
      %p235 = scmp.eq.s32.totalorder %s42, 0
      %p236 = por %p234, %p235
      %p237 = scmp.ne.s32.totalorder %s225, %s226
      %p238 = scmp.eq.s32.totalorder %s43, 1
      %p239 = por %p237, %p238
      %p241 = scmp.ne.s32.totalorder %s226, %s240
      %p242 = scmp.eq.s32.totalorder %s43, 0
      %p243 = por %p241, %p242
      %s245 = sadd.s32 %s244, 1
      %p248 = scmp.eq.s32.totalorder %s37, 1
      %p249 = scmp.ne.s32.totalorder %s244, %s246
      %p250 = scmp.eq.s32.totalorder %s37, 0
      %p251 = por %p249, %p250
      %p252 = scmp.ne.s32.totalorder %s244, %s246
      %p253 = scmp.eq.s32.totalorder %s42, 1
      %p254 = por %p252, %p253
      %p255 = scmp.ne.s32.totalorder %s246, %s247
      %p256 = scmp.eq.s32.totalorder %s42, 0
      %p257 = por %p255, %p256
      %p258 = scmp.ne.s32.totalorder %s246, %s247
      %p259 = scmp.eq.s32.totalorder %s43, 1
      %p260 = por %p258, %p259
      %p262 = scmp.ne.s32.totalorder %s247, %s261
      %p263 = scmp.eq.s32.totalorder %s43, 0
      %p264 = por %p262, %p263
      %s266 = sadd.s32 %s265, 1
      %p269 = scmp.eq.s32.totalorder %s37, 1
      %p270 = scmp.ne.s32.totalorder %s265, %s267
      %p271 = scmp.eq.s32.totalorder %s37, 0
      %p272 = por %p270, %p271
      %p273 = scmp.ne.s32.totalorder %s265, %s267
      %p274 = scmp.eq.s32.totalorder %s42, 1
      %p275 = por %p273, %p274
      %p276 = scmp.ne.s32.totalorder %s267, %s268
      %p277 = scmp.eq.s32.totalorder %s42, 0
      %p278 = por %p276, %p277
      %p279 = scmp.ne.s32.totalorder %s267, %s268
      %p280 = scmp.eq.s32.totalorder %s43, 1
      %p281 = por %p279, %p280
      %p283 = scmp.ne.s32.totalorder %s268, %s282
      %p284 = scmp.eq.s32.totalorder %s43, 0
      %p285 = por %p283, %p284
      %s287 = sadd.s32 %s286, 1
      %p290 = scmp.eq.s32.totalorder %s37, 1
      %p291 = scmp.ne.s32.totalorder %s286, %s288
      %p292 = scmp.eq.s32.totalorder %s37, 0
      %p293 = por %p291, %p292
      %p294 = scmp.ne.s32.totalorder %s286, %s288
      %p295 = scmp.eq.s32.totalorder %s42, 1
      %p296 = por %p294, %p295
      %p297 = scmp.ne.s32.totalorder %s288, %s289
      %p298 = scmp.eq.s32.totalorder %s42, 0
      %p299 = por %p297, %p298
      %p300 = scmp.ne.s32.totalorder %s288, %s289
      %p301 = scmp.eq.s32.totalorder %s43, 1
      %p302 = por %p300, %p301
      %p304 = scmp.ne.s32.totalorder %s289, %s303
      %p305 = scmp.eq.s32.totalorder %s43, 0
      %p306 = por %p304, %p305
      %s308 = sadd.s32 %s307, 1
      %p311 = scmp.eq.s32.totalorder %s37, 1
      %p312 = scmp.ne.s32.totalorder %s307, %s309
      %p313 = scmp.eq.s32.totalorder %s37, 0
      %p314 = por %p312, %p313
      %p315 = scmp.ne.s32.totalorder %s307, %s309
      %p316 = scmp.eq.s32.totalorder %s42, 1
      %p317 = por %p315, %p316
      %p318 = scmp.ne.s32.totalorder %s309, %s310
      %p319 = scmp.eq.s32.totalorder %s42, 0
      %p320 = por %p318, %p319
      %p321 = scmp.ne.s32.totalorder %s309, %s310
      %p322 = scmp.eq.s32.totalorder %s43, 1
      %p323 = por %p321, %p322
      %p325 = scmp.ne.s32.totalorder %s310, %s324
      %p326 = scmp.eq.s32.totalorder %s43, 0
      %p327 = por %p325, %p326
      %s329 = sadd.s32 %s328, 1
      %p332 = scmp.eq.s32.totalorder %s37, 1
      %p333 = scmp.ne.s32.totalorder %s328, %s330
      %p334 = scmp.eq.s32.totalorder %s37, 0
      %p335 = por %p333, %p334
      %p336 = scmp.ne.s32.totalorder %s328, %s330
      %p337 = scmp.eq.s32.totalorder %s42, 1
      %p338 = por %p336, %p337
      %p339 = scmp.ne.s32.totalorder %s330, %s331
      %p340 = scmp.eq.s32.totalorder %s42, 0
      %p341 = por %p339, %p340
      %p342 = scmp.ne.s32.totalorder %s330, %s331
      %p343 = scmp.eq.s32.totalorder %s43, 1
      %p344 = por %p342, %p343
      %p346 = scmp.ne.s32.totalorder %s331, %s345
      %p347 = scmp.eq.s32.totalorder %s43, 0
      %p348 = por %p346, %p347
      %s350 = sadd.s32 %s349, 1
      %p353 = scmp.eq.s32.totalorder %s37, 1
      %p354 = scmp.ne.s32.totalorder %s349, %s351
      %p355 = scmp.eq.s32.totalorder %s37, 0
      %p356 = por %p354, %p355
      %p357 = scmp.ne.s32.totalorder %s349, %s351
      %p358 = scmp.eq.s32.totalorder %s42, 1
      %p359 = por %p357, %p358
      %p360 = scmp.ne.s32.totalorder %s351, %s352
      %p361 = scmp.eq.s32.totalorder %s42, 0
      %p362 = por %p360, %p361
      %p363 = scmp.ne.s32.totalorder %s351, %s352
      %p364 = scmp.eq.s32.totalorder %s43, 1
      %p365 = por %p363, %p364
      %p367 = scmp.ne.s32.totalorder %s352, %s366
      %p368 = scmp.eq.s32.totalorder %s43, 0
      %p369 = por %p367, %p368
      %s371 = sadd.s32 %s370, 1
      %p374 = scmp.eq.s32.totalorder %s37, 1
      %p375 = scmp.ne.s32.totalorder %s370, %s372
      %p376 = scmp.eq.s32.totalorder %s37, 0
      %p377 = por %p375, %p376
      %p378 = scmp.ne.s32.totalorder %s370, %s372
      %p379 = scmp.eq.s32.totalorder %s42, 1
      %p380 = por %p378, %p379
      %p381 = scmp.ne.s32.totalorder %s372, %s373
      %p382 = scmp.eq.s32.totalorder %s42, 0
      %p383 = por %p381, %p382
      %p384 = scmp.ne.s32.totalorder %s372, %s373
      %p385 = scmp.eq.s32.totalorder %s43, 1
      %p386 = por %p384, %p385
      %p388 = scmp.ne.s32.totalorder %s373, %s387
      %p389 = scmp.eq.s32.totalorder %s43, 0
      %p390 = por %p388, %p389
      %s392 = sadd.s32 %s391, 1
      %p395 = scmp.eq.s32.totalorder %s37, 1
      %p396 = scmp.ne.s32.totalorder %s391, %s393
      %p397 = scmp.eq.s32.totalorder %s37, 0
      %p398 = por %p396, %p397
      %p399 = scmp.ne.s32.totalorder %s391, %s393
      %p400 = scmp.eq.s32.totalorder %s42, 1
      %p401 = por %p399, %p400
      %p402 = scmp.ne.s32.totalorder %s393, %s394
      %p403 = scmp.eq.s32.totalorder %s42, 0
      %p404 = por %p402, %p403
      %p405 = scmp.ne.s32.totalorder %s393, %s394
      %p406 = scmp.eq.s32.totalorder %s43, 1
      %p407 = por %p405, %p406
      %p409 = scmp.ne.s32.totalorder %s394, %s408
      %p410 = scmp.eq.s32.totalorder %s43, 0
      %p411 = por %p409, %p410
      %s413 = sadd.s32 %s412, 1
      %p416 = scmp.eq.s32.totalorder %s37, 1
      %p417 = scmp.ne.s32.totalorder %s412, %s414
      %p418 = scmp.eq.s32.totalorder %s37, 0
      %p419 = por %p417, %p418
      %p420 = scmp.ne.s32.totalorder %s412, %s414
      %p421 = scmp.eq.s32.totalorder %s42, 1
      %p422 = por %p420, %p421
      %p423 = scmp.ne.s32.totalorder %s414, %s415
      %p424 = scmp.eq.s32.totalorder %s42, 0
      %p425 = por %p423, %p424
      %p426 = scmp.ne.s32.totalorder %s414, %s415
      %p427 = scmp.eq.s32.totalorder %s43, 1
      %p428 = por %p426, %p427
      %p430 = scmp.ne.s32.totalorder %s415, %s429
      %p431 = scmp.eq.s32.totalorder %s43, 0
      %p432 = por %p430, %p431
      %s434 = sadd.s32 %s433, 1
      %p437 = scmp.eq.s32.totalorder %s37, 1
      %p438 = scmp.ne.s32.totalorder %s433, %s435
      %p439 = scmp.eq.s32.totalorder %s37, 0
      %p440 = por %p438, %p439
      %p441 = scmp.ne.s32.totalorder %s433, %s435
      %p442 = scmp.eq.s32.totalorder %s42, 1
      %p443 = por %p441, %p442
      %p444 = scmp.ne.s32.totalorder %s435, %s436
      %p445 = scmp.eq.s32.totalorder %s42, 0
      %p446 = por %p444, %p445
      %p447 = scmp.ne.s32.totalorder %s435, %s436
      %p448 = scmp.eq.s32.totalorder %s43, 1
      %p449 = por %p447, %p448
      %p451 = scmp.ne.s32.totalorder %s436, %s450
      %p452 = scmp.eq.s32.totalorder %s43, 0
      %p453 = por %p451, %p452
      %s455 = sadd.s32 %s454, 1
      %p458 = scmp.eq.s32.totalorder %s37, 1
      %p459 = scmp.ne.s32.totalorder %s454, %s456
      %p460 = scmp.eq.s32.totalorder %s37, 0
      %p461 = por %p459, %p460
      %p462 = scmp.ne.s32.totalorder %s454, %s456
      %p463 = scmp.eq.s32.totalorder %s42, 1
      %p464 = por %p462, %p463
      %p465 = scmp.ne.s32.totalorder %s456, %s457
      %p466 = scmp.eq.s32.totalorder %s42, 0
      %p467 = por %p465, %p466
      %p468 = scmp.ne.s32.totalorder %s456, %s457
      %p469 = scmp.eq.s32.totalorder %s43, 1
      %p470 = por %p468, %p469
      %p472 = scmp.ne.s32.totalorder %s457, %s471
      %p473 = scmp.eq.s32.totalorder %s43, 0
      %p474 = por %p472, %p473
      %s476 = sadd.s32 %s475, 1
      %p479 = scmp.eq.s32.totalorder %s37, 1
      %p480 = scmp.ne.s32.totalorder %s475, %s477
      %p481 = scmp.eq.s32.totalorder %s37, 0
      %p482 = por %p480, %p481
      %p483 = scmp.ne.s32.totalorder %s475, %s477
      %p484 = scmp.eq.s32.totalorder %s42, 1
      %p485 = por %p483, %p484
      %p486 = scmp.ne.s32.totalorder %s477, %s478
      %p487 = scmp.eq.s32.totalorder %s42, 0
      %p488 = por %p486, %p487
      %p489 = scmp.ne.s32.totalorder %s477, %s478
      %p490 = scmp.eq.s32.totalorder %s43, 1
      %p491 = por %p489, %p490
      %p493 = scmp.ne.s32.totalorder %s478, %s492
      %p494 = scmp.eq.s32.totalorder %s43, 0
      %p495 = por %p493, %p494
      %s497 = sadd.s32 %s496, 1
      %p500 = scmp.eq.s32.totalorder %s37, 1
      %p501 = scmp.ne.s32.totalorder %s496, %s498
      %p502 = scmp.eq.s32.totalorder %s37, 0
      %p503 = por %p501, %p502
      %p504 = scmp.ne.s32.totalorder %s496, %s498
      %p505 = scmp.eq.s32.totalorder %s42, 1
      %p506 = por %p504, %p505
      %p507 = scmp.ne.s32.totalorder %s498, %s499
      %p508 = scmp.eq.s32.totalorder %s42, 0
      %p509 = por %p507, %p508
      %p510 = scmp.ne.s32.totalorder %s498, %s499
      %p511 = scmp.eq.s32.totalorder %s43, 1
      %p512 = por %p510, %p511
      %p514 = scmp.ne.s32.totalorder %s499, %s513
      %p515 = scmp.eq.s32.totalorder %s43, 0
      %p516 = por %p514, %p515
      %s518 = sadd.s32 %s517, 1
      %p521 = scmp.eq.s32.totalorder %s37, 1
      %p522 = scmp.ne.s32.totalorder %s517, %s519
      %p523 = scmp.eq.s32.totalorder %s37, 0
      %p524 = por %p522, %p523
      %p525 = scmp.ne.s32.totalorder %s517, %s519
      %p526 = scmp.eq.s32.totalorder %s42, 1
      %p527 = por %p525, %p526
      %p528 = scmp.ne.s32.totalorder %s519, %s520
      %p529 = scmp.eq.s32.totalorder %s42, 0
      %p530 = por %p528, %p529
      %p531 = scmp.ne.s32.totalorder %s519, %s520
      %p532 = scmp.eq.s32.totalorder %s43, 1
      %p533 = por %p531, %p532
      %p535 = scmp.ne.s32.totalorder %s520, %s534
      %p536 = scmp.eq.s32.totalorder %s43, 0
      %p537 = por %p535, %p536
      %s539 = sadd.s32 %s538, 1
      %p542 = scmp.eq.s32.totalorder %s37, 1
      %p543 = scmp.ne.s32.totalorder %s538, %s540
      %p544 = scmp.eq.s32.totalorder %s37, 0
      %p545 = por %p543, %p544
      %p546 = scmp.ne.s32.totalorder %s538, %s540
      %p547 = scmp.eq.s32.totalorder %s42, 1
      %p548 = por %p546, %p547
      %p549 = scmp.ne.s32.totalorder %s540, %s541
      %p550 = scmp.eq.s32.totalorder %s42, 0
      %p551 = por %p549, %p550
      %p552 = scmp.ne.s32.totalorder %s540, %s541
      %p553 = scmp.eq.s32.totalorder %s43, 1
      %p554 = por %p552, %p553
      %p556 = scmp.ne.s32.totalorder %s541, %s555
      %p557 = scmp.eq.s32.totalorder %s43, 0
      %p558 = por %p556, %p557
      %s560 = sadd.s32 %s559, 1
      %p563 = scmp.eq.s32.totalorder %s37, 1
      %p564 = scmp.ne.s32.totalorder %s559, %s561
      %p565 = scmp.eq.s32.totalorder %s37, 0
      %p566 = por %p564, %p565
      %p567 = scmp.ne.s32.totalorder %s559, %s561
      %p568 = scmp.eq.s32.totalorder %s42, 1
      %p569 = por %p567, %p568
      %p570 = scmp.ne.s32.totalorder %s561, %s562
      %p571 = scmp.eq.s32.totalorder %s42, 0
      %p572 = por %p570, %p571
      %p573 = scmp.ne.s32.totalorder %s561, %s562
      %p574 = scmp.eq.s32.totalorder %s43, 1
      %p575 = por %p573, %p574
      %p577 = scmp.ne.s32.totalorder %s562, %s576
      %p578 = scmp.eq.s32.totalorder %s43, 0
      %p579 = por %p577, %p578
      %s581 = sadd.s32 %s580, 1
      %p584 = scmp.eq.s32.totalorder %s37, 1
      %p585 = scmp.ne.s32.totalorder %s580, %s582
      %p586 = scmp.eq.s32.totalorder %s37, 0
      %p587 = por %p585, %p586
      %p588 = scmp.ne.s32.totalorder %s580, %s582
      %p589 = scmp.eq.s32.totalorder %s42, 1
      %p590 = por %p588, %p589
      %p591 = scmp.ne.s32.totalorder %s582, %s583
      %p592 = scmp.eq.s32.totalorder %s42, 0
      %p593 = por %p591, %p592
      %p594 = scmp.ne.s32.totalorder %s582, %s583
      %p595 = scmp.eq.s32.totalorder %s43, 1
      %p596 = por %p594, %p595
      %p598 = scmp.ne.s32.totalorder %s583, %s597
      %p599 = scmp.eq.s32.totalorder %s43, 0
      %p600 = por %p598, %p599
      %s601 = ssub.s32 %s37, %s44
      %p602 = scmp.eq.s32.totalorder %s601, 0
      %s604 = sadd.s32 %s603, 1
      %s605 = scalar_select %p602, %s603, %s604
      %p608 = pneg %p602
      %p609 = scmp.eq.s32.totalorder %s37, 1
      %p610 = por %p608, %p609
      %p611 = scmp.ne.s32.totalorder %s603, %s606
      %p612 = scmp.eq.s32.totalorder %s37, 0
      %p613 = por %p611, %p612
      %p614 = scmp.ne.s32.totalorder %s603, %s606
      %p615 = scmp.eq.s32.totalorder %s42, 1
      %p616 = por %p614, %p615
      %p617 = scmp.ne.s32.totalorder %s606, %s607
      %p618 = scmp.eq.s32.totalorder %s42, 0
      %p619 = por %p617, %p618
      %p620 = scmp.ne.s32.totalorder %s606, %s607
      %p621 = scmp.eq.s32.totalorder %s43, 1
      %p622 = por %p620, %p621
      %p624 = scmp.ne.s32.totalorder %s607, %s623
      %p625 = scmp.eq.s32.totalorder %s43, 0
      %p626 = por %p624, %p625
      %p627 = scmp.le.s32.totalorder 1, %s37
      %p628 = scmp.lt.s32.totalorder %s37, 3
      %p629 = pnand %p627, %p628
      %p630 = pneg %p629
      // Predicated region
      $region9: #{tpu_custom_call.1} parent=5 // pred_check
        _
      $region10: #{tpu_custom_call.1} parent=5 // pred_check_branch
        %632 = sbr.rel (%p629) target = $region12
      $region11: #{tpu_custom_call.1} parent=5 // pred_region
        %s633 = ssub.s32 %s37, 1
        // Predicated region
        $region13: #{tpu_custom_call.1} parent=11 // pred_check
          %p634 = pneg %p110
        $region14: #{tpu_custom_call.1} parent=11 // pred_check_branch
          %636 = sbr.rel (%p634) target = $region16
        $region15: #{tpu_custom_call.1} parent=11 // pred_region
          _
        $region16: #{tpu_custom_call.1} parent=11 // pred_fallthru
          _
        // Predicated region
        $region17: #{tpu_custom_call.1} parent=11 // pred_check
          %p637 = pneg %p131
        $region18: #{tpu_custom_call.1} parent=11 // pred_check_branch
          %639 = sbr.rel (%p637) target = $region20
        $region19: #{tpu_custom_call.1} parent=11 // pred_region
          _
        $region20: #{tpu_custom_call.1} parent=11 // pred_fallthru
          _
        // Predicated region
        $region21: #{tpu_custom_call.1} parent=11 // pred_check
          %p640 = pneg %p152
        $region22: #{tpu_custom_call.1} parent=11 // pred_check_branch
          %642 = sbr.rel (%p640) target = $region24
        $region23: #{tpu_custom_call.1} parent=11 // pred_region
          _
        $region24: #{tpu_custom_call.1} parent=11 // pred_fallthru
          _
        // Predicated region
        $region25: #{tpu_custom_call.1} parent=11 // pred_check
          %p643 = pneg %p173
        $region26: #{tpu_custom_call.1} parent=11 // pred_check_branch
          %645 = sbr.rel (%p643) target = $region28
        $region27: #{tpu_custom_call.1} parent=11 // pred_region
          _
        $region28: #{tpu_custom_call.1} parent=11 // pred_fallthru
          _
        // Predicated region
        $region29: #{tpu_custom_call.1} parent=11 // pred_check
          %p646 = pneg %p194
        $region30: #{tpu_custom_call.1} parent=11 // pred_check_branch
          %648 = sbr.rel (%p646) target = $region32
        $region31: #{tpu_custom_call.1} parent=11 // pred_region
          _
        $region32: #{tpu_custom_call.1} parent=11 // pred_fallthru
          _
        // Predicated region
        $region33: #{tpu_custom_call.1} parent=11 // pred_check
          %p649 = pneg %p215
        $region34: #{tpu_custom_call.1} parent=11 // pred_check_branch
          %651 = sbr.rel (%p649) target = $region36
        $region35: #{tpu_custom_call.1} parent=11 // pred_region
          _
        $region36: #{tpu_custom_call.1} parent=11 // pred_fallthru
          _
        // Predicated region
        $region37: #{tpu_custom_call.1} parent=11 // pred_check
          %p652 = pneg %p236
        $region38: #{tpu_custom_call.1} parent=11 // pred_check_branch
          %654 = sbr.rel (%p652) target = $region40
        $region39: #{tpu_custom_call.1} parent=11 // pred_region
          _
        $region40: #{tpu_custom_call.1} parent=11 // pred_fallthru
          _
        // Predicated region
        $region41: #{tpu_custom_call.1} parent=11 // pred_check
          %p655 = pneg %p257
        $region42: #{tpu_custom_call.1} parent=11 // pred_check_branch
          %657 = sbr.rel (%p655) target = $region44
        $region43: #{tpu_custom_call.1} parent=11 // pred_region
          _
        $region44: #{tpu_custom_call.1} parent=11 // pred_fallthru
          _
        // Predicated region
        $region45: #{tpu_custom_call.1} parent=11 // pred_check
          %p658 = pneg %p278
        $region46: #{tpu_custom_call.1} parent=11 // pred_check_branch
          %660 = sbr.rel (%p658) target = $region48
        $region47: #{tpu_custom_call.1} parent=11 // pred_region
          _
        $region48: #{tpu_custom_call.1} parent=11 // pred_fallthru
          _
        // Predicated region
        $region49: #{tpu_custom_call.1} parent=11 // pred_check
          %p661 = pneg %p299
        $region50: #{tpu_custom_call.1} parent=11 // pred_check_branch
          %663 = sbr.rel (%p661) target = $region52
        $region51: #{tpu_custom_call.1} parent=11 // pred_region
          _
        $region52: #{tpu_custom_call.1} parent=11 // pred_fallthru
          _
        // Predicated region
        $region53: #{tpu_custom_call.1} parent=11 // pred_check
          %p664 = pneg %p320
        $region54: #{tpu_custom_call.1} parent=11 // pred_check_branch
          %666 = sbr.rel (%p664) target = $region56
        $region55: #{tpu_custom_call.1} parent=11 // pred_region
          _
        $region56: #{tpu_custom_call.1} parent=11 // pred_fallthru
          _
        // Predicated region
        $region57: #{tpu_custom_call.1} parent=11 // pred_check
          %p667 = pneg %p341
        $region58: #{tpu_custom_call.1} parent=11 // pred_check_branch
          %669 = sbr.rel (%p667) target = $region60
        $region59: #{tpu_custom_call.1} parent=11 // pred_region
          _
        $region60: #{tpu_custom_call.1} parent=11 // pred_fallthru
          _
        // Predicated region
        $region61: #{tpu_custom_call.1} parent=11 // pred_check
          %p670 = pneg %p362
        $region62: #{tpu_custom_call.1} parent=11 // pred_check_branch
          %672 = sbr.rel (%p670) target = $region64
        $region63: #{tpu_custom_call.1} parent=11 // pred_region
          _
        $region64: #{tpu_custom_call.1} parent=11 // pred_fallthru
          _
        // Predicated region
        $region65: #{tpu_custom_call.1} parent=11 // pred_check
          %p673 = pneg %p383
        $region66: #{tpu_custom_call.1} parent=11 // pred_check_branch
          %675 = sbr.rel (%p673) target = $region68
        $region67: #{tpu_custom_call.1} parent=11 // pred_region
          _
        $region68: #{tpu_custom_call.1} parent=11 // pred_fallthru
          _
        // Predicated region
        $region69: #{tpu_custom_call.1} parent=11 // pred_check
          %p676 = pneg %p404
        $region70: #{tpu_custom_call.1} parent=11 // pred_check_branch
          %678 = sbr.rel (%p676) target = $region72
        $region71: #{tpu_custom_call.1} parent=11 // pred_region
          _
        $region72: #{tpu_custom_call.1} parent=11 // pred_fallthru
          _
        // Predicated region
        $region73: #{tpu_custom_call.1} parent=11 // pred_check
          %p679 = pneg %p425
        $region74: #{tpu_custom_call.1} parent=11 // pred_check_branch
          %681 = sbr.rel (%p679) target = $region76
        $region75: #{tpu_custom_call.1} parent=11 // pred_region
          _
        $region76: #{tpu_custom_call.1} parent=11 // pred_fallthru
          _
        // Predicated region
        $region77: #{tpu_custom_call.1} parent=11 // pred_check
          %p682 = pneg %p446
        $region78: #{tpu_custom_call.1} parent=11 // pred_check_branch
          %684 = sbr.rel (%p682) target = $region80
        $region79: #{tpu_custom_call.1} parent=11 // pred_region
          _
        $region80: #{tpu_custom_call.1} parent=11 // pred_fallthru
          _
        // Predicated region
        $region81: #{tpu_custom_call.1} parent=11 // pred_check
          %p685 = pneg %p467
        $region82: #{tpu_custom_call.1} parent=11 // pred_check_branch
          %687 = sbr.rel (%p685) target = $region84
        $region83: #{tpu_custom_call.1} parent=11 // pred_region
          _
        $region84: #{tpu_custom_call.1} parent=11 // pred_fallthru
          _
        // Predicated region
        $region85: #{tpu_custom_call.1} parent=11 // pred_check
          %p688 = pneg %p488
        $region86: #{tpu_custom_call.1} parent=11 // pred_check_branch
          %690 = sbr.rel (%p688) target = $region88
        $region87: #{tpu_custom_call.1} parent=11 // pred_region
          _
        $region88: #{tpu_custom_call.1} parent=11 // pred_fallthru
          _
        // Predicated region
        $region89: #{tpu_custom_call.1} parent=11 // pred_check
          %p691 = pneg %p509
        $region90: #{tpu_custom_call.1} parent=11 // pred_check_branch
          %693 = sbr.rel (%p691) target = $region92
        $region91: #{tpu_custom_call.1} parent=11 // pred_region
          _
        $region92: #{tpu_custom_call.1} parent=11 // pred_fallthru
          _
        // Predicated region
        $region93: #{tpu_custom_call.1} parent=11 // pred_check
          %p694 = pneg %p530
        $region94: #{tpu_custom_call.1} parent=11 // pred_check_branch
          %696 = sbr.rel (%p694) target = $region96
        $region95: #{tpu_custom_call.1} parent=11 // pred_region
          _
        $region96: #{tpu_custom_call.1} parent=11 // pred_fallthru
          _
        // Predicated region
        $region97: #{tpu_custom_call.1} parent=11 // pred_check
          %p697 = pneg %p551
        $region98: #{tpu_custom_call.1} parent=11 // pred_check_branch
          %699 = sbr.rel (%p697) target = $region100
        $region99: #{tpu_custom_call.1} parent=11 // pred_region
          _
        $region100: #{tpu_custom_call.1} parent=11 // pred_fallthru
          _
        // Predicated region
        $region101: #{tpu_custom_call.1} parent=11 // pred_check
          %p700 = pneg %p572
        $region102: #{tpu_custom_call.1} parent=11 // pred_check_branch
          %702 = sbr.rel (%p700) target = $region104
        $region103: #{tpu_custom_call.1} parent=11 // pred_region
          _
        $region104: #{tpu_custom_call.1} parent=11 // pred_fallthru
          _
        // Predicated region
        $region105: #{tpu_custom_call.1} parent=11 // pred_check
          %p703 = pneg %p593
        $region106: #{tpu_custom_call.1} parent=11 // pred_check_branch
          %705 = sbr.rel (%p703) target = $region108
        $region107: #{tpu_custom_call.1} parent=11 // pred_region
          _
        $region108: #{tpu_custom_call.1} parent=11 // pred_fallthru
          _
      $region12: #{tpu_custom_call.1} parent=5 // pred_fallthru
        _
      %p706 = scmp.lt.s32.totalorder %s37, 2
      // Predicated region
      $region109: #{tpu_custom_call.1} parent=5 // pred_check
        %p707 = pneg %p706
      $region110: #{tpu_custom_call.1} parent=5 // pred_check_branch
        %709 = sbr.rel (%p707) target = $region112
      $region111: #{tpu_custom_call.1} parent=5 // pred_region
        // Predicated region
        $region113: #{tpu_custom_call.1} parent=111 // pred_check
          %p710 = pneg %p57
        $region114: #{tpu_custom_call.1} parent=111 // pred_check_branch
          %712 = sbr.rel (%p710) target = $region116
        $region115: #{tpu_custom_call.1} parent=111 // pred_region
          %p713 = scmp.lt.s32.totalorder %s37, 1
          %s714 = scalar_select %p713, %s37, 1
          %s715 = smul.addr %s714, 8
          %s716 = scalar_lea.vmem %s0, %s715
        $region116: #{tpu_custom_call.1} parent=111 // pred_fallthru
          _
        // Predicated region
        $region117: #{tpu_custom_call.1} parent=111 // pred_check
          %p717 = pneg %p83
        $region118: #{tpu_custom_call.1} parent=111 // pred_check_branch
          %719 = sbr.rel (%p717) target = $region120
        $region119: #{tpu_custom_call.1} parent=111 // pred_region
          %p720 = scmp.lt.s32.totalorder %s37, 1
          %s721 = scalar_select %p720, %s37, 1
          %s722 = smul.addr %s721, 8
          %s723 = smul.addr %s722, 8
          %s724 = scalar_lea.vmem %s1, %s723
        $region120: #{tpu_custom_call.1} parent=111 // pred_fallthru
          _
      $region112: #{tpu_custom_call.1} parent=5 // pred_fallthru
        _
      %p725 = scmp.le.s32.totalorder 1, %s37
      %p726 = scmp.lt.s32.totalorder %s37, 3
      %p727 = pnand %p725, %p726
      %p728 = pneg %p727
      // Predicated region
      $region121: #{tpu_custom_call.1} parent=5 // pred_check
        _
      $region122: #{tpu_custom_call.1} parent=5 // pred_check_branch
        %730 = sbr.rel (%p727) target = $region124
      $region123: #{tpu_custom_call.1} parent=5 // pred_region
        %s731 = ssub.s32 %s37, 1
        %p732 = scmp.lt.s32.totalorder %s42, 1
        %s733 = scalar_select %p732, %s42, 1
        %s734 = smul.addr %s733, 8
        %s735 = scalar_lea.vmem %s0, %s734
        %p736 = pneg %p63
        %p737 = pneg %p60
        %p738 = scmp.lt.s32.totalorder %s42, 1
        %s739 = scalar_select %p738, %s42, 1
        %s740 = smul.addr %s739, 8
        %s741 = smul.addr %s740, 8
        %s742 = scalar_lea.vmem %s1, %s741
        %p743 = pneg %p89
        %p744 = pneg %p86
        %p745 = pneg %p110
        %p746 = pneg %p107
        %p747 = pneg %p131
        %p748 = pneg %p128
        %p749 = pneg %p152
        %p750 = pneg %p149
        %p751 = pneg %p173
        %p752 = pneg %p170
        %p753 = pneg %p194
        %p754 = pneg %p191
        %p755 = pneg %p215
        %p756 = pneg %p212
        %p757 = pneg %p236
        %p758 = pneg %p233
        %p759 = pneg %p257
        %p760 = pneg %p254
        %p761 = pneg %p278
        %p762 = pneg %p275
        %p763 = pneg %p299
        %p764 = pneg %p296
        %p765 = pneg %p320
        %p766 = pneg %p317
        %p767 = pneg %p341
        %p768 = pneg %p338
        %p769 = pneg %p362
        %p770 = pneg %p359
        %p771 = pneg %p383
        %p772 = pneg %p380
        %p773 = pneg %p404
        %p774 = pneg %p401
        %p775 = pneg %p425
        %p776 = pneg %p422
        %p777 = pneg %p446
        %p778 = pneg %p443
        %p779 = pneg %p467
        %p780 = pneg %p464
        %p781 = pneg %p488
        %p782 = pneg %p485
        %p783 = pneg %p509
        %p784 = pneg %p506
        %p785 = pneg %p530
        %p786 = pneg %p527
        %p787 = pneg %p551
        %p788 = pneg %p548
        %p789 = pneg %p572
        %p790 = pneg %p569
        %p791 = pneg %p593
        %p792 = pneg %p590
        %p793 = pneg %p619
        %p794 = pneg %p616
        %s795 = sand.u32 %s606, 1
        %s796 = scalar_lea.sflag [#allocation5], %s795
        %s797 = sand.u32 %s606, 1
        %s798 = smul.addr %s797, 2
        %s799 = scalar_lea.vmem [#allocation4], %s798
        %p800 = scmp.lt.s32.totalorder %s42, 1
        %s801 = scalar_select %p800, %s42, 1
        %s802 = smul.addr %s801, 8
        %s803 = scalar_lea.vmem %s0, %s802
        %p804 = scmp.lt.s32.totalorder %s42, 1
        %s805 = scalar_select %p804, %s42, 1
        %s806 = smul.addr %s805, 8
        %s807 = smul.addr %s806, 8
        %s808 = scalar_lea.vmem %s1, %s807
        %v810 = vld [vmem:[%s803] sm:$0xff]
        %v811 = vld [vmem:[%s808] sm:$0xff]
        %v812 = vld [vmem:[%s808 + $0x8] sm:$0xff]
        %v813 = vld [vmem:[%s808 + $0x10] sm:$0xff]
        %v814 = vld [vmem:[%s808 + $0x18] sm:$0xff]
        %v815 = vld [vmem:[%s808 + $0x20] sm:$0xff]
        %v816 = vld [vmem:[%s808 + $0x28] sm:$0xff]
        %v817 = vld [vmem:[%s808 + $0x30] sm:$0xff]
        %v818 = vld [vmem:[%s808 + $0x38] sm:$0xff]
        %v819 = vpack.c.bf16 %v810, %v810
        %v820 = vld [vmem:[%s2] sm:$0xf]
        %v821 = vld [vmem:[%s2 + $0x4] sm:$0xf]
        %v822 = vld [vmem:[%s2 + $0x8] sm:$0xf]
        %v823 = vld [vmem:[%s2 + $0xc] sm:$0xf]
        %v824 = vld [vmem:[%s3] sm:$0x1]
        %v826 = vlaneseq
        %v827 = vshrl.u32 %v826, 7
        %v828 = vsub.s32 0, %v827
        %v829 = vrot.slane %v824, %v828
        %v835 = vunpack.c.l.b16 %v820
        %v836 = vunpack.c.l.b16 %v821
        %v837 = vunpack.c.l.b16 %v822
        %v838 = vunpack.c.l.b16 %v823
        %v839 = vpack.c.b16 %v836, %v835
        %v840 = vpack.c.b16 %v838, %v837
        %vm843 = vcmask 261120
        %v845 = vsel %vm843, %v819, 0
        %847 = vmatprep.subr.bf16.mxu0 0
        %848 = vmatpush1.bf16.msra.mxu0 %v839
        %849 = vmatprep.subr.bf16.mxu0 0
        %850 = vmatpush1.bf16.msra.mxu0 %v840
        %851 = vmatprep.subr.bf16.mxu0 0
        %852 = vmatpush1.bf16.msra.mxu0 0
        %853 = vmatprep.subr.bf16.mxu0 0
        %854 = vmatpush1.bf16.msra.mxu0 0
        %855 = vmatprep.subr.bf16.mxu0 0
        %856 = vmatpush1.bf16.msra.mxu0 0
        %857 = vmatprep.subr.bf16.mxu0 0
        %858 = vmatpush1.bf16.msra.mxu0 0
        %859 = vmatprep.subr.bf16.mxu0 0
        %860 = vmatpush1.bf16.msra.mxu0 0
        %861 = vmatprep.subr.bf16.mxu0 0
        %862 = vmatpush1.bf16.msra.mxu0 0
        %863 = vmatprep.subr.bf16.mxu0 0
        %864 = vmatpush1.bf16.msra.mxu0 0
        %865 = vmatprep.subr.bf16.mxu0 0
        %866 = vmatpush1.bf16.msra.mxu0 0
        %867 = vmatprep.subr.bf16.mxu0 0
        %868 = vmatpush1.bf16.msra.mxu0 0
        %869 = vmatprep.subr.bf16.mxu0 0
        %870 = vmatpush1.bf16.msra.mxu0 0
        %871 = vmatprep.subr.bf16.mxu0 0
        %872 = vmatpush1.bf16.msra.mxu0 0
        %873 = vmatprep.subr.bf16.mxu0 0
        %874 = vmatpush1.bf16.msra.mxu0 0
        %875 = vmatprep.subr.bf16.mxu0 0
        %876 = vmatpush1.bf16.msra.mxu0 0
        %877 = vmatprep.subr.bf16.mxu0 0
        %878 = vmatpush1.bf16.msra.mxu0 0
        %879 = vmatprep.mubr.bf16.mxu0 0
        %880 = vmatmul.mubr.bf16.gmra.mrb[0].mxu0 %v845
        %v881 = vpop.f32.mrb[0].mxu0
        %v882 = vadd.f32 %v829, %v881
        %v883 = vpop.f32.mrb[0].mxu0
        %v884 = vpop.f32.mrb[0].mxu0
        %v885 = vpop.f32.mrb[0].mxu0
        %886 = vdwg.mxu0
        %v887 = vld [vmem:[%s4] sm:$0xf]
        %v888 = vld [vmem:[%s4 + $0x4] sm:$0xf]
        %v889 = vld [vmem:[%s4 + $0x8] sm:$0xf]
        %v890 = vld [vmem:[%s4 + $0xc] sm:$0xf]
        %v891 = vld [vmem:[%s5] sm:$0x1]
        %v893 = vlaneseq
        %v894 = vshrl.u32 %v893, 7
        %v895 = vsub.s32 0, %v894
        %v896 = vrot.slane %v891, %v895
        %v902 = vunpack.c.l.b16 %v887
        %v903 = vunpack.c.l.b16 %v888
        %v904 = vunpack.c.l.b16 %v889
        %v905 = vunpack.c.l.b16 %v890
        %v906 = vpack.c.b16 %v903, %v902
        %v907 = vpack.c.b16 %v905, %v904
        %910 = vmatprep.subr.bf16.mxu0 0
        %911 = vmatpush1.bf16.msra.mxu0 %v906
        %912 = vmatprep.subr.bf16.mxu0 0
        %913 = vmatpush1.bf16.msra.mxu0 %v907
        %914 = vmatprep.subr.bf16.mxu0 0
        %915 = vmatpush1.bf16.msra.mxu0 0
        %916 = vmatprep.subr.bf16.mxu0 0
        %917 = vmatpush1.bf16.msra.mxu0 0
        %918 = vmatprep.subr.bf16.mxu0 0
        %919 = vmatpush1.bf16.msra.mxu0 0
        %920 = vmatprep.subr.bf16.mxu0 0
        %921 = vmatpush1.bf16.msra.mxu0 0
        %922 = vmatprep.subr.bf16.mxu0 0
        %923 = vmatpush1.bf16.msra.mxu0 0
        %924 = vmatprep.subr.bf16.mxu0 0
        %925 = vmatpush1.bf16.msra.mxu0 0
        %926 = vmatprep.subr.bf16.mxu0 0
        %927 = vmatpush1.bf16.msra.mxu0 0
        %928 = vmatprep.subr.bf16.mxu0 0
        %929 = vmatpush1.bf16.msra.mxu0 0
        %930 = vmatprep.subr.bf16.mxu0 0
        %931 = vmatpush1.bf16.msra.mxu0 0
        %932 = vmatprep.subr.bf16.mxu0 0
        %933 = vmatpush1.bf16.msra.mxu0 0
        %934 = vmatprep.subr.bf16.mxu0 0
        %935 = vmatpush1.bf16.msra.mxu0 0
        %936 = vmatprep.subr.bf16.mxu0 0
        %937 = vmatpush1.bf16.msra.mxu0 0
        %938 = vmatprep.subr.bf16.mxu0 0
        %939 = vmatpush1.bf16.msra.mxu0 0
        %940 = vmatprep.subr.bf16.mxu0 0
        %941 = vmatpush1.bf16.msra.mxu0 0
        %942 = vmatprep.mubr.bf16.mxu0 0
        %943 = vmatmul.mubr.bf16.gmra.mrb[0].mxu0 %v845
        %v944 = vpop.f32.mrb[0].mxu0
        %v945 = vadd.f32 %v896, %v944
        %v946 = vpop.f32.mrb[0].mxu0
        %v947 = vpop.f32.mrb[0].mxu0
        %v948 = vpop.f32.mrb[0].mxu0
        %949 = vdwg.mxu0
        %v950 = vld [vmem:[%s6] sm:$0xf]
        %v951 = vld [vmem:[%s6 + $0x4] sm:$0xf]
        %v952 = vld [vmem:[%s6 + $0x8] sm:$0xf]
        %v953 = vld [vmem:[%s6 + $0xc] sm:$0xf]
        %v954 = vld [vmem:[%s7] sm:$0x1]
        %v956 = vlaneseq
        %v957 = vshrl.u32 %v956, 7
        %v958 = vsub.s32 0, %v957
        %v959 = vrot.slane %v954, %v958
        %v965 = vunpack.c.l.b16 %v950
        %v966 = vunpack.c.l.b16 %v951
        %v967 = vunpack.c.l.b16 %v952
        %v968 = vunpack.c.l.b16 %v953
        %v969 = vpack.c.b16 %v966, %v965
        %v970 = vpack.c.b16 %v968, %v967
        %973 = vmatprep.subr.bf16.mxu0 0
        %974 = vmatpush1.bf16.msra.mxu0 %v969
        %975 = vmatprep.subr.bf16.mxu0 0
        %976 = vmatpush1.bf16.msra.mxu0 %v970
        %977 = vmatprep.subr.bf16.mxu0 0
        %978 = vmatpush1.bf16.msra.mxu0 0
        %979 = vmatprep.subr.bf16.mxu0 0
        %980 = vmatpush1.bf16.msra.mxu0 0
        %981 = vmatprep.subr.bf16.mxu0 0
        %982 = vmatpush1.bf16.msra.mxu0 0
        %983 = vmatprep.subr.bf16.mxu0 0
        %984 = vmatpush1.bf16.msra.mxu0 0
        %985 = vmatprep.subr.bf16.mxu0 0
        %986 = vmatpush1.bf16.msra.mxu0 0
        %987 = vmatprep.subr.bf16.mxu0 0
        %988 = vmatpush1.bf16.msra.mxu0 0
        %989 = vmatprep.subr.bf16.mxu0 0
        %990 = vmatpush1.bf16.msra.mxu0 0
        %991 = vmatprep.subr.bf16.mxu0 0
        %992 = vmatpush1.bf16.msra.mxu0 0
        %993 = vmatprep.subr.bf16.mxu0 0
        %994 = vmatpush1.bf16.msra.mxu0 0
        %995 = vmatprep.subr.bf16.mxu0 0
        %996 = vmatpush1.bf16.msra.mxu0 0
        %997 = vmatprep.subr.bf16.mxu0 0
        %998 = vmatpush1.bf16.msra.mxu0 0
        %999 = vmatprep.subr.bf16.mxu0 0
        %1000 = vmatpush1.bf16.msra.mxu0 0
        %1001 = vmatprep.subr.bf16.mxu0 0
        %1002 = vmatpush1.bf16.msra.mxu0 0
        %1003 = vmatprep.subr.bf16.mxu0 0
        %1004 = vmatpush1.bf16.msra.mxu0 0
        %1005 = vmatprep.mubr.bf16.mxu0 0
        %1006 = vmatmul.mubr.bf16.gmra.mrb[0].mxu0 %v845
        %v1007 = vpop.f32.mrb[0].mxu0
        %v1008 = vadd.f32 %v959, %v1007
        %v1009 = vpop.f32.mrb[0].mxu0
        %v1010 = vpop.f32.mrb[0].mxu0
        %v1011 = vpop.f32.mrb[0].mxu0
        %1012 = vdwg.mxu0
        %v1013 = vpack.c.bf16 %v812, %v811
        %v1014 = vpack.c.bf16 %v814, %v813
        %v1015 = vpack.c.bf16 %v816, %v815
        %v1016 = vpack.c.bf16 %v818, %v817
        %v1017 = vld [vmem:[%s10] sm:$0xf]
        %v1018 = vld [vmem:[%s10 + $0x4] sm:$0xf]
        %v1019 = vld [vmem:[%s10 + $0x8] sm:$0xf]
        %v1020 = vld [vmem:[%s10 + $0xc] sm:$0xf]
        %v1021 = vld [vmem:[%s11] sm:$0x1]
        %v1023 = vlaneseq
        %v1024 = vshrl.u32 %v1023, 7
        %v1025 = vsub.s32 0, %v1024
        %v1026 = vrot.slane %v1021, %v1025
        %v1032 = vunpack.c.l.b16 %v1017
        %v1033 = vunpack.c.l.b16 %v1018
        %v1034 = vunpack.c.l.b16 %v1019
        %v1035 = vunpack.c.l.b16 %v1020
        %v1036 = vpack.c.b16 %v1033, %v1032
        %v1037 = vpack.c.b16 %v1035, %v1034
        %v1041 = vsel %vm843, %v1013, 0
        %v1044 = vsel %vm843, %v1014, 0
        %v1047 = vsel %vm843, %v1015, 0
        %v1050 = vsel %vm843, %v1016, 0
        %1052 = vmatprep.subr.bf16.mxu0 0
        %1053 = vmatpush1.bf16.msra.mxu0 %v1036
        %1054 = vmatprep.subr.bf16.mxu0 0
        %1055 = vmatpush1.bf16.msra.mxu0 %v1037
        %1056 = vmatprep.subr.bf16.mxu0 0
        %1057 = vmatpush1.bf16.msra.mxu0 0
        %1058 = vmatprep.subr.bf16.mxu0 0
        %1059 = vmatpush1.bf16.msra.mxu0 0
        %1060 = vmatprep.subr.bf16.mxu0 0
        %1061 = vmatpush1.bf16.msra.mxu0 0
        %1062 = vmatprep.subr.bf16.mxu0 0
        %1063 = vmatpush1.bf16.msra.mxu0 0
        %1064 = vmatprep.subr.bf16.mxu0 0
        %1065 = vmatpush1.bf16.msra.mxu0 0
        %1066 = vmatprep.subr.bf16.mxu0 0
        %1067 = vmatpush1.bf16.msra.mxu0 0
        %1068 = vmatprep.subr.bf16.mxu0 0
        %1069 = vmatpush1.bf16.msra.mxu0 0
        %1070 = vmatprep.subr.bf16.mxu0 0
        %1071 = vmatpush1.bf16.msra.mxu0 0
        %1072 = vmatprep.subr.bf16.mxu0 0
        %1073 = vmatpush1.bf16.msra.mxu0 0
        %1074 = vmatprep.subr.bf16.mxu0 0
        %1075 = vmatpush1.bf16.msra.mxu0 0
        %1076 = vmatprep.subr.bf16.mxu0 0
        %1077 = vmatpush1.bf16.msra.mxu0 0
        %1078 = vmatprep.subr.bf16.mxu0 0
        %1079 = vmatpush1.bf16.msra.mxu0 0
        %1080 = vmatprep.subr.bf16.mxu0 0
        %1081 = vmatpush1.bf16.msra.mxu0 0
        %1082 = vmatprep.subr.bf16.mxu0 0
        %1083 = vmatpush1.bf16.msra.mxu0 0
        %1084 = vmatprep.mubr.bf16.mxu0 0
        %1085 = vmatmul.mubr.bf16.gmra.mrb[0].mxu0 %v1041
        %v1086 = vpop.f32.mrb[0].mxu0
        %v1087 = vadd.f32 %v1026, %v1086
        %v1088 = vpop.f32.mrb[0].mxu0
        %v1089 = vpop.f32.mrb[0].mxu0
        %v1090 = vadd.f32 %v1026, %v1089
        %v1091 = vpop.f32.mrb[0].mxu0
        %1092 = vmatprep.mubr.bf16.mxu0 0
        %1093 = vmatmul.mubr.bf16.gmra.mrb[0].mxu0 %v1044
        %v1094 = vpop.f32.mrb[0].mxu0
        %v1095 = vadd.f32 %v1026, %v1094
        %v1096 = vpop.f32.mrb[0].mxu0
        %v1097 = vpop.f32.mrb[0].mxu0
        %v1098 = vadd.f32 %v1026, %v1097
        %v1099 = vpop.f32.mrb[0].mxu0
        %1100 = vmatprep.mubr.bf16.mxu0 0
        %1101 = vmatmul.mubr.bf16.gmra.mrb[0].mxu0 %v1047
        %v1102 = vpop.f32.mrb[0].mxu0
        %v1103 = vadd.f32 %v1026, %v1102
        %v1104 = vpop.f32.mrb[0].mxu0
        %v1105 = vpop.f32.mrb[0].mxu0
        %v1106 = vadd.f32 %v1026, %v1105
        %v1107 = vpop.f32.mrb[0].mxu0
        %1108 = vmatprep.mubr.bf16.mxu0 0
        %1109 = vmatmul.mubr.bf16.gmra.mrb[0].mxu0 %v1050
        %v1110 = vpop.f32.mrb[0].mxu0
        %v1111 = vadd.f32 %v1026, %v1110
        %v1112 = vpop.f32.mrb[0].mxu0
        %v1113 = vpop.f32.mrb[0].mxu0
        %v1114 = vadd.f32 %v1026, %v1113
        %v1115 = vpop.f32.mrb[0].mxu0
        %1116 = vdwg.mxu0
        %v1117 = vmax.f32 %v1087, 0.0
        %v1118 = vmax.f32 %v1090, 0.0
        %v1119 = vmax.f32 %v1095, 0.0
        %v1120 = vmax.f32 %v1098, 0.0
        %v1121 = vmax.f32 %v1103, 0.0
        %v1122 = vmax.f32 %v1106, 0.0
        %v1123 = vmax.f32 %v1111, 0.0
        %v1124 = vmax.f32 %v1114, 0.0
        %v1125 = vpack.c.bf16 %v1118, %v1117
        %v1126 = vpack.c.bf16 %v1120, %v1119
        %v1127 = vpack.c.bf16 %v1122, %v1121
        %v1128 = vpack.c.bf16 %v1124, %v1123
        %v1129 = vld [vmem:[%s12] sm:$0xf]
        %v1130 = vld [vmem:[%s12 + $0x4] sm:$0xf]
        %v1131 = vld [vmem:[%s12 + $0x8] sm:$0xf]
        %v1132 = vld [vmem:[%s12 + $0xc] sm:$0xf]
        %v1133 = vld [vmem:[%s13] sm:$0x1]
        %v1135 = vlaneseq
        %v1136 = vshrl.u32 %v1135, 7
        %v1137 = vsub.s32 0, %v1136
        %v1138 = vrot.slane %v1133, %v1137
        %v1144 = vunpack.c.l.b16 %v1129
        %v1145 = vunpack.c.l.b16 %v1130
        %v1146 = vunpack.c.l.b16 %v1131
        %v1147 = vunpack.c.l.b16 %v1132
        %v1148 = vpack.c.b16 %v1145, %v1144
        %v1149 = vpack.c.b16 %v1147, %v1146
        %v1153 = vsel %vm843, %v1125, 0
        %v1156 = vsel %vm843, %v1126, 0
        %v1159 = vsel %vm843, %v1127, 0
        %v1162 = vsel %vm843, %v1128, 0
        %1164 = vmatprep.subr.bf16.mxu0 0
        %1165 = vmatpush1.bf16.msra.mxu0 %v1148
        %1166 = vmatprep.subr.bf16.mxu0 0
        %1167 = vmatpush1.bf16.msra.mxu0 %v1149
        %1168 = vmatprep.subr.bf16.mxu0 0
        %1169 = vmatpush1.bf16.msra.mxu0 0
        %1170 = vmatprep.subr.bf16.mxu0 0
        %1171 = vmatpush1.bf16.msra.mxu0 0
        %1172 = vmatprep.subr.bf16.mxu0 0
        %1173 = vmatpush1.bf16.msra.mxu0 0
        %1174 = vmatprep.subr.bf16.mxu0 0
        %1175 = vmatpush1.bf16.msra.mxu0 0
        %1176 = vmatprep.subr.bf16.mxu0 0
        %1177 = vmatpush1.bf16.msra.mxu0 0
        %1178 = vmatprep.subr.bf16.mxu0 0
        %1179 = vmatpush1.bf16.msra.mxu0 0
        %1180 = vmatprep.subr.bf16.mxu0 0
        %1181 = vmatpush1.bf16.msra.mxu0 0
        %1182 = vmatprep.subr.bf16.mxu0 0
        %1183 = vmatpush1.bf16.msra.mxu0 0
        %1184 = vmatprep.subr.bf16.mxu0 0
        %1185 = vmatpush1.bf16.msra.mxu0 0
        %1186 = vmatprep.subr.bf16.mxu0 0
        %1187 = vmatpush1.bf16.msra.mxu0 0
        %1188 = vmatprep.subr.bf16.mxu0 0
        %1189 = vmatpush1.bf16.msra.mxu0 0
        %1190 = vmatprep.subr.bf16.mxu0 0
        %1191 = vmatpush1.bf16.msra.mxu0 0
        %1192 = vmatprep.subr.bf16.mxu0 0
        %1193 = vmatpush1.bf16.msra.mxu0 0
        %1194 = vmatprep.subr.bf16.mxu0 0
        %1195 = vmatpush1.bf16.msra.mxu0 0
        %1196 = vmatprep.mubr.bf16.mxu0 0
        %1197 = vmatmul.mubr.bf16.gmra.mrb[0].mxu0 %v1153
        %v1198 = vpop.f32.mrb[0].mxu0
        %v1199 = vadd.f32 %v1138, %v1198
        %v1200 = vpop.f32.mrb[0].mxu0
        %v1201 = vpop.f32.mrb[0].mxu0
        %v1202 = vadd.f32 %v1138, %v1201
        %v1203 = vpop.f32.mrb[0].mxu0
        %1204 = vmatprep.mubr.bf16.mxu0 0
        %1205 = vmatmul.mubr.bf16.gmra.mrb[0].mxu0 %v1156
        %v1206 = vpop.f32.mrb[0].mxu0
        %v1207 = vadd.f32 %v1138, %v1206
        %v1208 = vpop.f32.mrb[0].mxu0
        %v1209 = vpop.f32.mrb[0].mxu0
        %v1210 = vadd.f32 %v1138, %v1209
        %v1211 = vpop.f32.mrb[0].mxu0
        %1212 = vmatprep.mubr.bf16.mxu0 0
        %1213 = vmatmul.mubr.bf16.gmra.mrb[0].mxu0 %v1159
        %v1214 = vpop.f32.mrb[0].mxu0
        %v1215 = vadd.f32 %v1138, %v1214
        %v1216 = vpop.f32.mrb[0].mxu0
        %v1217 = vpop.f32.mrb[0].mxu0
        %v1218 = vadd.f32 %v1138, %v1217
        %v1219 = vpop.f32.mrb[0].mxu0
        %1220 = vmatprep.mubr.bf16.mxu0 0
        %1221 = vmatmul.mubr.bf16.gmra.mrb[0].mxu0 %v1162
        %v1222 = vpop.f32.mrb[0].mxu0
        %v1223 = vadd.f32 %v1138, %v1222
        %v1224 = vpop.f32.mrb[0].mxu0
        %v1225 = vpop.f32.mrb[0].mxu0
        %v1226 = vadd.f32 %v1138, %v1225
        %v1227 = vpop.f32.mrb[0].mxu0
        %1228 = vdwg.mxu0
        %v1229 = vmax.f32 %v1199, 0.0
        %v1230 = vmax.f32 %v1202, 0.0
        %v1231 = vmax.f32 %v1207, 0.0
        %v1232 = vmax.f32 %v1210, 0.0
        %v1233 = vmax.f32 %v1215, 0.0
        %v1234 = vmax.f32 %v1218, 0.0
        %v1235 = vmax.f32 %v1223, 0.0
        %v1236 = vmax.f32 %v1226, 0.0
        %v1237 = vpack.c.bf16 %v1230, %v1229
        %v1238 = vpack.c.bf16 %v1232, %v1231
        %v1239 = vpack.c.bf16 %v1234, %v1233
        %v1240 = vpack.c.bf16 %v1236, %v1235
        %v1241 = vld [vmem:[%s14] sm:$0xf]
        %v1242 = vld [vmem:[%s14 + $0x4] sm:$0xf]
        %v1243 = vld [vmem:[%s14 + $0x8] sm:$0xf]
        %v1244 = vld [vmem:[%s14 + $0xc] sm:$0xf]
        %v1245 = vld [vmem:[%s15] sm:$0x1]
        %v1247 = vlaneseq
        %v1248 = vshrl.u32 %v1247, 7
        %v1249 = vsub.s32 0, %v1248
        %v1250 = vrot.slane %v1245, %v1249
        %v1256 = vunpack.c.l.b16 %v1241
        %v1257 = vunpack.c.l.b16 %v1242
        %v1258 = vunpack.c.l.b16 %v1243
        %v1259 = vunpack.c.l.b16 %v1244
        %v1260 = vpack.c.b16 %v1257, %v1256
        %v1261 = vpack.c.b16 %v1259, %v1258
        %v1265 = vsel %vm843, %v1237, 0
        %v1268 = vsel %vm843, %v1238, 0
        %v1271 = vsel %vm843, %v1239, 0
        %v1274 = vsel %vm843, %v1240, 0
        %1276 = vmatprep.subr.bf16.mxu0 0
        %1277 = vmatpush1.bf16.msra.mxu0 %v1260
        %1278 = vmatprep.subr.bf16.mxu0 0
        %1279 = vmatpush1.bf16.msra.mxu0 %v1261
        %1280 = vmatprep.subr.bf16.mxu0 0
        %1281 = vmatpush1.bf16.msra.mxu0 0
        %1282 = vmatprep.subr.bf16.mxu0 0
        %1283 = vmatpush1.bf16.msra.mxu0 0
        %1284 = vmatprep.subr.bf16.mxu0 0
        %1285 = vmatpush1.bf16.msra.mxu0 0
        %1286 = vmatprep.subr.bf16.mxu0 0
        %1287 = vmatpush1.bf16.msra.mxu0 0
        %1288 = vmatprep.subr.bf16.mxu0 0
        %1289 = vmatpush1.bf16.msra.mxu0 0
        %1290 = vmatprep.subr.bf16.mxu0 0
        %1291 = vmatpush1.bf16.msra.mxu0 0
        %1292 = vmatprep.subr.bf16.mxu0 0
        %1293 = vmatpush1.bf16.msra.mxu0 0
        %1294 = vmatprep.subr.bf16.mxu0 0
        %1295 = vmatpush1.bf16.msra.mxu0 0
        %1296 = vmatprep.subr.bf16.mxu0 0
        %1297 = vmatpush1.bf16.msra.mxu0 0
        %1298 = vmatprep.subr.bf16.mxu0 0
        %1299 = vmatpush1.bf16.msra.mxu0 0
        %1300 = vmatprep.subr.bf16.mxu0 0
        %1301 = vmatpush1.bf16.msra.mxu0 0
        %1302 = vmatprep.subr.bf16.mxu0 0
        %1303 = vmatpush1.bf16.msra.mxu0 0
        %1304 = vmatprep.subr.bf16.mxu0 0
        %1305 = vmatpush1.bf16.msra.mxu0 0
        %1306 = vmatprep.subr.bf16.mxu0 0
        %1307 = vmatpush1.bf16.msra.mxu0 0
        %1308 = vmatprep.mubr.bf16.mxu0 0
        %1309 = vmatmul.mubr.bf16.gmra.mrb[0].mxu0 %v1265
        %v1310 = vpop.f32.mrb[0].mxu0
        %v1311 = vadd.f32 %v1250, %v1310
        %v1312 = vpop.f32.mrb[0].mxu0
        %v1313 = vpop.f32.mrb[0].mxu0
        %v1314 = vadd.f32 %v1250, %v1313
        %v1315 = vpop.f32.mrb[0].mxu0
        %1316 = vmatprep.mubr.bf16.mxu0 0
        %1317 = vmatmul.mubr.bf16.gmra.mrb[0].mxu0 %v1268
        %v1318 = vpop.f32.mrb[0].mxu0
        %v1319 = vadd.f32 %v1250, %v1318
        %v1320 = vpop.f32.mrb[0].mxu0
        %v1321 = vpop.f32.mrb[0].mxu0
        %v1322 = vadd.f32 %v1250, %v1321
        %v1323 = vpop.f32.mrb[0].mxu0
        %1324 = vmatprep.mubr.bf16.mxu0 0
        %1325 = vmatmul.mubr.bf16.gmra.mrb[0].mxu0 %v1271
        %v1326 = vpop.f32.mrb[0].mxu0
        %v1327 = vadd.f32 %v1250, %v1326
        %v1328 = vpop.f32.mrb[0].mxu0
        %v1329 = vpop.f32.mrb[0].mxu0
        %v1330 = vadd.f32 %v1250, %v1329
        %v1331 = vpop.f32.mrb[0].mxu0
        %1332 = vmatprep.mubr.bf16.mxu0 0
        %1333 = vmatmul.mubr.bf16.gmra.mrb[0].mxu0 %v1274
        %v1334 = vpop.f32.mrb[0].mxu0
        %v1335 = vadd.f32 %v1250, %v1334
        %v1336 = vpop.f32.mrb[0].mxu0
        %v1337 = vpop.f32.mrb[0].mxu0
        %v1338 = vadd.f32 %v1250, %v1337
        %v1339 = vpop.f32.mrb[0].mxu0
        %1340 = vdwg.mxu0
        %1342 = vrot.lane.b32.xlu0 %v882, 120
        %v1343 = vpop.permute.xlu0 %1342
        %1345 = vrot.lane.b32.xlu0 %v882, 112
        %v1346 = vpop.permute.xlu0 %1345
        %1348 = vrot.lane.b32.xlu0 %v882, 104
        %v1349 = vpop.permute.xlu0 %1348
        %v1351 = vpack.c.bf16 %v882, %v882
        %v1352 = vpack.c.bf16 %v1343, %v1343
        %v1353 = vpack.c.bf16 %v1346, %v1346
        %v1354 = vpack.c.bf16 %v1349, %v1349
        %1356 = vrot.lane.b32.xlu0 %v945, 120
        %v1357 = vpop.permute.xlu0 %1356
        %1359 = vrot.lane.b32.xlu0 %v945, 112
        %v1360 = vpop.permute.xlu0 %1359
        %1362 = vrot.lane.b32.xlu0 %v945, 104
        %v1363 = vpop.permute.xlu0 %1362
        %v1365 = vpack.c.bf16 %v945, %v945
        %v1366 = vpack.c.bf16 %v1357, %v1357
        %v1367 = vpack.c.bf16 %v1360, %v1360
        %v1368 = vpack.c.bf16 %v1363, %v1363
        %1370 = vrot.lane.b32.xlu0 %v1008, 120
        %v1371 = vpop.permute.xlu0 %1370
        %1373 = vrot.lane.b32.xlu0 %v1008, 112
        %v1374 = vpop.permute.xlu0 %1373
        %1376 = vrot.lane.b32.xlu0 %v1008, 104
        %v1377 = vpop.permute.xlu0 %1376
        %v1379 = vpack.c.bf16 %v1008, %v1008
        %v1380 = vpack.c.bf16 %v1371, %v1371
        %v1381 = vpack.c.bf16 %v1374, %v1374
        %v1382 = vpack.c.bf16 %v1377, %v1377
        %1391 = vrot.lane.b32.xlu0 %v1311, 127
        %v1392 = vpop.permute.xlu0 %1391
        %1393 = vrot.lane.b32.xlu0 %v1314, 127
        %v1394 = vpop.permute.xlu0 %1393
        %1395 = vrot.lane.b32.xlu0 %v1319, 127
        %v1396 = vpop.permute.xlu0 %1395
        %1397 = vrot.lane.b32.xlu0 %v1322, 127
        %v1398 = vpop.permute.xlu0 %1397
        %1399 = vrot.lane.b32.xlu0 %v1327, 127
        %v1400 = vpop.permute.xlu0 %1399
        %1401 = vrot.lane.b32.xlu0 %v1330, 127
        %v1402 = vpop.permute.xlu0 %1401
        %1403 = vrot.lane.b32.xlu0 %v1335, 127
        %v1404 = vpop.permute.xlu0 %1403
        %1405 = vrot.lane.b32.xlu0 %v1338, 127
        %v1406 = vpop.permute.xlu0 %1405
        %1415 = vrot.lane.b32.xlu0 %v1311, 126
        %v1416 = vpop.permute.xlu0 %1415
        %1417 = vrot.lane.b32.xlu0 %v1314, 126
        %v1418 = vpop.permute.xlu0 %1417
        %1419 = vrot.lane.b32.xlu0 %v1319, 126
        %v1420 = vpop.permute.xlu0 %1419
        %1421 = vrot.lane.b32.xlu0 %v1322, 126
        %v1422 = vpop.permute.xlu0 %1421
        %1423 = vrot.lane.b32.xlu0 %v1327, 126
        %v1424 = vpop.permute.xlu0 %1423
        %1425 = vrot.lane.b32.xlu0 %v1330, 126
        %v1426 = vpop.permute.xlu0 %1425
        %1427 = vrot.lane.b32.xlu0 %v1335, 126
        %v1428 = vpop.permute.xlu0 %1427
        %1429 = vrot.lane.b32.xlu0 %v1338, 126
        %v1430 = vpop.permute.xlu0 %1429
        %1439 = vrot.lane.b32.xlu0 %v1311, 125
        %v1440 = vpop.permute.xlu0 %1439
        %1441 = vrot.lane.b32.xlu0 %v1314, 125
        %v1442 = vpop.permute.xlu0 %1441
        %1443 = vrot.lane.b32.xlu0 %v1319, 125
        %v1444 = vpop.permute.xlu0 %1443
        %1445 = vrot.lane.b32.xlu0 %v1322, 125
        %v1446 = vpop.permute.xlu0 %1445
        %1447 = vrot.lane.b32.xlu0 %v1327, 125
        %v1448 = vpop.permute.xlu0 %1447
        %1449 = vrot.lane.b32.xlu0 %v1330, 125
        %v1450 = vpop.permute.xlu0 %1449
        %1451 = vrot.lane.b32.xlu0 %v1335, 125
        %v1452 = vpop.permute.xlu0 %1451
        %1453 = vrot.lane.b32.xlu0 %v1338, 125
        %v1454 = vpop.permute.xlu0 %1453
        %s1463 = sld [smem:[#allocation2]]
        %s1464 = sld [smem:[#allocation3]]
        %s1465 = smul.f32 %s1463, 0.35355338
        %vm1466 = vcmask 64512
        %v1468 = vsel %vm1466, %v1351, 0
        %v1471 = vsel %vm1466, %v1365, 0
        %1473 = vmatprep.subr.bf16.mxu0 0
        %1474 = vmatpush1.bf16.xpose.msra.mxu0 %v1471
        %1475 = vmatprep.subr.bf16.mxu0 0
        %1476 = vmatpush1.bf16.xpose.msra.mxu0 0
        %1477 = vmatprep.subr.bf16.mxu0 0
        %1478 = vmatpush1.bf16.xpose.msra.mxu0 0
        %1479 = vmatprep.subr.bf16.mxu0 0
        %1480 = vmatpush1.bf16.xpose.msra.mxu0 0
        %1481 = vmatprep.subr.bf16.mxu0 0
        %1482 = vmatpush1.bf16.xpose.msra.mxu0 0
        %1483 = vmatprep.subr.bf16.mxu0 0
        %1484 = vmatpush1.bf16.xpose.msra.mxu0 0
        %1485 = vmatprep.subr.bf16.mxu0 0
        %1486 = vmatpush1.bf16.xpose.msra.mxu0 0
        %1487 = vmatprep.subr.bf16.mxu0 0
        %1488 = vmatpush1.bf16.xpose.msra.mxu0 0
        %1489 = vmatprep.subr.bf16.mxu0 0
        %1490 = vmatpush1.bf16.xpose.msra.mxu0 0
        %1491 = vmatprep.subr.bf16.mxu0 0
        %1492 = vmatpush1.bf16.xpose.msra.mxu0 0
        %1493 = vmatprep.subr.bf16.mxu0 0
        %1494 = vmatpush1.bf16.xpose.msra.mxu0 0
        %1495 = vmatprep.subr.bf16.mxu0 0
        %1496 = vmatpush1.bf16.xpose.msra.mxu0 0
        %1497 = vmatprep.subr.bf16.mxu0 0
        %1498 = vmatpush1.bf16.xpose.msra.mxu0 0
        %1499 = vmatprep.subr.bf16.mxu0 0
        %1500 = vmatpush1.bf16.xpose.msra.mxu0 0
        %1501 = vmatprep.subr.bf16.mxu0 0
        %1502 = vmatpush1.bf16.xpose.msra.mxu0 0
        %1503 = vmatprep.subr.bf16.mxu0 0
        %1504 = vmatpush1.bf16.xpose.msra.mxu0 0
        %1505 = vmatprep.mubr.bf16.mxu0 0
        %1506 = vmatmul.mubr.bf16.gmra.mrb[0].mxu0 %v1468
        %v1507 = vpop.f32.mrb[0].mxu0
        %v1508 = vadd.f32 0.0, %v1507
        %v1509 = vpop.f32.mrb[0].mxu0
        %v1510 = vpop.f32.mrb[0].mxu0
        %v1511 = vpop.f32.mrb[0].mxu0
        %1512 = vdwg.mxu0
        %v1514 = vsel %vm1466, %v1352, 0
        %v1517 = vsel %vm1466, %v1366, 0
        %1519 = vmatprep.subr.bf16.mxu0 0
        %1520 = vmatpush1.bf16.xpose.msra.mxu0 %v1517
        %1521 = vmatprep.subr.bf16.mxu0 0
        %1522 = vmatpush1.bf16.xpose.msra.mxu0 0
        %1523 = vmatprep.subr.bf16.mxu0 0
        %1524 = vmatpush1.bf16.xpose.msra.mxu0 0
        %1525 = vmatprep.subr.bf16.mxu0 0
        %1526 = vmatpush1.bf16.xpose.msra.mxu0 0
        %1527 = vmatprep.subr.bf16.mxu0 0
        %1528 = vmatpush1.bf16.xpose.msra.mxu0 0
        %1529 = vmatprep.subr.bf16.mxu0 0
        %1530 = vmatpush1.bf16.xpose.msra.mxu0 0
        %1531 = vmatprep.subr.bf16.mxu0 0
        %1532 = vmatpush1.bf16.xpose.msra.mxu0 0
        %1533 = vmatprep.subr.bf16.mxu0 0
        %1534 = vmatpush1.bf16.xpose.msra.mxu0 0
        %1535 = vmatprep.subr.bf16.mxu0 0
        %1536 = vmatpush1.bf16.xpose.msra.mxu0 0
        %1537 = vmatprep.subr.bf16.mxu0 0
        %1538 = vmatpush1.bf16.xpose.msra.mxu0 0
        %1539 = vmatprep.subr.bf16.mxu0 0
        %1540 = vmatpush1.bf16.xpose.msra.mxu0 0
        %1541 = vmatprep.subr.bf16.mxu0 0
        %1542 = vmatpush1.bf16.xpose.msra.mxu0 0
        %1543 = vmatprep.subr.bf16.mxu0 0
        %1544 = vmatpush1.bf16.xpose.msra.mxu0 0
        %1545 = vmatprep.subr.bf16.mxu0 0
        %1546 = vmatpush1.bf16.xpose.msra.mxu0 0
        %1547 = vmatprep.subr.bf16.mxu0 0
        %1548 = vmatpush1.bf16.xpose.msra.mxu0 0
        %1549 = vmatprep.subr.bf16.mxu0 0
        %1550 = vmatpush1.bf16.xpose.msra.mxu0 0
        %1551 = vmatprep.mubr.bf16.mxu0 0
        %1552 = vmatmul.mubr.bf16.gmra.mrb[0].mxu0 %v1514
        %v1553 = vpop.f32.mrb[0].mxu0
        %v1554 = vadd.f32 0.0, %v1553
        %v1555 = vpop.f32.mrb[0].mxu0
        %v1556 = vpop.f32.mrb[0].mxu0
        %v1557 = vpop.f32.mrb[0].mxu0
        %1558 = vdwg.mxu0
        %v1560 = vsel %vm1466, %v1353, 0
        %v1563 = vsel %vm1466, %v1367, 0
        %1565 = vmatprep.subr.bf16.mxu0 0
        %1566 = vmatpush1.bf16.xpose.msra.mxu0 %v1563
        %1567 = vmatprep.subr.bf16.mxu0 0
        %1568 = vmatpush1.bf16.xpose.msra.mxu0 0
        %1569 = vmatprep.subr.bf16.mxu0 0
        %1570 = vmatpush1.bf16.xpose.msra.mxu0 0
        %1571 = vmatprep.subr.bf16.mxu0 0
        %1572 = vmatpush1.bf16.xpose.msra.mxu0 0
        %1573 = vmatprep.subr.bf16.mxu0 0
        %1574 = vmatpush1.bf16.xpose.msra.mxu0 0
        %1575 = vmatprep.subr.bf16.mxu0 0
        %1576 = vmatpush1.bf16.xpose.msra.mxu0 0
        %1577 = vmatprep.subr.bf16.mxu0 0
        %1578 = vmatpush1.bf16.xpose.msra.mxu0 0
        %1579 = vmatprep.subr.bf16.mxu0 0
        %1580 = vmatpush1.bf16.xpose.msra.mxu0 0
        %1581 = vmatprep.subr.bf16.mxu0 0
        %1582 = vmatpush1.bf16.xpose.msra.mxu0 0
        %1583 = vmatprep.subr.bf16.mxu0 0
        %1584 = vmatpush1.bf16.xpose.msra.mxu0 0
        %1585 = vmatprep.subr.bf16.mxu0 0
        %1586 = vmatpush1.bf16.xpose.msra.mxu0 0
        %1587 = vmatprep.subr.bf16.mxu0 0
        %1588 = vmatpush1.bf16.xpose.msra.mxu0 0
        %1589 = vmatprep.subr.bf16.mxu0 0
        %1590 = vmatpush1.bf16.xpose.msra.mxu0 0
        %1591 = vmatprep.subr.bf16.mxu0 0
        %1592 = vmatpush1.bf16.xpose.msra.mxu0 0
        %1593 = vmatprep.subr.bf16.mxu0 0
        %1594 = vmatpush1.bf16.xpose.msra.mxu0 0
        %1595 = vmatprep.subr.bf16.mxu0 0
        %1596 = vmatpush1.bf16.xpose.msra.mxu0 0
        %1597 = vmatprep.mubr.bf16.mxu0 0
        %1598 = vmatmul.mubr.bf16.gmra.mrb[0].mxu0 %v1560
        %v1599 = vpop.f32.mrb[0].mxu0
        %v1600 = vadd.f32 0.0, %v1599
        %v1601 = vpop.f32.mrb[0].mxu0
        %v1602 = vpop.f32.mrb[0].mxu0
        %v1603 = vpop.f32.mrb[0].mxu0
        %1604 = vdwg.mxu0
        %v1606 = vsel %vm1466, %v1354, 0
        %v1609 = vsel %vm1466, %v1368, 0
        %1611 = vmatprep.subr.bf16.mxu0 0
        %1612 = vmatpush1.bf16.xpose.msra.mxu0 %v1609
        %1613 = vmatprep.subr.bf16.mxu0 0
        %1614 = vmatpush1.bf16.xpose.msra.mxu0 0
        %1615 = vmatprep.subr.bf16.mxu0 0
        %1616 = vmatpush1.bf16.xpose.msra.mxu0 0
        %1617 = vmatprep.subr.bf16.mxu0 0
        %1618 = vmatpush1.bf16.xpose.msra.mxu0 0
        %1619 = vmatprep.subr.bf16.mxu0 0
        %1620 = vmatpush1.bf16.xpose.msra.mxu0 0
        %1621 = vmatprep.subr.bf16.mxu0 0
        %1622 = vmatpush1.bf16.xpose.msra.mxu0 0
        %1623 = vmatprep.subr.bf16.mxu0 0
        %1624 = vmatpush1.bf16.xpose.msra.mxu0 0
        %1625 = vmatprep.subr.bf16.mxu0 0
        %1626 = vmatpush1.bf16.xpose.msra.mxu0 0
        %1627 = vmatprep.subr.bf16.mxu0 0
        %1628 = vmatpush1.bf16.xpose.msra.mxu0 0
        %1629 = vmatprep.subr.bf16.mxu0 0
        %1630 = vmatpush1.bf16.xpose.msra.mxu0 0
        %1631 = vmatprep.subr.bf16.mxu0 0
        %1632 = vmatpush1.bf16.xpose.msra.mxu0 0
        %1633 = vmatprep.subr.bf16.mxu0 0
        %1634 = vmatpush1.bf16.xpose.msra.mxu0 0
        %1635 = vmatprep.subr.bf16.mxu0 0
        %1636 = vmatpush1.bf16.xpose.msra.mxu0 0
        %1637 = vmatprep.subr.bf16.mxu0 0
        %1638 = vmatpush1.bf16.xpose.msra.mxu0 0
        %1639 = vmatprep.subr.bf16.mxu0 0
        %1640 = vmatpush1.bf16.xpose.msra.mxu0 0
        %1641 = vmatprep.subr.bf16.mxu0 0
        %1642 = vmatpush1.bf16.xpose.msra.mxu0 0
        %1643 = vmatprep.mubr.bf16.mxu0 0
        %1644 = vmatmul.mubr.bf16.gmra.mrb[0].mxu0 %v1606
        %v1645 = vpop.f32.mrb[0].mxu0
        %v1646 = vadd.f32 0.0, %v1645
        %v1647 = vpop.f32.mrb[0].mxu0
        %v1648 = vpop.f32.mrb[0].mxu0
        %v1649 = vpop.f32.mrb[0].mxu0
        %1650 = vdwg.mxu0
        %v1651 = vstv %s1465
        %v1652 = vmul.f32 %v1651, %v1508
        %v1653 = vmul.f32 %v1651, %v1554
        %v1654 = vmul.f32 %v1651, %v1600
        %v1655 = vmul.f32 %v1651, %v1646
        %v1656 = vstv %s1464
        %v1657 = vmul.f32 %v1656, %v1311
        %v1658 = vmul.f32 %v1656, %v1314
        %v1659 = vmul.f32 %v1656, %v1319
        %v1660 = vmul.f32 %v1656, %v1322
        %v1661 = vmul.f32 %v1656, %v1327
        %v1662 = vmul.f32 %v1656, %v1330
        %v1663 = vmul.f32 %v1656, %v1335
        %v1664 = vmul.f32 %v1656, %v1338
        %v1665 = vmul.f32 %v1656, %v1392
        %v1666 = vmul.f32 %v1656, %v1394
        %v1667 = vmul.f32 %v1656, %v1396
        %v1668 = vmul.f32 %v1656, %v1398
        %v1669 = vmul.f32 %v1656, %v1400
        %v1670 = vmul.f32 %v1656, %v1402
        %v1671 = vmul.f32 %v1656, %v1404
        %v1672 = vmul.f32 %v1656, %v1406
        %v1673 = vmul.f32 %v1656, %v1416
        %v1674 = vmul.f32 %v1656, %v1418
        %v1675 = vmul.f32 %v1656, %v1420
        %v1676 = vmul.f32 %v1656, %v1422
        %v1677 = vmul.f32 %v1656, %v1424
        %v1678 = vmul.f32 %v1656, %v1426
        %v1679 = vmul.f32 %v1656, %v1428
        %v1680 = vmul.f32 %v1656, %v1430
        %v1681 = vmul.f32 %v1656, %v1440
        %v1682 = vmul.f32 %v1656, %v1442
        %v1683 = vmul.f32 %v1656, %v1444
        %v1684 = vmul.f32 %v1656, %v1446
        %v1685 = vmul.f32 %v1656, %v1448
        %v1686 = vmul.f32 %v1656, %v1450
        %v1687 = vmul.f32 %v1656, %v1452
        %v1688 = vmul.f32 %v1656, %v1454
        %1721 = vset.pattern.permute.xlu0 0
        %1722 = vperm.xlu0 %1721, %v1657
        %v1723 = vpop.permute.xlu0 %1722
        %1724 = vset.pattern.permute.xlu0 0
        %1725 = vperm.xlu0 %1724, %v1658
        %v1726 = vpop.permute.xlu0 %1725
        %1727 = vset.pattern.permute.xlu0 0
        %1728 = vperm.xlu0 %1727, %v1659
        %v1729 = vpop.permute.xlu0 %1728
        %1730 = vset.pattern.permute.xlu0 0
        %1731 = vperm.xlu0 %1730, %v1660
        %v1732 = vpop.permute.xlu0 %1731
        %1733 = vset.pattern.permute.xlu0 0
        %1734 = vperm.xlu0 %1733, %v1661
        %v1735 = vpop.permute.xlu0 %1734
        %1736 = vset.pattern.permute.xlu0 0
        %1737 = vperm.xlu0 %1736, %v1662
        %v1738 = vpop.permute.xlu0 %1737
        %1739 = vset.pattern.permute.xlu0 0
        %1740 = vperm.xlu0 %1739, %v1663
        %v1741 = vpop.permute.xlu0 %1740
        %1742 = vset.pattern.permute.xlu0 0
        %1743 = vperm.xlu0 %1742, %v1664
        %v1744 = vpop.permute.xlu0 %1743
        %1745 = vset.pattern.permute.xlu0 0
        %1746 = vperm.xlu0 %1745, %v1665
        %v1747 = vpop.permute.xlu0 %1746
        %1748 = vset.pattern.permute.xlu0 0
        %1749 = vperm.xlu0 %1748, %v1666
        %v1750 = vpop.permute.xlu0 %1749
        %1751 = vset.pattern.permute.xlu0 0
        %1752 = vperm.xlu0 %1751, %v1667
        %v1753 = vpop.permute.xlu0 %1752
        %1754 = vset.pattern.permute.xlu0 0
        %1755 = vperm.xlu0 %1754, %v1668
        %v1756 = vpop.permute.xlu0 %1755
        %1757 = vset.pattern.permute.xlu0 0
        %1758 = vperm.xlu0 %1757, %v1669
        %v1759 = vpop.permute.xlu0 %1758
        %1760 = vset.pattern.permute.xlu0 0
        %1761 = vperm.xlu0 %1760, %v1670
        %v1762 = vpop.permute.xlu0 %1761
        %1763 = vset.pattern.permute.xlu0 0
        %1764 = vperm.xlu0 %1763, %v1671
        %v1765 = vpop.permute.xlu0 %1764
        %1766 = vset.pattern.permute.xlu0 0
        %1767 = vperm.xlu0 %1766, %v1672
        %v1768 = vpop.permute.xlu0 %1767
        %1769 = vset.pattern.permute.xlu0 0
        %1770 = vperm.xlu0 %1769, %v1673
        %v1771 = vpop.permute.xlu0 %1770
        %1772 = vset.pattern.permute.xlu0 0
        %1773 = vperm.xlu0 %1772, %v1674
        %v1774 = vpop.permute.xlu0 %1773
        %1775 = vset.pattern.permute.xlu0 0
        %1776 = vperm.xlu0 %1775, %v1675
        %v1777 = vpop.permute.xlu0 %1776
        %1778 = vset.pattern.permute.xlu0 0
        %1779 = vperm.xlu0 %1778, %v1676
        %v1780 = vpop.permute.xlu0 %1779
        %1781 = vset.pattern.permute.xlu0 0
        %1782 = vperm.xlu0 %1781, %v1677
        %v1783 = vpop.permute.xlu0 %1782
        %1784 = vset.pattern.permute.xlu0 0
        %1785 = vperm.xlu0 %1784, %v1678
        %v1786 = vpop.permute.xlu0 %1785
        %1787 = vset.pattern.permute.xlu0 0
        %1788 = vperm.xlu0 %1787, %v1679
        %v1789 = vpop.permute.xlu0 %1788
        %1790 = vset.pattern.permute.xlu0 0
        %1791 = vperm.xlu0 %1790, %v1680
        %v1792 = vpop.permute.xlu0 %1791
        %1793 = vset.pattern.permute.xlu0 0
        %1794 = vperm.xlu0 %1793, %v1681
        %v1795 = vpop.permute.xlu0 %1794
        %1796 = vset.pattern.permute.xlu0 0
        %1797 = vperm.xlu0 %1796, %v1682
        %v1798 = vpop.permute.xlu0 %1797
        %1799 = vset.pattern.permute.xlu0 0
        %1800 = vperm.xlu0 %1799, %v1683
        %v1801 = vpop.permute.xlu0 %1800
        %1802 = vset.pattern.permute.xlu0 0
        %1803 = vperm.xlu0 %1802, %v1684
        %v1804 = vpop.permute.xlu0 %1803
        %1805 = vset.pattern.permute.xlu0 0
        %1806 = vperm.xlu0 %1805, %v1685
        %v1807 = vpop.permute.xlu0 %1806
        %1808 = vset.pattern.permute.xlu0 0
        %1809 = vperm.xlu0 %1808, %v1686
        %v1810 = vpop.permute.xlu0 %1809
        %1811 = vset.pattern.permute.xlu0 0
        %1812 = vperm.xlu0 %1811, %v1687
        %v1813 = vpop.permute.xlu0 %1812
        %1814 = vset.pattern.permute.xlu0 0
        %1815 = vperm.xlu0 %1814, %v1688
        %v1816 = vpop.permute.xlu0 %1815
        %v1817 = vlaneseq
        %v1818 = vand.u32 %v1817, 127
        %v1819 = vlaneseq
        %v1820 = vshrl.u32 %v1819, 7
        %v1821 = vsub.s32 %v1818, %v1820
        %v1822 = vrot.slane %v1723, %v1821
        %v1823 = vlaneseq
        %v1824 = vshrl.u32 %v1823, 7
        %v1825 = vsub.s32 %v1818, %v1824
        %v1826 = vrot.slane %v1726, %v1825
        %v1827 = vlaneseq
        %v1828 = vshrl.u32 %v1827, 7
        %v1829 = vsub.s32 %v1818, %v1828
        %v1830 = vrot.slane %v1729, %v1829
        %v1831 = vlaneseq
        %v1832 = vshrl.u32 %v1831, 7
        %v1833 = vsub.s32 %v1818, %v1832
        %v1834 = vrot.slane %v1732, %v1833
        %v1835 = vlaneseq
        %v1836 = vshrl.u32 %v1835, 7
        %v1837 = vsub.s32 %v1818, %v1836
        %v1838 = vrot.slane %v1735, %v1837
        %v1839 = vlaneseq
        %v1840 = vshrl.u32 %v1839, 7
        %v1841 = vsub.s32 %v1818, %v1840
        %v1842 = vrot.slane %v1738, %v1841
        %v1843 = vlaneseq
        %v1844 = vshrl.u32 %v1843, 7
        %v1845 = vsub.s32 %v1818, %v1844
        %v1846 = vrot.slane %v1741, %v1845
        %v1847 = vlaneseq
        %v1848 = vshrl.u32 %v1847, 7
        %v1849 = vsub.s32 %v1818, %v1848
        %v1850 = vrot.slane %v1744, %v1849
        %v1851 = vlaneseq
        %v1852 = vshrl.u32 %v1851, 7
        %v1853 = vsub.s32 %v1818, %v1852
        %v1854 = vrot.slane %v1747, %v1853
        %v1855 = vlaneseq
        %v1856 = vshrl.u32 %v1855, 7
        %v1857 = vsub.s32 %v1818, %v1856
        %v1858 = vrot.slane %v1750, %v1857
        %v1859 = vlaneseq
        %v1860 = vshrl.u32 %v1859, 7
        %v1861 = vsub.s32 %v1818, %v1860
        %v1862 = vrot.slane %v1753, %v1861
        %v1863 = vlaneseq
        %v1864 = vshrl.u32 %v1863, 7
        %v1865 = vsub.s32 %v1818, %v1864
        %v1866 = vrot.slane %v1756, %v1865
        %v1867 = vlaneseq
        %v1868 = vshrl.u32 %v1867, 7
        %v1869 = vsub.s32 %v1818, %v1868
        %v1870 = vrot.slane %v1759, %v1869
        %v1871 = vlaneseq
        %v1872 = vshrl.u32 %v1871, 7
        %v1873 = vsub.s32 %v1818, %v1872
        %v1874 = vrot.slane %v1762, %v1873
        %v1875 = vlaneseq
        %v1876 = vshrl.u32 %v1875, 7
        %v1877 = vsub.s32 %v1818, %v1876
        %v1878 = vrot.slane %v1765, %v1877
        %v1879 = vlaneseq
        %v1880 = vshrl.u32 %v1879, 7
        %v1881 = vsub.s32 %v1818, %v1880
        %v1882 = vrot.slane %v1768, %v1881
        %v1883 = vlaneseq
        %v1884 = vshrl.u32 %v1883, 7
        %v1885 = vsub.s32 %v1818, %v1884
        %v1886 = vrot.slane %v1771, %v1885
        %v1887 = vlaneseq
        %v1888 = vshrl.u32 %v1887, 7
        %v1889 = vsub.s32 %v1818, %v1888
        %v1890 = vrot.slane %v1774, %v1889
        %v1891 = vlaneseq
        %v1892 = vshrl.u32 %v1891, 7
        %v1893 = vsub.s32 %v1818, %v1892
        %v1894 = vrot.slane %v1777, %v1893
        %v1895 = vlaneseq
        %v1896 = vshrl.u32 %v1895, 7
        %v1897 = vsub.s32 %v1818, %v1896
        %v1898 = vrot.slane %v1780, %v1897
        %v1899 = vlaneseq
        %v1900 = vshrl.u32 %v1899, 7
        %v1901 = vsub.s32 %v1818, %v1900
        %v1902 = vrot.slane %v1783, %v1901
        %v1903 = vlaneseq
        %v1904 = vshrl.u32 %v1903, 7
        %v1905 = vsub.s32 %v1818, %v1904
        %v1906 = vrot.slane %v1786, %v1905
        %v1907 = vlaneseq
        %v1908 = vshrl.u32 %v1907, 7
        %v1909 = vsub.s32 %v1818, %v1908
        %v1910 = vrot.slane %v1789, %v1909
        %v1911 = vlaneseq
        %v1912 = vshrl.u32 %v1911, 7
        %v1913 = vsub.s32 %v1818, %v1912
        %v1914 = vrot.slane %v1792, %v1913
        %v1915 = vlaneseq
        %v1916 = vshrl.u32 %v1915, 7
        %v1917 = vsub.s32 %v1818, %v1916
        %v1918 = vrot.slane %v1795, %v1917
        %v1919 = vlaneseq
        %v1920 = vshrl.u32 %v1919, 7
        %v1921 = vsub.s32 %v1818, %v1920
        %v1922 = vrot.slane %v1798, %v1921
        %v1923 = vlaneseq
        %v1924 = vshrl.u32 %v1923, 7
        %v1925 = vsub.s32 %v1818, %v1924
        %v1926 = vrot.slane %v1801, %v1925
        %v1927 = vlaneseq
        %v1928 = vshrl.u32 %v1927, 7
        %v1929 = vsub.s32 %v1818, %v1928
        %v1930 = vrot.slane %v1804, %v1929
        %v1931 = vlaneseq
        %v1932 = vshrl.u32 %v1931, 7
        %v1933 = vsub.s32 %v1818, %v1932
        %v1934 = vrot.slane %v1807, %v1933
        %v1935 = vlaneseq
        %v1936 = vshrl.u32 %v1935, 7
        %v1937 = vsub.s32 %v1818, %v1936
        %v1938 = vrot.slane %v1810, %v1937
        %v1939 = vlaneseq
        %v1940 = vshrl.u32 %v1939, 7
        %v1941 = vsub.s32 %v1818, %v1940
        %v1942 = vrot.slane %v1813, %v1941
        %v1943 = vlaneseq
        %v1944 = vshrl.u32 %v1943, 7
        %v1945 = vsub.s32 %v1818, %v1944
        %v1946 = vrot.slane %v1816, %v1945
        %vm1947 = vcmask 1041409
        %v1948 = vsel %vm1947, %v1826, %v1822
        %vm1949 = vcmask 1042434
        %v1950 = vsel %vm1949, %v1830, %v1948
        %vm1951 = vcmask 1043459
        %v1952 = vsel %vm1951, %v1834, %v1950
        %vm1953 = vcmask 1044484
        %v1954 = vsel %vm1953, %v1838, %v1952
        %vm1955 = vcmask 1045509
        %v1956 = vsel %vm1955, %v1842, %v1954
        %vm1957 = vcmask 1046534
        %v1958 = vsel %vm1957, %v1846, %v1956
        %vm1959 = vcmask 1047559
        %v1960 = vsel %vm1959, %v1850, %v1958
        %v1961 = vsel %vm1947, %v1858, %v1854
        %v1962 = vsel %vm1949, %v1862, %v1961
        %v1963 = vsel %vm1951, %v1866, %v1962
        %v1964 = vsel %vm1953, %v1870, %v1963
        %v1965 = vsel %vm1955, %v1874, %v1964
        %v1966 = vsel %vm1957, %v1878, %v1965
        %v1967 = vsel %vm1959, %v1882, %v1966
        %v1968 = vsel %vm1947, %v1890, %v1886
        %v1969 = vsel %vm1949, %v1894, %v1968
        %v1970 = vsel %vm1951, %v1898, %v1969
        %v1971 = vsel %vm1953, %v1902, %v1970
        %v1972 = vsel %vm1955, %v1906, %v1971
        %v1973 = vsel %vm1957, %v1910, %v1972
        %v1974 = vsel %vm1959, %v1914, %v1973
        %v1975 = vsel %vm1947, %v1922, %v1918
        %v1976 = vsel %vm1949, %v1926, %v1975
        %v1977 = vsel %vm1951, %v1930, %v1976
        %v1978 = vsel %vm1953, %v1934, %v1977
        %v1979 = vsel %vm1955, %v1938, %v1978
        %v1980 = vsel %vm1957, %v1942, %v1979
        %v1981 = vsel %vm1959, %v1946, %v1980
        %v1986 = vadd.f32 %v1652, %v1960
        %v1987 = vadd.f32 %v1653, %v1967
        %v1988 = vadd.f32 %v1654, %v1974
        %v1989 = vadd.f32 %v1655, %v1981
        %v1990 = vsel %vm1466, %v1986, -inf
        %1991 = vmax.xlane.f32.xlu0 %v1990
        %v1992 = vpop.xlane.xlu0 %1991
        %v1993 = vsel %vm1466, %v1987, -inf
        %1994 = vmax.xlane.f32.xlu0 %v1993
        %v1995 = vpop.xlane.xlu0 %1994
        %v1996 = vsel %vm1466, %v1988, -inf
        %1997 = vmax.xlane.f32.xlu0 %v1996
        %v1998 = vpop.xlane.xlu0 %1997
        %v1999 = vsel %vm1466, %v1989, -inf
        %2000 = vmax.xlane.f32.xlu0 %v1999
        %v2001 = vpop.xlane.xlu0 %2000
        %v2002 = vsub.f32 %v1986, %v1992
        %v2003 = vsub.f32 %v1987, %v1995
        %v2004 = vsub.f32 %v1988, %v1998
        %v2005 = vsub.f32 %v1989, %v2001
        %v2006 = vmul.f32 %v2002, 1.442695
        %v2007 = vpow.pop %v2006
        %v2008 = vmul.f32 %v2003, 1.442695
        %v2009 = vpow.pop %v2008
        %v2010 = vmul.f32 %v2004, 1.442695
        %v2011 = vpow.pop %v2010
        %v2012 = vmul.f32 %v2005, 1.442695
        %v2013 = vpow.pop %v2012
        %v2014 = vsel %vm1466, %v2007, 0.0
        %2015 = vadd.xlane.f32.xlu0 %v2014
        %v2016 = vpop.xlane.xlu0 %2015
        %v2017 = vsel %vm1466, %v2009, 0.0
        %2018 = vadd.xlane.f32.xlu0 %v2017
        %v2019 = vpop.xlane.xlu0 %2018
        %v2020 = vsel %vm1466, %v2011, 0.0
        %2021 = vadd.xlane.f32.xlu0 %v2020
        %v2022 = vpop.xlane.xlu0 %2021
        %v2023 = vsel %vm1466, %v2013, 0.0
        %2024 = vadd.xlane.f32.xlu0 %v2023
        %v2025 = vpop.xlane.xlu0 %2024
        %v2026 = vrcp.pop %v2016
        %v2027 = vrcp.pop %v2019
        %v2028 = vrcp.pop %v2022
        %v2029 = vrcp.pop %v2025
        %v2030 = vmul.f32 %v2007, %v2026
        %v2031 = vmul.f32 %v2009, %v2027
        %v2032 = vmul.f32 %v2011, %v2028
        %v2033 = vmul.f32 %v2013, %v2029
        %v2034 = vpack.c.bf16 %v2030, %v2030
        %v2035 = vpack.c.bf16 %v2031, %v2031
        %v2036 = vpack.c.bf16 %v2032, %v2032
        %v2037 = vpack.c.bf16 %v2033, %v2033
        %v2039 = vsel %vm1466, %v2034, 0
        %vm2041 = vcmask 1043456
        %v2043 = vsel %vm2041, %v1379, 0
        %2045 = vmatprep.subr.bf16.mxu0 0
        %2046 = vmatpush1.bf16.msra.mxu0 %v2043
        %2047 = vmatprep.subr.bf16.mxu0 0
        %2048 = vmatpush1.bf16.msra.mxu0 0
        %2049 = vmatprep.subr.bf16.mxu0 0
        %2050 = vmatpush1.bf16.msra.mxu0 0
        %2051 = vmatprep.subr.bf16.mxu0 0
        %2052 = vmatpush1.bf16.msra.mxu0 0
        %2053 = vmatprep.subr.bf16.mxu0 0
        %2054 = vmatpush1.bf16.msra.mxu0 0
        %2055 = vmatprep.subr.bf16.mxu0 0
        %2056 = vmatpush1.bf16.msra.mxu0 0
        %2057 = vmatprep.subr.bf16.mxu0 0
        %2058 = vmatpush1.bf16.msra.mxu0 0
        %2059 = vmatprep.subr.bf16.mxu0 0
        %2060 = vmatpush1.bf16.msra.mxu0 0
        %2061 = vmatprep.subr.bf16.mxu0 0
        %2062 = vmatpush1.bf16.msra.mxu0 0
        %2063 = vmatprep.subr.bf16.mxu0 0
        %2064 = vmatpush1.bf16.msra.mxu0 0
        %2065 = vmatprep.subr.bf16.mxu0 0
        %2066 = vmatpush1.bf16.msra.mxu0 0
        %2067 = vmatprep.subr.bf16.mxu0 0
        %2068 = vmatpush1.bf16.msra.mxu0 0
        %2069 = vmatprep.subr.bf16.mxu0 0
        %2070 = vmatpush1.bf16.msra.mxu0 0
        %2071 = vmatprep.subr.bf16.mxu0 0
        %2072 = vmatpush1.bf16.msra.mxu0 0
        %2073 = vmatprep.subr.bf16.mxu0 0
        %2074 = vmatpush1.bf16.msra.mxu0 0
        %2075 = vmatprep.subr.bf16.mxu0 0
        %2076 = vmatpush1.bf16.msra.mxu0 0
        %2077 = vmatprep.mubr.bf16.mxu0 0
        %2078 = vmatmul.mubr.bf16.gmra.mrb[0].mxu0 %v2039
        %v2079 = vpop.f32.mrb[0].mxu0
        %v2080 = vadd.f32 0.0, %v2079
        %v2081 = vpop.f32.mrb[0].mxu0
        %v2082 = vpop.f32.mrb[0].mxu0
        %v2083 = vpop.f32.mrb[0].mxu0
        %2084 = vdwg.mxu0
        %v2086 = vsel %vm1466, %v2035, 0
        %v2089 = vsel %vm2041, %v1380, 0
        %2091 = vmatprep.subr.bf16.mxu0 0
        %2092 = vmatpush1.bf16.msra.mxu0 %v2089
        %2093 = vmatprep.subr.bf16.mxu0 0
        %2094 = vmatpush1.bf16.msra.mxu0 0
        %2095 = vmatprep.subr.bf16.mxu0 0
        %2096 = vmatpush1.bf16.msra.mxu0 0
        %2097 = vmatprep.subr.bf16.mxu0 0
        %2098 = vmatpush1.bf16.msra.mxu0 0
        %2099 = vmatprep.subr.bf16.mxu0 0
        %2100 = vmatpush1.bf16.msra.mxu0 0
        %2101 = vmatprep.subr.bf16.mxu0 0
        %2102 = vmatpush1.bf16.msra.mxu0 0
        %2103 = vmatprep.subr.bf16.mxu0 0
        %2104 = vmatpush1.bf16.msra.mxu0 0
        %2105 = vmatprep.subr.bf16.mxu0 0
        %2106 = vmatpush1.bf16.msra.mxu0 0
        %2107 = vmatprep.subr.bf16.mxu0 0
        %2108 = vmatpush1.bf16.msra.mxu0 0
        %2109 = vmatprep.subr.bf16.mxu0 0
        %2110 = vmatpush1.bf16.msra.mxu0 0
        %2111 = vmatprep.subr.bf16.mxu0 0
        %2112 = vmatpush1.bf16.msra.mxu0 0
        %2113 = vmatprep.subr.bf16.mxu0 0
        %2114 = vmatpush1.bf16.msra.mxu0 0
        %2115 = vmatprep.subr.bf16.mxu0 0
        %2116 = vmatpush1.bf16.msra.mxu0 0
        %2117 = vmatprep.subr.bf16.mxu0 0
        %2118 = vmatpush1.bf16.msra.mxu0 0
        %2119 = vmatprep.subr.bf16.mxu0 0
        %2120 = vmatpush1.bf16.msra.mxu0 0
        %2121 = vmatprep.subr.bf16.mxu0 0
        %2122 = vmatpush1.bf16.msra.mxu0 0
        %2123 = vmatprep.mubr.bf16.mxu0 0
        %2124 = vmatmul.mubr.bf16.gmra.mrb[0].mxu0 %v2086
        %v2125 = vpop.f32.mrb[0].mxu0
        %v2126 = vadd.f32 0.0, %v2125
        %v2127 = vpop.f32.mrb[0].mxu0
        %v2128 = vpop.f32.mrb[0].mxu0
        %v2129 = vpop.f32.mrb[0].mxu0
        %2130 = vdwg.mxu0
        %v2132 = vsel %vm1466, %v2036, 0
        %v2135 = vsel %vm2041, %v1381, 0
        %2137 = vmatprep.subr.bf16.mxu0 0
        %2138 = vmatpush1.bf16.msra.mxu0 %v2135
        %2139 = vmatprep.subr.bf16.mxu0 0
        %2140 = vmatpush1.bf16.msra.mxu0 0
        %2141 = vmatprep.subr.bf16.mxu0 0
        %2142 = vmatpush1.bf16.msra.mxu0 0
        %2143 = vmatprep.subr.bf16.mxu0 0
        %2144 = vmatpush1.bf16.msra.mxu0 0
        %2145 = vmatprep.subr.bf16.mxu0 0
        %2146 = vmatpush1.bf16.msra.mxu0 0
        %2147 = vmatprep.subr.bf16.mxu0 0
        %2148 = vmatpush1.bf16.msra.mxu0 0
        %2149 = vmatprep.subr.bf16.mxu0 0
        %2150 = vmatpush1.bf16.msra.mxu0 0
        %2151 = vmatprep.subr.bf16.mxu0 0
        %2152 = vmatpush1.bf16.msra.mxu0 0
        %2153 = vmatprep.subr.bf16.mxu0 0
        %2154 = vmatpush1.bf16.msra.mxu0 0
        %2155 = vmatprep.subr.bf16.mxu0 0
        %2156 = vmatpush1.bf16.msra.mxu0 0
        %2157 = vmatprep.subr.bf16.mxu0 0
        %2158 = vmatpush1.bf16.msra.mxu0 0
        %2159 = vmatprep.subr.bf16.mxu0 0
        %2160 = vmatpush1.bf16.msra.mxu0 0
        %2161 = vmatprep.subr.bf16.mxu0 0
        %2162 = vmatpush1.bf16.msra.mxu0 0
        %2163 = vmatprep.subr.bf16.mxu0 0
        %2164 = vmatpush1.bf16.msra.mxu0 0
        %2165 = vmatprep.subr.bf16.mxu0 0
        %2166 = vmatpush1.bf16.msra.mxu0 0
        %2167 = vmatprep.subr.bf16.mxu0 0
        %2168 = vmatpush1.bf16.msra.mxu0 0
        %2169 = vmatprep.mubr.bf16.mxu0 0
        %2170 = vmatmul.mubr.bf16.gmra.mrb[0].mxu0 %v2132
        %v2171 = vpop.f32.mrb[0].mxu0
        %v2172 = vadd.f32 0.0, %v2171
        %v2173 = vpop.f32.mrb[0].mxu0
        %v2174 = vpop.f32.mrb[0].mxu0
        %v2175 = vpop.f32.mrb[0].mxu0
        %2176 = vdwg.mxu0
        %v2178 = vsel %vm1466, %v2037, 0
        %v2181 = vsel %vm2041, %v1382, 0
        %2183 = vmatprep.subr.bf16.mxu0 0
        %2184 = vmatpush1.bf16.msra.mxu0 %v2181
        %2185 = vmatprep.subr.bf16.mxu0 0
        %2186 = vmatpush1.bf16.msra.mxu0 0
        %2187 = vmatprep.subr.bf16.mxu0 0
        %2188 = vmatpush1.bf16.msra.mxu0 0
        %2189 = vmatprep.subr.bf16.mxu0 0
        %2190 = vmatpush1.bf16.msra.mxu0 0
        %2191 = vmatprep.subr.bf16.mxu0 0
        %2192 = vmatpush1.bf16.msra.mxu0 0
        %2193 = vmatprep.subr.bf16.mxu0 0
        %2194 = vmatpush1.bf16.msra.mxu0 0
        %2195 = vmatprep.subr.bf16.mxu0 0
        %2196 = vmatpush1.bf16.msra.mxu0 0
        %2197 = vmatprep.subr.bf16.mxu0 0
        %2198 = vmatpush1.bf16.msra.mxu0 0
        %2199 = vmatprep.subr.bf16.mxu0 0
        %2200 = vmatpush1.bf16.msra.mxu0 0
        %2201 = vmatprep.subr.bf16.mxu0 0
        %2202 = vmatpush1.bf16.msra.mxu0 0
        %2203 = vmatprep.subr.bf16.mxu0 0
        %2204 = vmatpush1.bf16.msra.mxu0 0
        %2205 = vmatprep.subr.bf16.mxu0 0
        %2206 = vmatpush1.bf16.msra.mxu0 0
        %2207 = vmatprep.subr.bf16.mxu0 0
        %2208 = vmatpush1.bf16.msra.mxu0 0
        %2209 = vmatprep.subr.bf16.mxu0 0
        %2210 = vmatpush1.bf16.msra.mxu0 0
        %2211 = vmatprep.subr.bf16.mxu0 0
        %2212 = vmatpush1.bf16.msra.mxu0 0
        %2213 = vmatprep.subr.bf16.mxu0 0
        %2214 = vmatpush1.bf16.msra.mxu0 0
        %2215 = vmatprep.mubr.bf16.mxu0 0
        %2216 = vmatmul.mubr.bf16.gmra.mrb[0].mxu0 %v2178
        %v2217 = vpop.f32.mrb[0].mxu0
        %v2218 = vadd.f32 0.0, %v2217
        %v2219 = vpop.f32.mrb[0].mxu0
        %v2220 = vpop.f32.mrb[0].mxu0
        %v2221 = vpop.f32.mrb[0].mxu0
        %2222 = vdwg.mxu0
        %2224 = vrot.lane.b32.xlu0 %v2126, 8
        %v2225 = vpop.permute.xlu0 %2224
        %2228 = vrot.lane.b32.xlu0 %v2172, 16
        %v2229 = vpop.permute.xlu0 %2228
        %2232 = vrot.lane.b32.xlu0 %v2218, 24
        %v2233 = vpop.permute.xlu0 %2232
        %v2235 = vsel %vm1466, %v2080, %v2225
        %vm2236 = vcmask 130048
        %v2237 = vsel %vm2236, %v2235, %v2229
        %vm2238 = vcmask 195584
        %v2239 = vsel %vm2238, %v2237, %v2233
        %v2240 = vpack.c.bf16 %v2239, %v2239
        %v2241 = vld [vmem:[%s8] sm:$0xf]
        %v2242 = vld [vmem:[%s8 + $0x4] sm:$0xf]
        %v2243 = vld [vmem:[%s8 + $0x8] sm:$0xf]
        %v2244 = vld [vmem:[%s8 + $0xc] sm:$0xf]
        %v2245 = vld [vmem:[%s9] sm:$0x1]
        %v2247 = vlaneseq
        %v2248 = vshrl.u32 %v2247, 7
        %v2249 = vsub.s32 0, %v2248
        %v2250 = vrot.slane %v2245, %v2249
        %v2256 = vunpack.c.l.b16 %v2241
        %v2257 = vunpack.c.l.b16 %v2242
        %v2258 = vunpack.c.l.b16 %v2243
        %v2259 = vunpack.c.l.b16 %v2244
        %v2260 = vpack.c.b16 %v2257, %v2256
        %v2261 = vpack.c.b16 %v2259, %v2258
        %v2265 = vsel %vm843, %v2240, 0
        %2267 = vmatprep.subr.bf16.mxu0 0
        %2268 = vmatpush1.bf16.msra.mxu0 %v2260
        %2269 = vmatprep.subr.bf16.mxu0 0
        %2270 = vmatpush1.bf16.msra.mxu0 %v2261
        %2271 = vmatprep.subr.bf16.mxu0 0
        %2272 = vmatpush1.bf16.msra.mxu0 0
        %2273 = vmatprep.subr.bf16.mxu0 0
        %2274 = vmatpush1.bf16.msra.mxu0 0
        %2275 = vmatprep.subr.bf16.mxu0 0
        %2276 = vmatpush1.bf16.msra.mxu0 0
        %2277 = vmatprep.subr.bf16.mxu0 0
        %2278 = vmatpush1.bf16.msra.mxu0 0
        %2279 = vmatprep.subr.bf16.mxu0 0
        %2280 = vmatpush1.bf16.msra.mxu0 0
        %2281 = vmatprep.subr.bf16.mxu0 0
        %2282 = vmatpush1.bf16.msra.mxu0 0
        %2283 = vmatprep.subr.bf16.mxu0 0
        %2284 = vmatpush1.bf16.msra.mxu0 0
        %2285 = vmatprep.subr.bf16.mxu0 0
        %2286 = vmatpush1.bf16.msra.mxu0 0
        %2287 = vmatprep.subr.bf16.mxu0 0
        %2288 = vmatpush1.bf16.msra.mxu0 0
        %2289 = vmatprep.subr.bf16.mxu0 0
        %2290 = vmatpush1.bf16.msra.mxu0 0
        %2291 = vmatprep.subr.bf16.mxu0 0
        %2292 = vmatpush1.bf16.msra.mxu0 0
        %2293 = vmatprep.subr.bf16.mxu0 0
        %2294 = vmatpush1.bf16.msra.mxu0 0
        %2295 = vmatprep.subr.bf16.mxu0 0
        %2296 = vmatpush1.bf16.msra.mxu0 0
        %2297 = vmatprep.subr.bf16.mxu0 0
        %2298 = vmatpush1.bf16.msra.mxu0 0
        %2299 = vmatprep.mubr.bf16.mxu0 0
        %2300 = vmatmul.mubr.bf16.gmra.mrb[0].mxu0 %v2265
        %v2301 = vpop.f32.mrb[0].mxu0
        %v2302 = vadd.f32 %v2250, %v2301
        %v2303 = vpop.f32.mrb[0].mxu0
        %v2304 = vpop.f32.mrb[0].mxu0
        %v2305 = vpop.f32.mrb[0].mxu0
        %2306 = vdwg.mxu0
        %v2307 = vadd.f32 %v2302, %v810
        %v2308 = vsel %vm843, %v2307, 0.0
        %2309 = vadd.xlane.f32.xlu0 %v2308
        %v2310 = vpop.xlane.xlu0 %2309
        %v2311 = vrcp.pop 32.0
        %v2312 = vmul.f32 %v2310, %v2311
        %v2313 = vsub.f32 %v2307, %v2312
        %v2314 = vmul.f32 %v2313, %v2313
        %v2315 = vsel %vm843, %v2314, 0.0
        %2316 = vadd.xlane.f32.xlu0 %v2315
        %v2317 = vpop.xlane.xlu0 %2316
        %v2318 = vmul.f32 %v2317, %v2311
        %v2319 = vadd.f32 %v2318, 1e-05
        %v2320 = vrsqrt.pop %v2319
        %v2321 = vmul.f32 %v2313, %v2320
        %v2322 = vld [vmem:[%s16] sm:$0x1]
        %v2324 = vlaneseq
        %v2325 = vshrl.u32 %v2324, 7
        %v2326 = vsub.s32 0, %v2325
        %v2327 = vrot.slane %v2322, %v2326
        %v2329 = vmul.f32 %v2321, %v2327
        %v2330 = vld [vmem:[%s17] sm:$0x1]
        %v2332 = vlaneseq
        %v2333 = vshrl.u32 %v2332, 7
        %v2334 = vsub.s32 0, %v2333
        %v2335 = vrot.slane %v2330, %v2334
        %v2337 = vadd.f32 %v2329, %v2335
        %v2338 = vpack.c.bf16 %v2337, %v2337
        %v2339 = vld [vmem:[%s18] sm:$0xf]
        %v2340 = vld [vmem:[%s18 + $0x4] sm:$0xf]
        %v2341 = vld [vmem:[%s18 + $0x8] sm:$0xf]
        %v2342 = vld [vmem:[%s18 + $0xc] sm:$0xf]
        %v2343 = vld [vmem:[%s19] sm:$0x1]
        %v2345 = vlaneseq
        %v2346 = vshrl.u32 %v2345, 7
        %v2347 = vsub.s32 0, %v2346
        %v2348 = vrot.slane %v2343, %v2347
        %v2354 = vunpack.c.l.b16 %v2339
        %v2355 = vunpack.c.l.b16 %v2340
        %v2356 = vunpack.c.l.b16 %v2341
        %v2357 = vunpack.c.l.b16 %v2342
        %v2358 = vpack.c.b16 %v2355, %v2354
        %v2359 = vpack.c.b16 %v2357, %v2356
        %v2363 = vsel %vm843, %v2338, 0
        %2365 = vmatprep.subr.bf16.mxu0 0
        %2366 = vmatpush1.bf16.msra.mxu0 %v2358
        %2367 = vmatprep.subr.bf16.mxu0 0
        %2368 = vmatpush1.bf16.msra.mxu0 %v2359
        %2369 = vmatprep.subr.bf16.mxu0 0
        %2370 = vmatpush1.bf16.msra.mxu0 0
        %2371 = vmatprep.subr.bf16.mxu0 0
        %2372 = vmatpush1.bf16.msra.mxu0 0
        %2373 = vmatprep.subr.bf16.mxu0 0
        %2374 = vmatpush1.bf16.msra.mxu0 0
        %2375 = vmatprep.subr.bf16.mxu0 0
        %2376 = vmatpush1.bf16.msra.mxu0 0
        %2377 = vmatprep.subr.bf16.mxu0 0
        %2378 = vmatpush1.bf16.msra.mxu0 0
        %2379 = vmatprep.subr.bf16.mxu0 0
        %2380 = vmatpush1.bf16.msra.mxu0 0
        %2381 = vmatprep.subr.bf16.mxu0 0
        %2382 = vmatpush1.bf16.msra.mxu0 0
        %2383 = vmatprep.subr.bf16.mxu0 0
        %2384 = vmatpush1.bf16.msra.mxu0 0
        %2385 = vmatprep.subr.bf16.mxu0 0
        %2386 = vmatpush1.bf16.msra.mxu0 0
        %2387 = vmatprep.subr.bf16.mxu0 0
        %2388 = vmatpush1.bf16.msra.mxu0 0
        %2389 = vmatprep.subr.bf16.mxu0 0
        %2390 = vmatpush1.bf16.msra.mxu0 0
        %2391 = vmatprep.subr.bf16.mxu0 0
        %2392 = vmatpush1.bf16.msra.mxu0 0
        %2393 = vmatprep.subr.bf16.mxu0 0
        %2394 = vmatpush1.bf16.msra.mxu0 0
        %2395 = vmatprep.subr.bf16.mxu0 0
        %2396 = vmatpush1.bf16.msra.mxu0 0
        %2397 = vmatprep.mubr.bf16.mxu0 0
        %2398 = vmatmul.mubr.bf16.gmra.mrb[0].mxu0 %v2363
        %v2399 = vpop.f32.mrb[0].mxu0
        %v2400 = vadd.f32 %v2348, %v2399
        %v2401 = vpop.f32.mrb[0].mxu0
        %v2402 = vpop.f32.mrb[0].mxu0
        %v2403 = vpop.f32.mrb[0].mxu0
        %2404 = vdwg.mxu0
        %v2405 = vmul.f32 %v2400, 0.5
        %v2406 = vmul.f32 %v2400, 0.044715
        %v2407 = vmul.f32 %v2406, %v2400
        %v2408 = vmul.f32 %v2407, %v2400
        %v2409 = vadd.f32 %v2400, %v2408
        %v2410 = vmul.f32 %v2409, 0.7978846
        %v2411 = vtanh.pop %v2410
        %v2412 = vadd.f32 %v2411, 1.0
        %v2413 = vmul.f32 %v2405, %v2412
        %v2414 = vpack.c.bf16 %v2413, %v2413
        %v2415 = vld [vmem:[%s20] sm:$0xf]
        %v2416 = vld [vmem:[%s20 + $0x4] sm:$0xf]
        %v2417 = vld [vmem:[%s20 + $0x8] sm:$0xf]
        %v2418 = vld [vmem:[%s20 + $0xc] sm:$0xf]
        %v2419 = vld [vmem:[%s20 + $0x10] sm:$0xf]
        %v2420 = vld [vmem:[%s20 + $0x14] sm:$0xf]
        %v2421 = vld [vmem:[%s20 + $0x18] sm:$0xf]
        %v2422 = vld [vmem:[%s20 + $0x1c] sm:$0xf]
        %v2423 = vld [vmem:[%s21] sm:$0x1]
        %v2425 = vlaneseq
        %v2426 = vshrl.u32 %v2425, 7
        %v2427 = vsub.s32 0, %v2426
        %v2428 = vrot.slane %v2423, %v2427
        %v2438 = vunpack.c.l.b16 %v2415
        %v2439 = vunpack.c.l.b16 %v2416
        %v2440 = vunpack.c.l.b16 %v2417
        %v2441 = vunpack.c.l.b16 %v2418
        %v2442 = vunpack.c.l.b16 %v2419
        %v2443 = vunpack.c.l.b16 %v2420
        %v2444 = vunpack.c.l.b16 %v2421
        %v2445 = vunpack.c.l.b16 %v2422
        %v2446 = vpack.c.b16 %v2439, %v2438
        %v2447 = vpack.c.b16 %v2441, %v2440
        %v2448 = vpack.c.b16 %v2443, %v2442
        %v2449 = vpack.c.b16 %v2445, %v2444
        %vm2454 = vcmask 523264
        %v2456 = vsel %vm2454, %v2414, 0
        %2458 = vmatprep.subr.bf16.mxu0 0
        %2459 = vmatpush1.bf16.msra.mxu0 %v2446
        %2460 = vmatprep.subr.bf16.mxu0 0
        %2461 = vmatpush1.bf16.msra.mxu0 %v2447
        %2462 = vmatprep.subr.bf16.mxu0 0
        %2463 = vmatpush1.bf16.msra.mxu0 %v2448
        %2464 = vmatprep.subr.bf16.mxu0 0
        %2465 = vmatpush1.bf16.msra.mxu0 %v2449
        %2466 = vmatprep.subr.bf16.mxu0 0
        %2467 = vmatpush1.bf16.msra.mxu0 0
        %2468 = vmatprep.subr.bf16.mxu0 0
        %2469 = vmatpush1.bf16.msra.mxu0 0
        %2470 = vmatprep.subr.bf16.mxu0 0
        %2471 = vmatpush1.bf16.msra.mxu0 0
        %2472 = vmatprep.subr.bf16.mxu0 0
        %2473 = vmatpush1.bf16.msra.mxu0 0
        %2474 = vmatprep.subr.bf16.mxu0 0
        %2475 = vmatpush1.bf16.msra.mxu0 0
        %2476 = vmatprep.subr.bf16.mxu0 0
        %2477 = vmatpush1.bf16.msra.mxu0 0
        %2478 = vmatprep.subr.bf16.mxu0 0
        %2479 = vmatpush1.bf16.msra.mxu0 0
        %2480 = vmatprep.subr.bf16.mxu0 0
        %2481 = vmatpush1.bf16.msra.mxu0 0
        %2482 = vmatprep.subr.bf16.mxu0 0
        %2483 = vmatpush1.bf16.msra.mxu0 0
        %2484 = vmatprep.subr.bf16.mxu0 0
        %2485 = vmatpush1.bf16.msra.mxu0 0
        %2486 = vmatprep.subr.bf16.mxu0 0
        %2487 = vmatpush1.bf16.msra.mxu0 0
        %2488 = vmatprep.subr.bf16.mxu0 0
        %2489 = vmatpush1.bf16.msra.mxu0 0
        %2490 = vmatprep.mubr.bf16.mxu0 0
        %2491 = vmatmul.mubr.bf16.gmra.mrb[0].mxu0 %v2456
        %v2492 = vpop.f32.mrb[0].mxu0
        %v2493 = vadd.f32 %v2428, %v2492
        %v2494 = vpop.f32.mrb[0].mxu0
        %v2495 = vpop.f32.mrb[0].mxu0
        %v2496 = vpop.f32.mrb[0].mxu0
        %2497 = vdwg.mxu0
        %v2498 = vadd.f32 %v2493, %v2337
        %v2499 = vsel %vm843, %v2498, 0.0
        %2500 = vadd.xlane.f32.xlu0 %v2499
        %v2501 = vpop.xlane.xlu0 %2500
        %v2502 = vmul.f32 %v2501, %v2311
        %v2503 = vsub.f32 %v2498, %v2502
        %v2504 = vmul.f32 %v2503, %v2503
        %v2505 = vsel %vm843, %v2504, 0.0
        %2506 = vadd.xlane.f32.xlu0 %v2505
        %v2507 = vpop.xlane.xlu0 %2506
        %v2508 = vmul.f32 %v2507, %v2311
        %v2509 = vadd.f32 %v2508, 1e-05
        %v2510 = vrsqrt.pop %v2509
        %v2511 = vmul.f32 %v2503, %v2510
        %v2512 = vld [vmem:[%s22] sm:$0x1]
        %v2514 = vlaneseq
        %v2515 = vshrl.u32 %v2514, 7
        %v2516 = vsub.s32 0, %v2515
        %v2517 = vrot.slane %v2512, %v2516
        %v2519 = vmul.f32 %v2511, %v2517
        %v2520 = vld [vmem:[%s23] sm:$0x1]
        %v2522 = vlaneseq
        %v2523 = vshrl.u32 %v2522, 7
        %v2524 = vsub.s32 0, %v2523
        %v2525 = vrot.slane %v2520, %v2524
        %v2527 = vadd.f32 %v2519, %v2525
        %v2529 = vrot.slane %v2527, 1
        %2530 = vrot.lane.b32.xlu0 %v2529, 32
        %v2531 = vpop.permute.xlu0 %2530
        %v2533 = vrot.slane %v2527, 2
        %2534 = vrot.lane.b32.xlu0 %v2533, 64
        %v2535 = vpop.permute.xlu0 %2534
        %v2537 = vrot.slane %v2527, 3
        %2538 = vrot.lane.b32.xlu0 %v2537, 96
        %v2539 = vpop.permute.xlu0 %2538
        %v2541 = vsel %vm843, %v2527, %v2531
        %v2542 = vsel %vm2454, %v2541, %v2535
        %vm2543 = vcmask 785408
        %v2544 = vsel %vm2543, %v2542, %v2539
        %v2546 = vrot.slane %v2544, 3
        %vm2548 = vcmask 1040384
        %v2549 = vsel %vm2548, %v2544, %v2546
        %2550 = vst [vmem:[%s799] sm:$0x3] %v2549
        %s2551 = sand.u32 %s606, 1
        %s2552 = scalar_lea.sflag [#allocation5], %s2551
        %s2553 = sand.u32 %s606, 1
        %s2554 = smul.addr %s2553, 2
        %s2555 = scalar_lea.vmem [#allocation4], %s2554
        // Predicated region
        $region125: #{tpu_custom_call.1} parent=123 // pred_check
          %p2556 = pneg %p616
        $region126: #{tpu_custom_call.1} parent=123 // pred_check_branch
          %2558 = sbr.rel (%p2556) target = $region128
        $region127: #{tpu_custom_call.1} parent=123 // pred_region
          %s2560 = ssub.s32 32, 32
          %2561 = vsyncadd %s2552, %s2560
          %s2562 = smul.addr %s42, 32
          %s2563 = scalar_lea.hbm %s26, %s2562
          %s2565 = sshll.u32 %s2555, 4
          %s2566 = int_to_ptr.vmem [resolvable:$true] %s2565
          %2568 = dma.vmem_to_hbm [thread:$0]  %s2566, 32, %s2563, %s2552
        $region128: #{tpu_custom_call.1} parent=123 // pred_fallthru
          _
      $region124: #{tpu_custom_call.1} parent=5 // pred_fallthru
        _
      %p2569 = scmp.le.s32.totalorder 2, %s37
      // Predicated region
      $region129: #{tpu_custom_call.1} parent=5 // pred_check
        %p2570 = pneg %p2569
      $region130: #{tpu_custom_call.1} parent=5 // pred_check_branch
        %2572 = sbr.rel (%p2570) target = $region132
      $region131: #{tpu_custom_call.1} parent=5 // pred_region
        %s2573 = ssub.s32 %s37, 2
        // Predicated region
        $region133: #{tpu_custom_call.1} parent=131 // pred_check
          %p2574 = pneg %p622
        $region134: #{tpu_custom_call.1} parent=131 // pred_check_branch
          %2576 = sbr.rel (%p2574) target = $region136
        $region135: #{tpu_custom_call.1} parent=131 // pred_region
          %s2577 = sand.u32 %s607, 1
          %s2578 = scalar_lea.sflag [#allocation5], %s2577
          %s2579 = sand.u32 %s607, 1
          %s2580 = smul.addr %s2579, 2
          %s2581 = scalar_lea.vmem [#allocation4], %s2580
          %2582 = dma.done %s2578, 32
        $region136: #{tpu_custom_call.1} parent=131 // pred_fallthru
          _
      $region132: #{tpu_custom_call.1} parent=5 // pred_fallthru
        _
    $region6: #{tpu_custom_call.1} parent=1 // loop_footer
      %s41 = sadd.s32 1, %s37
    $region7: #{tpu_custom_call.1} parent=1 // loop_footer_branch
      %36 = sbr.rel target = $region3
    $region8: #{tpu_custom_call.1} parent=1 // loop_exit
      _
    %2583 = vsyncpa [#allocation5], 1
    %s2584 = scalar_lea.sflag [#allocation5], 1
    %2585 = vsyncpa %s2584, 1

</llo_original>
